<compile_context>
chip_gen: v7x
topology: tpu7x:2x2x1
jax: 0.10.0
libtpu: 0.0.40
codegen_flags: <defaults>
</compile_context>

<pallas_src>
import math

import jax
import jax.numpy as jnp
from jax import lax
from jax.experimental import pallas as pl
from jax.experimental.pallas import tpu as pltpu

EMB_DIM = 128      # emb_dim default of EPSModel
LAYERS = 6         # number of ConditioningBlocks
PRAND = 0.05       # classifier-free-guidance drop probability (training path)

_SQRT_2_OVER_PI = math.sqrt(2.0 / math.pi)
_GELU_C = 0.044715


# ----------------------------------------------------------------------------
# in-kernel helpers
# ----------------------------------------------------------------------------
def _gelu_kernel(v):
    """tanh-form GELU: 0.5*v*(1 + tanh(sqrt(2/pi)*(v + 0.044715*v^3))).

    tanh lowers to the EUP slot (like exp), so per-element VALU work is ~3x
    lower than the erf polynomial; |diff vs exact erf GELU| ~ 1e-3, well inside
    the bf16-matmul tolerance of this model.
    """
    u = _SQRT_2_OVER_PI * (v + _GELU_C * v * v * v)
    return 0.5 * v * (1.0 + jnp.tanh(u))


def _dot_bf16(a_f32, w_bf16):
    """bf16 x bf16 MXU matmul with f32 accumulation."""
    return jnp.dot(a_f32.astype(jnp.bfloat16), w_bf16,
                   preferred_element_type=jnp.float32)


# ----------------------------------------------------------------------------
# Pallas kernel: whole EPSModel forward (training branch) for one batch tile.
# ----------------------------------------------------------------------------
def eps_kernel(x_ref, pos_ref, cond_ref, keep_ref,
               xe_w1, xe_b1, xe_w2, xe_b2,
               ce_w1, ce_b1, ce_w2, ce_b2,
               te_w1, te_b1, te_w2, te_b2,
               ss_w, ss_b,
               g_proj_w, g_proj_b, g_mlp_w, g_mlp_b,
               fi_w1, fi_b1, fi_w2, fi_b2,
               out_ref, ss_ref):
    D = EMB_DIM

    def mlp2(v, w1, b1, w2, b2):
        # nn.Sequential(Linear, GELU, Linear)
        h = _dot_bf16(v, w1[...]) + b1[...]
        return _dot_bf16(_gelu_kernel(h), w2[...]) + b2[...]

    temb = mlp2(pos_ref[...], te_w1, te_b1, te_w2, te_b2)            # time_layer
    xemb = mlp2(x_ref[...], xe_w1, xe_b1, xe_w2, xe_b2)              # xemb_layer
    rand_cond = cond_ref[...] * keep_ref[...]                        # CFG dropout, (B,1) bcast
    cemb = mlp2(rand_cond, ce_w1, ce_b1, ce_w2, ce_b2)               # cond_layer

    # scale_shift = Sequential(GELU, Linear)(cat([temb, cemb], -1)) for ALL 6 blocks
    # in ONE K=256, N=1536 bf16 matmul.  GELU is elementwise so gelu(cat) == cat(gelu, gelu);
    # the per-layer weights are fused along the output axis in pack_params.
    tc = jnp.concatenate([_gelu_kernel(temb), _gelu_kernel(cemb)], axis=-1)   # (B, 2D)
    # Stage (B, 6*2D) in an explicit VMEM scratch: bounds the layer loop's live set.
    ss_ref[...] = _dot_bf16(tc, ss_w[...]) + ss_b[...]

    def layer_body(i, xemb_c):
        base = pl.multiple_of(i * (2 * D), 2 * D)
        scale = ss_ref[:, pl.ds(base, D)]
        shift = ss_ref[:, pl.ds(base + D, D)]

        xp = _dot_bf16(xemb_c, g_proj_w[i]) + g_proj_b[i]            # proj
        # InstanceNorm1d (no affine, eps=1e-5) on a 2D input == per-row normalization
        # over the feature axis with biased variance.  E[x^2]-mu^2 lets both row
        # reductions issue back-to-back on the XLU.
        mu = jnp.mean(xp, axis=-1, keepdims=True)
        var = jnp.mean(xp * xp, axis=-1, keepdims=True) - mu * mu
        xn = (xp - mu) * lax.rsqrt(var + 1e-5)

        h = _gelu_kernel(scale * xn + shift)                         # mlp = (GELU, Linear)
        h = _dot_bf16(h, g_mlp_w[i]) + g_mlp_b[i]
        return _gelu_kernel(h)                                       # block output act

    xemb = lax.fori_loop(0, LAYERS, layer_body, xemb, unroll=True)

    out_ref[...] = mlp2(xemb, fi_w1, fi_b1, fi_w2, fi_b2)            # final_layer


# ----------------------------------------------------------------------------
# wrapper / glue
# ----------------------------------------------------------------------------
def timestep_embedding(t, dim=EMB_DIM):
    half = dim // 2
    freq = jnp.exp(jnp.arange(half, dtype=jnp.float32) * -(math.log(10000.0) / (half - 1)))
    emb = t.astype(jnp.float32)[:, None] * freq[None, :]
    return jnp.concatenate([jnp.sin(emb), jnp.cos(emb)], axis=1)


def _const_spec(shape):
    """Weight BlockSpec: whole array, same block at every grid step (VMEM-resident)."""
    zero = (0,) * len(shape)
    return pl.BlockSpec(shape, lambda i, _z=zero: _z)


def _choose_tile_b(b):
    """>=2 grid steps whenever possible (v7x megacore), TILE_B=256 on large batches,
    single 8-aligned tile for small batches."""
    if b >= 512:
        return 256
    if b >= 256:
        return 128
    return max(8, ((b + 7) // 8) * 8)


@jax.jit
def eps_forward(x, t, cond, keep, kparams):
    D = EMB_DIM
    B = x.shape[0]
    pos = timestep_embedding(t)

    tile_b = _choose_tile_b(B)
    pad = (-B) % tile_b
    if pad:
        x = jnp.pad(x, ((0, pad), (0, 0)))
        pos = jnp.pad(pos, ((0, pad), (0, 0)))
        cond = jnp.pad(cond, ((0, pad), (0, 0)))
        keep = jnp.pad(keep, ((0, pad), (0, 0)))
    bp = B + pad
    num_tiles = bp // tile_b

    row_spec = pl.BlockSpec((tile_b, D), lambda i: (i, 0))
    col_spec = pl.BlockSpec((tile_b, 1), lambda i: (i, 0))
    in_specs = [row_spec, row_spec, row_spec, col_spec] + \
               [_const_spec(p.shape) for p in kparams]

    # advisory cost hint for XLA scheduling around this custom call
    weight_bytes = sum(int(p.size) * p.dtype.itemsize for p in kparams)
    act_bytes = (3 * bp * D + bp) * 4 + bp * D * 4
    n_dd_matmuls = 8 + 2 * LAYERS                       # (bp,128)@(128,128) matmuls
    cost = pl.CostEstimate(
        flops=2 * bp * D * D * n_dd_matmuls + 2 * bp * (2 * D) * (2 * D * LAYERS),
        transcendentals=18 * bp * D,                    # one tanh per GELU element
        bytes_accessed=weight_bytes + act_bytes,
    )

    out = pl.pallas_call(
        eps_kernel,
        out_shape=jax.ShapeDtypeStruct((bp, D), jnp.float32),
        grid=(num_tiles,),
        in_specs=in_specs,
        out_specs=pl.BlockSpec((tile_b, D), lambda i: (i, 0)),
        scratch_shapes=[pltpu.VMEM((tile_b, LAYERS * 2 * D), jnp.float32)],
        compiler_params=pltpu.CompilerParams(dimension_semantics=("parallel",)),
        cost_estimate=cost,
    )(x, pos, cond, keep, *kparams)
    return out[:B]


def init_params(key):
    """Deterministic xavier-normal weights / zero biases (matches initialize_parameters).

    Weights are stored pre-transposed as (in_features, out_features), f32.
    """
    D, L = EMB_DIM, LAYERS
    ks = jax.random.split(key, 11)

    def xav(k, shape, fan_in, fan_out):
        std = math.sqrt(2.0 / (fan_in + fan_out))
        return jax.random.normal(k, shape, jnp.float32) * std

    b = lambda n: jnp.zeros((1, n), jnp.float32)
    bs = lambda n: jnp.zeros((L, 1, n), jnp.float32)

    xe_w1 = xav(ks[0], (D, D), D, D); xe_w2 = xav(ks[1], (D, D), D, D)
    ce_w1 = xav(ks[2], (D, D), D, D); ce_w2 = xav(ks[3], (D, D), D, D)
    te_w1 = xav(ks[4], (D, D), D, D); te_w2 = xav(ks[5], (D, D), D, D)
    fi_w1 = xav(ks[6], (D, D), D, D); fi_w2 = xav(ks[7], (D, D), D, D)
    g_proj_w = xav(ks[8], (L, D, D), D, D)
    g_ss_w = xav(ks[9], (L, 2 * D, 2 * D), 2 * D, 2 * D)
    g_mlp_w = xav(ks[10], (L, D, D), D, D)

    return (xe_w1, b(D), xe_w2, b(D),
            ce_w1, b(D), ce_w2, b(D),
            te_w1, b(D), te_w2, b(D),
            g_proj_w, bs(D), g_ss_w, bs(2 * D), g_mlp_w, bs(D),
            fi_w1, b(D), fi_w2, b(D))


def pack_params(p):
    """Repack f32 reference params into the kernel layout: bf16 matmul weights,
    f32 biases, scale_shift weights fused across layers into one (2D, 6*2D) slab."""
    (xe_w1, xe_b1, xe_w2, xe_b2,
     ce_w1, ce_b1, ce_w2, ce_b2,
     te_w1, te_b1, te_w2, te_b2,
     g_proj_w, g_proj_b, g_ss_w, g_ss_b, g_mlp_w, g_mlp_b,
     fi_w1, fi_b1, fi_w2, fi_b2) = p
    D, L = EMB_DIM, LAYERS
    bf = lambda w: w.astype(jnp.bfloat16)

    # (L, 2D_in, 2D_out) -> (2D_in, L*2D_out): col block l holds layer l's scale|shift.
    ss_w = jnp.transpose(g_ss_w, (1, 0, 2)).reshape(2 * D, L * 2 * D)
    ss_b = g_ss_b.reshape(1, L * 2 * D)

    return (bf(xe_w1), xe_b1, bf(xe_w2), xe_b2,
            bf(ce_w1), ce_b1, bf(ce_w2), ce_b2,
            bf(te_w1), te_b1, bf(te_w2), te_b2,
            bf(ss_w), ss_b,
            bf(g_proj_w), g_proj_b, bf(g_mlp_w), g_mlp_b,
            bf(fi_w1), fi_b1, bf(fi_w2), fi_b2)


# ----------------------------------------------------------------------------
# pure-JAX reference: original (concat / per-layer) formulation, exact-erf GELU
# (torch default), same bf16 matmul operands as the kernel.
# ----------------------------------------------------------------------------
def _ref_dot(a, w):
    return jnp.dot(a.astype(jnp.bfloat16), w.astype(jnp.bfloat16),
                   preferred_element_type=jnp.float32)


def _gelu_ref(v):
    return jax.nn.gelu(v, approximate=False)


def ref_forward(x, t, cond, keep, p):
    (xe_w1, xe_b1, xe_w2, xe_b2,
     ce_w1, ce_b1, ce_w2, ce_b2,
     te_w1, te_b1, te_w2, te_b2,
     g_proj_w, g_proj_b, g_ss_w, g_ss_b, g_mlp_w, g_mlp_b,
     fi_w1, fi_b1, fi_w2, fi_b2) = p
    D = EMB_DIM

    def mlp2(v, w1, b1, w2, b2):
        return _ref_dot(_gelu_ref(_ref_dot(v, w1) + b1), w2) + b2

    pos = timestep_embedding(t)
    temb = mlp2(pos, te_w1, te_b1, te_w2, te_b2)
    xemb = mlp2(x, xe_w1, xe_b1, xe_w2, xe_b2)
    cemb = mlp2(cond * keep, ce_w1, ce_b1, ce_w2, ce_b2)
    tc = _gelu_ref(jnp.concatenate([temb, cemb], axis=-1))
    for i in range(LAYERS):
        ss = _ref_dot(tc, g_ss_w[i]) + g_ss_b[i]
        scale, shift = ss[:, :D], ss[:, D:]
        xp = _ref_dot(xemb, g_proj_w[i]) + g_proj_b[i]
        mu = jnp.mean(xp, axis=-1, keepdims=True)
        var = jnp.mean(jnp.square(xp - mu), axis=-1, keepdims=True)
        xn = (xp - mu) / jnp.sqrt(var + 1e-5)
        xemb = _gelu_ref(_ref_dot(_gelu_ref(scale * xn + shift), g_mlp_w[i]) + g_mlp_b[i])
    return mlp2(xemb, fi_w1, fi_b1, fi_w2, fi_b2)


# ----------------------------------------------------------------------------
if __name__ == "__main__":
    key = jax.random.PRNGKey(0)
    k_param, k_x, k_cond, k_p, k_t = jax.random.split(key, 5)

    B = 8                                      # small test batch (single 8-row tile)
    params = init_params(k_param)              # f32 reference parameters
    kparams = pack_params(params)              # bf16 / fused kernel parameters

    x = jax.random.normal(k_x, (B, EMB_DIM), jnp.float32)        # noisy input embedding
    cond = jax.random.normal(k_cond, (B, EMB_DIM), jnp.float32)  # synthetic condition embedding
    t = jax.random.randint(k_t, (B,), 0, 1000)                   # diffusion timesteps
    # training-path CFG dropout mask as a (B,1) column, broadcast in-kernel
    keep = (jax.random.uniform(k_p, (B, 1)) > PRAND).astype(jnp.float32)

    out = jax.block_until_ready(eps_forward(x, t, cond, keep, kparams))

    ref = ref_forward(x, t, cond, keep, params)
    scale = float(jnp.max(jnp.abs(ref)))
    err = float(jnp.max(jnp.abs(out - ref)))
    tol = 3e-2 * max(1.0, scale)               # bf16 matmuls + tanh-form GELU
    if not bool(jnp.all(jnp.isfinite(out))) or err > tol:
        raise SystemExit(f"Pallas kernel mismatch vs reference (max abs err = {err}, tol = {tol})")
    print("KERNEL_OK")
</pallas_src>

<mosaic_0001>
module attributes {stable_mosaic.version = 11 : i64} {
  func.func @eps_kernel(%arg0: i32, %arg1: memref<8x128xf32, #tpu.memory_space<vmem>>, %arg2: memref<8x128xf32, #tpu.memory_space<vmem>>, %arg3: memref<8x128xf32, #tpu.memory_space<vmem>>, %arg4: memref<8x1xf32, #tpu.memory_space<vmem>>, %arg5: memref<128x128xbf16, #tpu.memory_space<vmem>>, %arg6: memref<1x128xf32, #tpu.memory_space<vmem>>, %arg7: memref<128x128xbf16, #tpu.memory_space<vmem>>, %arg8: memref<1x128xf32, #tpu.memory_space<vmem>>, %arg9: memref<128x128xbf16, #tpu.memory_space<vmem>>, %arg10: memref<1x128xf32, #tpu.memory_space<vmem>>, %arg11: memref<128x128xbf16, #tpu.memory_space<vmem>>, %arg12: memref<1x128xf32, #tpu.memory_space<vmem>>, %arg13: memref<128x128xbf16, #tpu.memory_space<vmem>>, %arg14: memref<1x128xf32, #tpu.memory_space<vmem>>, %arg15: memref<128x128xbf16, #tpu.memory_space<vmem>>, %arg16: memref<1x128xf32, #tpu.memory_space<vmem>>, %arg17: memref<256x1536xbf16, #tpu.memory_space<vmem>>, %arg18: memref<1x1536xf32, #tpu.memory_space<vmem>>, %arg19: memref<6x128x128xbf16, #tpu.memory_space<vmem>>, %arg20: memref<6x1x128xf32, #tpu.memory_space<vmem>>, %arg21: memref<6x128x128xbf16, #tpu.memory_space<vmem>>, %arg22: memref<6x1x128xf32, #tpu.memory_space<vmem>>, %arg23: memref<128x128xbf16, #tpu.memory_space<vmem>>, %arg24: memref<1x128xf32, #tpu.memory_space<vmem>>, %arg25: memref<128x128xbf16, #tpu.memory_space<vmem>>, %arg26: memref<1x128xf32, #tpu.memory_space<vmem>>, %arg27: memref<8x128xf32, #tpu.memory_space<vmem>>, %arg28: memref<8x1536xf32, #tpu.memory_space<vmem>>) attributes {dimension_semantics = [#tpu.dimension_semantics<parallel>], iteration_bounds = array<i64: 1>, scalar_prefetch = 0 : i64, scratch_operands = 1 : i64, tpu.core_type = #tpu.core_type<tc>, window_params = [{transform_indices = @transform_0, window_bounds = array<i64: 8, 128>}, {transform_indices = @transform_1, window_bounds = array<i64: 8, 128>}, {transform_indices = @transform_2, window_bounds = array<i64: 8, 128>}, {transform_indices = @transform_3, window_bounds = array<i64: 8, 1>}, {pipeline_mode = #tpu.pipeline_mode<synchronous>, transform_indices = @transform_4, window_bounds = array<i64: 128, 128>}, {pipeline_mode = #tpu.pipeline_mode<synchronous>, transform_indices = @transform_5, window_bounds = array<i64: 1, 128>}, {pipeline_mode = #tpu.pipeline_mode<synchronous>, transform_indices = @transform_6, window_bounds = array<i64: 128, 128>}, {pipeline_mode = #tpu.pipeline_mode<synchronous>, transform_indices = @transform_7, window_bounds = array<i64: 1, 128>}, {pipeline_mode = #tpu.pipeline_mode<synchronous>, transform_indices = @transform_8, window_bounds = array<i64: 128, 128>}, {pipeline_mode = #tpu.pipeline_mode<synchronous>, transform_indices = @transform_9, window_bounds = array<i64: 1, 128>}, {pipeline_mode = #tpu.pipeline_mode<synchronous>, transform_indices = @transform_10, window_bounds = array<i64: 128, 128>}, {pipeline_mode = #tpu.pipeline_mode<synchronous>, transform_indices = @transform_11, window_bounds = array<i64: 1, 128>}, {pipeline_mode = #tpu.pipeline_mode<synchronous>, transform_indices = @transform_12, window_bounds = array<i64: 128, 128>}, {pipeline_mode = #tpu.pipeline_mode<synchronous>, transform_indices = @transform_13, window_bounds = array<i64: 1, 128>}, {pipeline_mode = #tpu.pipeline_mode<synchronous>, transform_indices = @transform_14, window_bounds = array<i64: 128, 128>}, {pipeline_mode = #tpu.pipeline_mode<synchronous>, transform_indices = @transform_15, window_bounds = array<i64: 1, 128>}, {pipeline_mode = #tpu.pipeline_mode<synchronous>, transform_indices = @transform_16, window_bounds = array<i64: 256, 1536>}, {pipeline_mode = #tpu.pipeline_mode<synchronous>, transform_indices = @transform_17, window_bounds = array<i64: 1, 1536>}, {pipeline_mode = #tpu.pipeline_mode<synchronous>, transform_indices = @transform_18, window_bounds = array<i64: 6, 128, 128>}, {pipeline_mode = #tpu.pipeline_mode<synchronous>, transform_indices = @transform_19, window_bounds = array<i64: 6, 1, 128>}, {pipeline_mode = #tpu.pipeline_mode<synchronous>, transform_indices = @transform_20, window_bounds = array<i64: 6, 128, 128>}, {pipeline_mode = #tpu.pipeline_mode<synchronous>, transform_indices = @transform_21, window_bounds = array<i64: 6, 1, 128>}, {pipeline_mode = #tpu.pipeline_mode<synchronous>, transform_indices = @transform_22, window_bounds = array<i64: 128, 128>}, {pipeline_mode = #tpu.pipeline_mode<synchronous>, transform_indices = @transform_23, window_bounds = array<i64: 1, 128>}, {pipeline_mode = #tpu.pipeline_mode<synchronous>, transform_indices = @transform_24, window_bounds = array<i64: 128, 128>}, {pipeline_mode = #tpu.pipeline_mode<synchronous>, transform_indices = @transform_25, window_bounds = array<i64: 1, 128>}, {transform_indices = @transform_26, window_bounds = array<i64: 8, 128>}]} {
    %c0 = arith.constant 0 : index
    %c0_0 = arith.constant 0 : index
    %0 = vector.load %arg2[%c0, %c0_0] : memref<8x128xf32, #tpu.memory_space<vmem>>, vector<8x128xf32>
    %c0_1 = arith.constant 0 : index
    %c0_2 = arith.constant 0 : index
    %1 = vector.load %arg13[%c0_1, %c0_2] : memref<128x128xbf16, #tpu.memory_space<vmem>>, vector<128x128xbf16>
    %2 = arith.truncf %0 : vector<8x128xf32> to vector<8x128xbf16>
    %cst = arith.constant dense<0.000000e+00> : vector<8x128xf32>
    %3 = tpu.matmul %2, %1, %cst {dimension_numbers = #tpu.dot_dimension_numbers<[1], [0], [0], [1], [0, 0, 1, 1], [], []>} : vector<8x128xbf16>, vector<128x128xbf16>, vector<8x128xf32> -> vector<8x128xf32>
    %c0_3 = arith.constant 0 : index
    %c0_4 = arith.constant 0 : index
    %4 = vector.load %arg14[%c0_3, %c0_4] : memref<1x128xf32, #tpu.memory_space<vmem>>, vector<1x128xf32>
    %5 = vector.broadcast %4 : vector<1x128xf32> to vector<8x128xf32>
    %6 = arith.addf %3, %5 : vector<8x128xf32>
    %cst_5 = arith.constant 4.471500e-02 : f32
    %7 = vector.broadcast %cst_5 : f32 to vector<8x128xf32>
    %8 = arith.mulf %7, %6 : vector<8x128xf32>
    %9 = arith.mulf %8, %6 : vector<8x128xf32>
    %10 = arith.mulf %9, %6 : vector<8x128xf32>
    %11 = arith.addf %6, %10 : vector<8x128xf32>
    %cst_6 = arith.constant 0.797884583 : f32
    %12 = vector.broadcast %cst_6 : f32 to vector<8x128xf32>
    %13 = arith.mulf %12, %11 : vector<8x128xf32>
    %cst_7 = arith.constant 5.000000e-01 : f32
    %14 = vector.broadcast %cst_7 : f32 to vector<8x128xf32>
    %15 = arith.mulf %14, %6 : vector<8x128xf32>
    %16 = math.tanh %13 : vector<8x128xf32>
    %cst_8 = arith.constant 1.000000e+00 : f32
    %17 = vector.broadcast %cst_8 : f32 to vector<8x128xf32>
    %18 = arith.addf %17, %16 : vector<8x128xf32>
    %19 = arith.mulf %15, %18 : vector<8x128xf32>
    %c0_9 = arith.constant 0 : index
    %c0_10 = arith.constant 0 : index
    %20 = vector.load %arg15[%c0_9, %c0_10] : memref<128x128xbf16, #tpu.memory_space<vmem>>, vector<128x128xbf16>
    %21 = arith.truncf %19 : vector<8x128xf32> to vector<8x128xbf16>
    %cst_11 = arith.constant dense<0.000000e+00> : vector<8x128xf32>
    %22 = tpu.matmul %21, %20, %cst_11 {dimension_numbers = #tpu.dot_dimension_numbers<[1], [0], [0], [1], [0, 0, 1, 1], [], []>} : vector<8x128xbf16>, vector<128x128xbf16>, vector<8x128xf32> -> vector<8x128xf32>
    %c0_12 = arith.constant 0 : index
    %c0_13 = arith.constant 0 : index
    %23 = vector.load %arg16[%c0_12, %c0_13] : memref<1x128xf32, #tpu.memory_space<vmem>>, vector<1x128xf32>
    %24 = vector.broadcast %23 : vector<1x128xf32> to vector<8x128xf32>
    %25 = arith.addf %22, %24 : vector<8x128xf32>
    %c0_14 = arith.constant 0 : index
    %c0_15 = arith.constant 0 : index
    %26 = vector.load %arg1[%c0_14, %c0_15] : memref<8x128xf32, #tpu.memory_space<vmem>>, vector<8x128xf32>
    %c0_16 = arith.constant 0 : index
    %c0_17 = arith.constant 0 : index
    %27 = vector.load %arg5[%c0_16, %c0_17] : memref<128x128xbf16, #tpu.memory_space<vmem>>, vector<128x128xbf16>
    %28 = arith.truncf %26 : vector<8x128xf32> to vector<8x128xbf16>
    %cst_18 = arith.constant dense<0.000000e+00> : vector<8x128xf32>
    %29 = tpu.matmul %28, %27, %cst_18 {dimension_numbers = #tpu.dot_dimension_numbers<[1], [0], [0], [1], [0, 0, 1, 1], [], []>} : vector<8x128xbf16>, vector<128x128xbf16>, vector<8x128xf32> -> vector<8x128xf32>
    %c0_19 = arith.constant 0 : index
    %c0_20 = arith.constant 0 : index
    %30 = vector.load %arg6[%c0_19, %c0_20] : memref<1x128xf32, #tpu.memory_space<vmem>>, vector<1x128xf32>
    %31 = vector.broadcast %30 : vector<1x128xf32> to vector<8x128xf32>
    %32 = arith.addf %29, %31 : vector<8x128xf32>
    %cst_21 = arith.constant 4.471500e-02 : f32
    %33 = vector.broadcast %cst_21 : f32 to vector<8x128xf32>
    %34 = arith.mulf %33, %32 : vector<8x128xf32>
    %35 = arith.mulf %34, %32 : vector<8x128xf32>
    %36 = arith.mulf %35, %32 : vector<8x128xf32>
    %37 = arith.addf %32, %36 : vector<8x128xf32>
    %cst_22 = arith.constant 0.797884583 : f32
    %38 = vector.broadcast %cst_22 : f32 to vector<8x128xf32>
    %39 = arith.mulf %38, %37 : vector<8x128xf32>
    %cst_23 = arith.constant 5.000000e-01 : f32
    %40 = vector.broadcast %cst_23 : f32 to vector<8x128xf32>
    %41 = arith.mulf %40, %32 : vector<8x128xf32>
    %42 = math.tanh %39 : vector<8x128xf32>
    %cst_24 = arith.constant 1.000000e+00 : f32
    %43 = vector.broadcast %cst_24 : f32 to vector<8x128xf32>
    %44 = arith.addf %43, %42 : vector<8x128xf32>
    %45 = arith.mulf %41, %44 : vector<8x128xf32>
    %c0_25 = arith.constant 0 : index
    %c0_26 = arith.constant 0 : index
    %46 = vector.load %arg7[%c0_25, %c0_26] : memref<128x128xbf16, #tpu.memory_space<vmem>>, vector<128x128xbf16>
    %47 = arith.truncf %45 : vector<8x128xf32> to vector<8x128xbf16>
    %cst_27 = arith.constant dense<0.000000e+00> : vector<8x128xf32>
    %48 = tpu.matmul %47, %46, %cst_27 {dimension_numbers = #tpu.dot_dimension_numbers<[1], [0], [0], [1], [0, 0, 1, 1], [], []>} : vector<8x128xbf16>, vector<128x128xbf16>, vector<8x128xf32> -> vector<8x128xf32>
    %c0_28 = arith.constant 0 : index
    %c0_29 = arith.constant 0 : index
    %49 = vector.load %arg8[%c0_28, %c0_29] : memref<1x128xf32, #tpu.memory_space<vmem>>, vector<1x128xf32>
    %50 = vector.broadcast %49 : vector<1x128xf32> to vector<8x128xf32>
    %51 = arith.addf %48, %50 : vector<8x128xf32>
    %c0_30 = arith.constant 0 : index
    %c0_31 = arith.constant 0 : index
    %52 = vector.load %arg3[%c0_30, %c0_31] : memref<8x128xf32, #tpu.memory_space<vmem>>, vector<8x128xf32>
    %c0_32 = arith.constant 0 : index
    %c0_33 = arith.constant 0 : index
    %53 = vector.load %arg4[%c0_32, %c0_33] : memref<8x1xf32, #tpu.memory_space<vmem>>, vector<8x1xf32>
    %54 = vector.broadcast %53 : vector<8x1xf32> to vector<8x128xf32>
    %55 = arith.mulf %52, %54 : vector<8x128xf32>
    %c0_34 = arith.constant 0 : index
    %c0_35 = arith.constant 0 : index
    %56 = vector.load %arg9[%c0_34, %c0_35] : memref<128x128xbf16, #tpu.memory_space<vmem>>, vector<128x128xbf16>
    %57 = arith.truncf %55 : vector<8x128xf32> to vector<8x128xbf16>
    %cst_36 = arith.constant dense<0.000000e+00> : vector<8x128xf32>
    %58 = tpu.matmul %57, %56, %cst_36 {dimension_numbers = #tpu.dot_dimension_numbers<[1], [0], [0], [1], [0, 0, 1, 1], [], []>} : vector<8x128xbf16>, vector<128x128xbf16>, vector<8x128xf32> -> vector<8x128xf32>
    %c0_37 = arith.constant 0 : index
    %c0_38 = arith.constant 0 : index
    %59 = vector.load %arg10[%c0_37, %c0_38] : memref<1x128xf32, #tpu.memory_space<vmem>>, vector<1x128xf32>
    %60 = vector.broadcast %59 : vector<1x128xf32> to vector<8x128xf32>
    %61 = arith.addf %58, %60 : vector<8x128xf32>
    %cst_39 = arith.constant 4.471500e-02 : f32
    %62 = vector.broadcast %cst_39 : f32 to vector<8x128xf32>
    %63 = arith.mulf %62, %61 : vector<8x128xf32>
    %64 = arith.mulf %63, %61 : vector<8x128xf32>
    %65 = arith.mulf %64, %61 : vector<8x128xf32>
    %66 = arith.addf %61, %65 : vector<8x128xf32>
    %cst_40 = arith.constant 0.797884583 : f32
    %67 = vector.broadcast %cst_40 : f32 to vector<8x128xf32>
    %68 = arith.mulf %67, %66 : vector<8x128xf32>
    %cst_41 = arith.constant 5.000000e-01 : f32
    %69 = vector.broadcast %cst_41 : f32 to vector<8x128xf32>
    %70 = arith.mulf %69, %61 : vector<8x128xf32>
    %71 = math.tanh %68 : vector<8x128xf32>
    %cst_42 = arith.constant 1.000000e+00 : f32
    %72 = vector.broadcast %cst_42 : f32 to vector<8x128xf32>
    %73 = arith.addf %72, %71 : vector<8x128xf32>
    %74 = arith.mulf %70, %73 : vector<8x128xf32>
    %c0_43 = arith.constant 0 : index
    %c0_44 = arith.constant 0 : index
    %75 = vector.load %arg11[%c0_43, %c0_44] : memref<128x128xbf16, #tpu.memory_space<vmem>>, vector<128x128xbf16>
    %76 = arith.truncf %74 : vector<8x128xf32> to vector<8x128xbf16>
    %cst_45 = arith.constant dense<0.000000e+00> : vector<8x128xf32>
    %77 = tpu.matmul %76, %75, %cst_45 {dimension_numbers = #tpu.dot_dimension_numbers<[1], [0], [0], [1], [0, 0, 1, 1], [], []>} : vector<8x128xbf16>, vector<128x128xbf16>, vector<8x128xf32> -> vector<8x128xf32>
    %c0_46 = arith.constant 0 : index
    %c0_47 = arith.constant 0 : index
    %78 = vector.load %arg12[%c0_46, %c0_47] : memref<1x128xf32, #tpu.memory_space<vmem>>, vector<1x128xf32>
    %79 = vector.broadcast %78 : vector<1x128xf32> to vector<8x128xf32>
    %80 = arith.addf %77, %79 : vector<8x128xf32>
    %cst_48 = arith.constant 4.471500e-02 : f32
    %81 = vector.broadcast %cst_48 : f32 to vector<8x128xf32>
    %82 = arith.mulf %81, %25 : vector<8x128xf32>
    %83 = arith.mulf %82, %25 : vector<8x128xf32>
    %84 = arith.mulf %83, %25 : vector<8x128xf32>
    %85 = arith.addf %25, %84 : vector<8x128xf32>
    %cst_49 = arith.constant 0.797884583 : f32
    %86 = vector.broadcast %cst_49 : f32 to vector<8x128xf32>
    %87 = arith.mulf %86, %85 : vector<8x128xf32>
    %cst_50 = arith.constant 5.000000e-01 : f32
    %88 = vector.broadcast %cst_50 : f32 to vector<8x128xf32>
    %89 = arith.mulf %88, %25 : vector<8x128xf32>
    %90 = math.tanh %87 : vector<8x128xf32>
    %cst_51 = arith.constant 1.000000e+00 : f32
    %91 = vector.broadcast %cst_51 : f32 to vector<8x128xf32>
    %92 = arith.addf %91, %90 : vector<8x128xf32>
    %93 = arith.mulf %89, %92 : vector<8x128xf32>
    %cst_52 = arith.constant 4.471500e-02 : f32
    %94 = vector.broadcast %cst_52 : f32 to vector<8x128xf32>
    %95 = arith.mulf %94, %80 : vector<8x128xf32>
    %96 = arith.mulf %95, %80 : vector<8x128xf32>
    %97 = arith.mulf %96, %80 : vector<8x128xf32>
    %98 = arith.addf %80, %97 : vector<8x128xf32>
    %cst_53 = arith.constant 0.797884583 : f32
    %99 = vector.broadcast %cst_53 : f32 to vector<8x128xf32>
    %100 = arith.mulf %99, %98 : vector<8x128xf32>
    %cst_54 = arith.constant 5.000000e-01 : f32
    %101 = vector.broadcast %cst_54 : f32 to vector<8x128xf32>
    %102 = arith.mulf %101, %80 : vector<8x128xf32>
    %103 = math.tanh %100 : vector<8x128xf32>
    %cst_55 = arith.constant 1.000000e+00 : f32
    %104 = vector.broadcast %cst_55 : f32 to vector<8x128xf32>
    %105 = arith.addf %104, %103 : vector<8x128xf32>
    %106 = arith.mulf %102, %105 : vector<8x128xf32>
    %107 = tpu.concatenate %93, %106 in 1 : vector<8x128xf32>, vector<8x128xf32> -> vector<8x256xf32>
    %c0_56 = arith.constant 0 : index
    %c0_57 = arith.constant 0 : index
    %108 = vector.load %arg17[%c0_56, %c0_57] : memref<256x1536xbf16, #tpu.memory_space<vmem>>, vector<256x1536xbf16>
    %109 = arith.truncf %107 : vector<8x256xf32> to vector<8x256xbf16>
    %cst_58 = arith.constant dense<0.000000e+00> : vector<8x1536xf32>
    %110 = tpu.matmul %109, %108, %cst_58 {dimension_numbers = #tpu.dot_dimension_numbers<[1], [0], [0], [1], [0, 0, 1, 1], [], []>} : vector<8x256xbf16>, vector<256x1536xbf16>, vector<8x1536xf32> -> vector<8x1536xf32>
    %c0_59 = arith.constant 0 : index
    %c0_60 = arith.constant 0 : index
    %111 = vector.load %arg18[%c0_59, %c0_60] : memref<1x1536xf32, #tpu.memory_space<vmem>>, vector<1x1536xf32>
    %112 = vector.broadcast %111 : vector<1x1536xf32> to vector<8x1536xf32>
    %113 = arith.addf %110, %112 : vector<8x1536xf32>
    %c0_61 = arith.constant 0 : index
    %c0_62 = arith.constant 0 : index
    %114 = vector.load %arg28[%c0_61, %c0_62] : memref<8x1536xf32, #tpu.memory_space<vmem>>, vector<8x1536xf32>
    tpu.vector_store %arg28[%c0_61, %c0_62], %113 {strides = array<i32>} : memref<8x1536xf32, #tpu.memory_space<vmem>>, vector<8x1536xf32>,
    %c0_i32 = arith.constant 0 : i32
    %c256_i32 = arith.constant 256 : i32
    %115 = arith.muli %c0_i32, %c256_i32 : i32
    %116 = tpu.assume_multiple %115, 256 : i32
    %c0_63 = arith.constant 0 : index
    %117 = arith.index_cast %116 : i32 to index
    %118 = vector.load %arg28[%c0_63, %117] : memref<8x1536xf32, #tpu.memory_space<vmem>>, vector<8x128xf32>
    %c128_i32 = arith.constant 128 : i32
    %119 = arith.addi %116, %c128_i32 : i32
    %c0_64 = arith.constant 0 : index
    %120 = arith.index_cast %119 : i32 to index
    %121 = vector.load %arg28[%c0_64, %120] : memref<8x1536xf32, #tpu.memory_space<vmem>>, vector<8x128xf32>
    %122 = arith.index_cast %c0_i32 : i32 to index
    %c0_65 = arith.constant 0 : index
    %c0_66 = arith.constant 0 : index
    %123 = vector.load %arg19[%122, %c0_65, %c0_66] : memref<6x128x128xbf16, #tpu.memory_space<vmem>>, vector<1x128x128xbf16>
    %124 = vector.shape_cast %123 : vector<1x128x128xbf16> to vector<128x128xbf16>
    %125 = arith.truncf %51 : vector<8x128xf32> to vector<8x128xbf16>
    %cst_67 = arith.constant dense<0.000000e+00> : vector<8x128xf32>
    %126 = tpu.matmul %125, %124, %cst_67 {dimension_numbers = #tpu.dot_dimension_numbers<[1], [0], [0], [1], [0, 0, 1, 1], [], []>} : vector<8x128xbf16>, vector<128x128xbf16>, vector<8x128xf32> -> vector<8x128xf32>
    %127 = arith.index_cast %c0_i32 : i32 to index
    %c0_68 = arith.constant 0 : index
    %c0_69 = arith.constant 0 : index
    %128 = vector.load %arg20[%127, %c0_68, %c0_69] : memref<6x1x128xf32, #tpu.memory_space<vmem>>, vector<1x1x128xf32>
    %129 = vector.shape_cast %128 : vector<1x1x128xf32> to vector<1x128xf32>
    %130 = vector.broadcast %129 : vector<1x128xf32> to vector<8x128xf32>
    %131 = arith.addf %126, %130 : vector<8x128xf32>
    %cst_70 = arith.constant dense<0.000000e+00> : vector<8xf32>
    %132 = vector.multi_reduction <add>, %131, %cst_70 [1] : vector<8x128xf32> to vector<8xf32>
    %133 = vector.shape_cast %132 : vector<8xf32> to vector<8x1xf32>
    %cst_71 = arith.constant 1.280000e+02 : f32
    %134 = vector.broadcast %cst_71 : f32 to vector<8x1xf32>
    %135 = arith.divf %133, %134 : vector<8x1xf32>
    %136 = arith.mulf %131, %131 : vector<8x128xf32>
    %cst_72 = arith.constant dense<0.000000e+00> : vector<8xf32>
    %137 = vector.multi_reduction <add>, %136, %cst_72 [1] : vector<8x128xf32> to vector<8xf32>
    %138 = vector.shape_cast %137 : vector<8xf32> to vector<8x1xf32>
    %cst_73 = arith.constant 1.280000e+02 : f32
    %139 = vector.broadcast %cst_73 : f32 to vector<8x1xf32>
    %140 = arith.divf %138, %139 : vector<8x1xf32>
    %141 = arith.mulf %135, %135 : vector<8x1xf32>
    %142 = arith.subf %140, %141 : vector<8x1xf32>
    %143 = vector.broadcast %135 : vector<8x1xf32> to vector<8x128xf32>
    %144 = arith.subf %131, %143 : vector<8x128xf32>
    %cst_74 = arith.constant 9.99999974E-6 : f32
    %145 = vector.broadcast %cst_74 : f32 to vector<8x1xf32>
    %146 = arith.addf %142, %145 : vector<8x1xf32>
    %147 = math.rsqrt %146 : vector<8x1xf32>
    %148 = vector.broadcast %147 : vector<8x1xf32> to vector<8x128xf32>
    %149 = arith.mulf %144, %148 : vector<8x128xf32>
    %150 = arith.mulf %118, %149 : vector<8x128xf32>
    %151 = arith.addf %150, %121 : vector<8x128xf32>
    %cst_75 = arith.constant 4.471500e-02 : f32
    %152 = vector.broadcast %cst_75 : f32 to vector<8x128xf32>
    %153 = arith.mulf %152, %151 : vector<8x128xf32>
    %154 = arith.mulf %153, %151 : vector<8x128xf32>
    %155 = arith.mulf %154, %151 : vector<8x128xf32>
    %156 = arith.addf %151, %155 : vector<8x128xf32>
    %cst_76 = arith.constant 0.797884583 : f32
    %157 = vector.broadcast %cst_76 : f32 to vector<8x128xf32>
    %158 = arith.mulf %157, %156 : vector<8x128xf32>
    %cst_77 = arith.constant 5.000000e-01 : f32
    %159 = vector.broadcast %cst_77 : f32 to vector<8x128xf32>
    %160 = arith.mulf %159, %151 : vector<8x128xf32>
    %161 = math.tanh %158 : vector<8x128xf32>
    %cst_78 = arith.constant 1.000000e+00 : f32
    %162 = vector.broadcast %cst_78 : f32 to vector<8x128xf32>
    %163 = arith.addf %162, %161 : vector<8x128xf32>
    %164 = arith.mulf %160, %163 : vector<8x128xf32>
    %165 = arith.index_cast %c0_i32 : i32 to index
    %c0_79 = arith.constant 0 : index
    %c0_80 = arith.constant 0 : index
    %166 = vector.load %arg21[%165, %c0_79, %c0_80] : memref<6x128x128xbf16, #tpu.memory_space<vmem>>, vector<1x128x128xbf16>
    %167 = vector.shape_cast %166 : vector<1x128x128xbf16> to vector<128x128xbf16>
    %168 = arith.truncf %164 : vector<8x128xf32> to vector<8x128xbf16>
    %cst_81 = arith.constant dense<0.000000e+00> : vector<8x128xf32>
    %169 = tpu.matmul %168, %167, %cst_81 {dimension_numbers = #tpu.dot_dimension_numbers<[1], [0], [0], [1], [0, 0, 1, 1], [], []>} : vector<8x128xbf16>, vector<128x128xbf16>, vector<8x128xf32> -> vector<8x128xf32>
    %170 = arith.index_cast %c0_i32 : i32 to index
    %c0_82 = arith.constant 0 : index
    %c0_83 = arith.constant 0 : index
    %171 = vector.load %arg22[%170, %c0_82, %c0_83] : memref<6x1x128xf32, #tpu.memory_space<vmem>>, vector<1x1x128xf32>
    %172 = vector.shape_cast %171 : vector<1x1x128xf32> to vector<1x128xf32>
    %173 = vector.broadcast %172 : vector<1x128xf32> to vector<8x128xf32>
    %174 = arith.addf %169, %173 : vector<8x128xf32>
    %cst_84 = arith.constant 4.471500e-02 : f32
    %175 = vector.broadcast %cst_84 : f32 to vector<8x128xf32>
    %176 = arith.mulf %175, %174 : vector<8x128xf32>
    %177 = arith.mulf %176, %174 : vector<8x128xf32>
    %178 = arith.mulf %177, %174 : vector<8x128xf32>
    %179 = arith.addf %174, %178 : vector<8x128xf32>
    %cst_85 = arith.constant 0.797884583 : f32
    %180 = vector.broadcast %cst_85 : f32 to vector<8x128xf32>
    %181 = arith.mulf %180, %179 : vector<8x128xf32>
    %cst_86 = arith.constant 5.000000e-01 : f32
    %182 = vector.broadcast %cst_86 : f32 to vector<8x128xf32>
    %183 = arith.mulf %182, %174 : vector<8x128xf32>
    %184 = math.tanh %181 : vector<8x128xf32>
    %cst_87 = arith.constant 1.000000e+00 : f32
    %185 = vector.broadcast %cst_87 : f32 to vector<8x128xf32>
    %186 = arith.addf %185, %184 : vector<8x128xf32>
    %187 = arith.mulf %183, %186 : vector<8x128xf32>
    %c1_i32 = arith.constant 1 : i32
    %c256_i32_88 = arith.constant 256 : i32
    %188 = arith.muli %c1_i32, %c256_i32_88 : i32
    %189 = tpu.assume_multiple %188, 256 : i32
    %c0_89 = arith.constant 0 : index
    %190 = arith.index_cast %189 : i32 to index
    %191 = vector.load %arg28[%c0_89, %190] : memref<8x1536xf32, #tpu.memory_space<vmem>>, vector<8x128xf32>
    %c128_i32_90 = arith.constant 128 : i32
    %192 = arith.addi %189, %c128_i32_90 : i32
    %c0_91 = arith.constant 0 : index
    %193 = arith.index_cast %192 : i32 to index
    %194 = vector.load %arg28[%c0_91, %193] : memref<8x1536xf32, #tpu.memory_space<vmem>>, vector<8x128xf32>
    %195 = arith.index_cast %c1_i32 : i32 to index
    %c0_92 = arith.constant 0 : index
    %c0_93 = arith.constant 0 : index
    %196 = vector.load %arg19[%195, %c0_92, %c0_93] : memref<6x128x128xbf16, #tpu.memory_space<vmem>>, vector<1x128x128xbf16>
    %197 = vector.shape_cast %196 : vector<1x128x128xbf16> to vector<128x128xbf16>
    %198 = arith.truncf %187 : vector<8x128xf32> to vector<8x128xbf16>
    %cst_94 = arith.constant dense<0.000000e+00> : vector<8x128xf32>
    %199 = tpu.matmul %198, %197, %cst_94 {dimension_numbers = #tpu.dot_dimension_numbers<[1], [0], [0], [1], [0, 0, 1, 1], [], []>} : vector<8x128xbf16>, vector<128x128xbf16>, vector<8x128xf32> -> vector<8x128xf32>
    %200 = arith.index_cast %c1_i32 : i32 to index
    %c0_95 = arith.constant 0 : index
    %c0_96 = arith.constant 0 : index
    %201 = vector.load %arg20[%200, %c0_95, %c0_96] : memref<6x1x128xf32, #tpu.memory_space<vmem>>, vector<1x1x128xf32>
    %202 = vector.shape_cast %201 : vector<1x1x128xf32> to vector<1x128xf32>
    %203 = vector.broadcast %202 : vector<1x128xf32> to vector<8x128xf32>
    %204 = arith.addf %199, %203 : vector<8x128xf32>
    %cst_97 = arith.constant dense<0.000000e+00> : vector<8xf32>
    %205 = vector.multi_reduction <add>, %204, %cst_97 [1] : vector<8x128xf32> to vector<8xf32>
    %206 = vector.shape_cast %205 : vector<8xf32> to vector<8x1xf32>
    %cst_98 = arith.constant 1.280000e+02 : f32
    %207 = vector.broadcast %cst_98 : f32 to vector<8x1xf32>
    %208 = arith.divf %206, %207 : vector<8x1xf32>
    %209 = arith.mulf %204, %204 : vector<8x128xf32>
    %cst_99 = arith.constant dense<0.000000e+00> : vector<8xf32>
    %210 = vector.multi_reduction <add>, %209, %cst_99 [1] : vector<8x128xf32> to vector<8xf32>
    %211 = vector.shape_cast %210 : vector<8xf32> to vector<8x1xf32>
    %cst_100 = arith.constant 1.280000e+02 : f32
    %212 = vector.broadcast %cst_100 : f32 to vector<8x1xf32>
    %213 = arith.divf %211, %212 : vector<8x1xf32>
    %214 = arith.mulf %208, %208 : vector<8x1xf32>
    %215 = arith.subf %213, %214 : vector<8x1xf32>
    %216 = vector.broadcast %208 : vector<8x1xf32> to vector<8x128xf32>
    %217 = arith.subf %204, %216 : vector<8x128xf32>
    %cst_101 = arith.constant 9.99999974E-6 : f32
    %218 = vector.broadcast %cst_101 : f32 to vector<8x1xf32>
    %219 = arith.addf %215, %218 : vector<8x1xf32>
    %220 = math.rsqrt %219 : vector<8x1xf32>
    %221 = vector.broadcast %220 : vector<8x1xf32> to vector<8x128xf32>
    %222 = arith.mulf %217, %221 : vector<8x128xf32>
    %223 = arith.mulf %191, %222 : vector<8x128xf32>
    %224 = arith.addf %223, %194 : vector<8x128xf32>
    %cst_102 = arith.constant 4.471500e-02 : f32
    %225 = vector.broadcast %cst_102 : f32 to vector<8x128xf32>
    %226 = arith.mulf %225, %224 : vector<8x128xf32>
    %227 = arith.mulf %226, %224 : vector<8x128xf32>
    %228 = arith.mulf %227, %224 : vector<8x128xf32>
    %229 = arith.addf %224, %228 : vector<8x128xf32>
    %cst_103 = arith.constant 0.797884583 : f32
    %230 = vector.broadcast %cst_103 : f32 to vector<8x128xf32>
    %231 = arith.mulf %230, %229 : vector<8x128xf32>
    %cst_104 = arith.constant 5.000000e-01 : f32
    %232 = vector.broadcast %cst_104 : f32 to vector<8x128xf32>
    %233 = arith.mulf %232, %224 : vector<8x128xf32>
    %234 = math.tanh %231 : vector<8x128xf32>
    %cst_105 = arith.constant 1.000000e+00 : f32
    %235 = vector.broadcast %cst_105 : f32 to vector<8x128xf32>
    %236 = arith.addf %235, %234 : vector<8x128xf32>
    %237 = arith.mulf %233, %236 : vector<8x128xf32>
    %238 = arith.index_cast %c1_i32 : i32 to index
    %c0_106 = arith.constant 0 : index
    %c0_107 = arith.constant 0 : index
    %239 = vector.load %arg21[%238, %c0_106, %c0_107] : memref<6x128x128xbf16, #tpu.memory_space<vmem>>, vector<1x128x128xbf16>
    %240 = vector.shape_cast %239 : vector<1x128x128xbf16> to vector<128x128xbf16>
    %241 = arith.truncf %237 : vector<8x128xf32> to vector<8x128xbf16>
    %cst_108 = arith.constant dense<0.000000e+00> : vector<8x128xf32>
    %242 = tpu.matmul %241, %240, %cst_108 {dimension_numbers = #tpu.dot_dimension_numbers<[1], [0], [0], [1], [0, 0, 1, 1], [], []>} : vector<8x128xbf16>, vector<128x128xbf16>, vector<8x128xf32> -> vector<8x128xf32>
    %243 = arith.index_cast %c1_i32 : i32 to index
    %c0_109 = arith.constant 0 : index
    %c0_110 = arith.constant 0 : index
    %244 = vector.load %arg22[%243, %c0_109, %c0_110] : memref<6x1x128xf32, #tpu.memory_space<vmem>>, vector<1x1x128xf32>
    %245 = vector.shape_cast %244 : vector<1x1x128xf32> to vector<1x128xf32>
    %246 = vector.broadcast %245 : vector<1x128xf32> to vector<8x128xf32>
    %247 = arith.addf %242, %246 : vector<8x128xf32>
    %cst_111 = arith.constant 4.471500e-02 : f32
    %248 = vector.broadcast %cst_111 : f32 to vector<8x128xf32>
    %249 = arith.mulf %248, %247 : vector<8x128xf32>
    %250 = arith.mulf %249, %247 : vector<8x128xf32>
    %251 = arith.mulf %250, %247 : vector<8x128xf32>
    %252 = arith.addf %247, %251 : vector<8x128xf32>
    %cst_112 = arith.constant 0.797884583 : f32
    %253 = vector.broadcast %cst_112 : f32 to vector<8x128xf32>
    %254 = arith.mulf %253, %252 : vector<8x128xf32>
    %cst_113 = arith.constant 5.000000e-01 : f32
    %255 = vector.broadcast %cst_113 : f32 to vector<8x128xf32>
    %256 = arith.mulf %255, %247 : vector<8x128xf32>
    %257 = math.tanh %254 : vector<8x128xf32>
    %cst_114 = arith.constant 1.000000e+00 : f32
    %258 = vector.broadcast %cst_114 : f32 to vector<8x128xf32>
    %259 = arith.addf %258, %257 : vector<8x128xf32>
    %260 = arith.mulf %256, %259 : vector<8x128xf32>
    %c2_i32 = arith.constant 2 : i32
    %c256_i32_115 = arith.constant 256 : i32
    %261 = arith.muli %c2_i32, %c256_i32_115 : i32
    %262 = tpu.assume_multiple %261, 256 : i32
    %c0_116 = arith.constant 0 : index
    %263 = arith.index_cast %262 : i32 to index
    %264 = vector.load %arg28[%c0_116, %263] : memref<8x1536xf32, #tpu.memory_space<vmem>>, vector<8x128xf32>
    %c128_i32_117 = arith.constant 128 : i32
    %265 = arith.addi %262, %c128_i32_117 : i32
    %c0_118 = arith.constant 0 : index
    %266 = arith.index_cast %265 : i32 to index
    %267 = vector.load %arg28[%c0_118, %266] : memref<8x1536xf32, #tpu.memory_space<vmem>>, vector<8x128xf32>
    %268 = arith.index_cast %c2_i32 : i32 to index
    %c0_119 = arith.constant 0 : index
    %c0_120 = arith.constant 0 : index
    %269 = vector.load %arg19[%268, %c0_119, %c0_120] : memref<6x128x128xbf16, #tpu.memory_space<vmem>>, vector<1x128x128xbf16>
    %270 = vector.shape_cast %269 : vector<1x128x128xbf16> to vector<128x128xbf16>
    %271 = arith.truncf %260 : vector<8x128xf32> to vector<8x128xbf16>
    %cst_121 = arith.constant dense<0.000000e+00> : vector<8x128xf32>
    %272 = tpu.matmul %271, %270, %cst_121 {dimension_numbers = #tpu.dot_dimension_numbers<[1], [0], [0], [1], [0, 0, 1, 1], [], []>} : vector<8x128xbf16>, vector<128x128xbf16>, vector<8x128xf32> -> vector<8x128xf32>
    %273 = arith.index_cast %c2_i32 : i32 to index
    %c0_122 = arith.constant 0 : index
    %c0_123 = arith.constant 0 : index
    %274 = vector.load %arg20[%273, %c0_122, %c0_123] : memref<6x1x128xf32, #tpu.memory_space<vmem>>, vector<1x1x128xf32>
    %275 = vector.shape_cast %274 : vector<1x1x128xf32> to vector<1x128xf32>
    %276 = vector.broadcast %275 : vector<1x128xf32> to vector<8x128xf32>
    %277 = arith.addf %272, %276 : vector<8x128xf32>
    %cst_124 = arith.constant dense<0.000000e+00> : vector<8xf32>
    %278 = vector.multi_reduction <add>, %277, %cst_124 [1] : vector<8x128xf32> to vector<8xf32>
    %279 = vector.shape_cast %278 : vector<8xf32> to vector<8x1xf32>
    %cst_125 = arith.constant 1.280000e+02 : f32
    %280 = vector.broadcast %cst_125 : f32 to vector<8x1xf32>
    %281 = arith.divf %279, %280 : vector<8x1xf32>
    %282 = arith.mulf %277, %277 : vector<8x128xf32>
    %cst_126 = arith.constant dense<0.000000e+00> : vector<8xf32>
    %283 = vector.multi_reduction <add>, %282, %cst_126 [1] : vector<8x128xf32> to vector<8xf32>
    %284 = vector.shape_cast %283 : vector<8xf32> to vector<8x1xf32>
    %cst_127 = arith.constant 1.280000e+02 : f32
    %285 = vector.broadcast %cst_127 : f32 to vector<8x1xf32>
    %286 = arith.divf %284, %285 : vector<8x1xf32>
    %287 = arith.mulf %281, %281 : vector<8x1xf32>
    %288 = arith.subf %286, %287 : vector<8x1xf32>
    %289 = vector.broadcast %281 : vector<8x1xf32> to vector<8x128xf32>
    %290 = arith.subf %277, %289 : vector<8x128xf32>
    %cst_128 = arith.constant 9.99999974E-6 : f32
    %291 = vector.broadcast %cst_128 : f32 to vector<8x1xf32>
    %292 = arith.addf %288, %291 : vector<8x1xf32>
    %293 = math.rsqrt %292 : vector<8x1xf32>
    %294 = vector.broadcast %293 : vector<8x1xf32> to vector<8x128xf32>
    %295 = arith.mulf %290, %294 : vector<8x128xf32>
    %296 = arith.mulf %264, %295 : vector<8x128xf32>
    %297 = arith.addf %296, %267 : vector<8x128xf32>
    %cst_129 = arith.constant 4.471500e-02 : f32
    %298 = vector.broadcast %cst_129 : f32 to vector<8x128xf32>
    %299 = arith.mulf %298, %297 : vector<8x128xf32>
    %300 = arith.mulf %299, %297 : vector<8x128xf32>
    %301 = arith.mulf %300, %297 : vector<8x128xf32>
    %302 = arith.addf %297, %301 : vector<8x128xf32>
    %cst_130 = arith.constant 0.797884583 : f32
    %303 = vector.broadcast %cst_130 : f32 to vector<8x128xf32>
    %304 = arith.mulf %303, %302 : vector<8x128xf32>
    %cst_131 = arith.constant 5.000000e-01 : f32
    %305 = vector.broadcast %cst_131 : f32 to vector<8x128xf32>
    %306 = arith.mulf %305, %297 : vector<8x128xf32>
    %307 = math.tanh %304 : vector<8x128xf32>
    %cst_132 = arith.constant 1.000000e+00 : f32
    %308 = vector.broadcast %cst_132 : f32 to vector<8x128xf32>
    %309 = arith.addf %308, %307 : vector<8x128xf32>
    %310 = arith.mulf %306, %309 : vector<8x128xf32>
    %311 = arith.index_cast %c2_i32 : i32 to index
    %c0_133 = arith.constant 0 : index
    %c0_134 = arith.constant 0 : index
    %312 = vector.load %arg21[%311, %c0_133, %c0_134] : memref<6x128x128xbf16, #tpu.memory_space<vmem>>, vector<1x128x128xbf16>
    %313 = vector.shape_cast %312 : vector<1x128x128xbf16> to vector<128x128xbf16>
    %314 = arith.truncf %310 : vector<8x128xf32> to vector<8x128xbf16>
    %cst_135 = arith.constant dense<0.000000e+00> : vector<8x128xf32>
    %315 = tpu.matmul %314, %313, %cst_135 {dimension_numbers = #tpu.dot_dimension_numbers<[1], [0], [0], [1], [0, 0, 1, 1], [], []>} : vector<8x128xbf16>, vector<128x128xbf16>, vector<8x128xf32> -> vector<8x128xf32>
    %316 = arith.index_cast %c2_i32 : i32 to index
    %c0_136 = arith.constant 0 : index
    %c0_137 = arith.constant 0 : index
    %317 = vector.load %arg22[%316, %c0_136, %c0_137] : memref<6x1x128xf32, #tpu.memory_space<vmem>>, vector<1x1x128xf32>
    %318 = vector.shape_cast %317 : vector<1x1x128xf32> to vector<1x128xf32>
    %319 = vector.broadcast %318 : vector<1x128xf32> to vector<8x128xf32>
    %320 = arith.addf %315, %319 : vector<8x128xf32>
    %cst_138 = arith.constant 4.471500e-02 : f32
    %321 = vector.broadcast %cst_138 : f32 to vector<8x128xf32>
    %322 = arith.mulf %321, %320 : vector<8x128xf32>
    %323 = arith.mulf %322, %320 : vector<8x128xf32>
    %324 = arith.mulf %323, %320 : vector<8x128xf32>
    %325 = arith.addf %320, %324 : vector<8x128xf32>
    %cst_139 = arith.constant 0.797884583 : f32
    %326 = vector.broadcast %cst_139 : f32 to vector<8x128xf32>
    %327 = arith.mulf %326, %325 : vector<8x128xf32>
    %cst_140 = arith.constant 5.000000e-01 : f32
    %328 = vector.broadcast %cst_140 : f32 to vector<8x128xf32>
    %329 = arith.mulf %328, %320 : vector<8x128xf32>
    %330 = math.tanh %327 : vector<8x128xf32>
    %cst_141 = arith.constant 1.000000e+00 : f32
    %331 = vector.broadcast %cst_141 : f32 to vector<8x128xf32>
    %332 = arith.addf %331, %330 : vector<8x128xf32>
    %333 = arith.mulf %329, %332 : vector<8x128xf32>
    %c3_i32 = arith.constant 3 : i32
    %c256_i32_142 = arith.constant 256 : i32
    %334 = arith.muli %c3_i32, %c256_i32_142 : i32
    %335 = tpu.assume_multiple %334, 256 : i32
    %c0_143 = arith.constant 0 : index
    %336 = arith.index_cast %335 : i32 to index
    %337 = vector.load %arg28[%c0_143, %336] : memref<8x1536xf32, #tpu.memory_space<vmem>>, vector<8x128xf32>
    %c128_i32_144 = arith.constant 128 : i32
    %338 = arith.addi %335, %c128_i32_144 : i32
    %c0_145 = arith.constant 0 : index
    %339 = arith.index_cast %338 : i32 to index
    %340 = vector.load %arg28[%c0_145, %339] : memref<8x1536xf32, #tpu.memory_space<vmem>>, vector<8x128xf32>
    %341 = arith.index_cast %c3_i32 : i32 to index
    %c0_146 = arith.constant 0 : index
    %c0_147 = arith.constant 0 : index
    %342 = vector.load %arg19[%341, %c0_146, %c0_147] : memref<6x128x128xbf16, #tpu.memory_space<vmem>>, vector<1x128x128xbf16>
    %343 = vector.shape_cast %342 : vector<1x128x128xbf16> to vector<128x128xbf16>
    %344 = arith.truncf %333 : vector<8x128xf32> to vector<8x128xbf16>
    %cst_148 = arith.constant dense<0.000000e+00> : vector<8x128xf32>
    %345 = tpu.matmul %344, %343, %cst_148 {dimension_numbers = #tpu.dot_dimension_numbers<[1], [0], [0], [1], [0, 0, 1, 1], [], []>} : vector<8x128xbf16>, vector<128x128xbf16>, vector<8x128xf32> -> vector<8x128xf32>
    %346 = arith.index_cast %c3_i32 : i32 to index
    %c0_149 = arith.constant 0 : index
    %c0_150 = arith.constant 0 : index
    %347 = vector.load %arg20[%346, %c0_149, %c0_150] : memref<6x1x128xf32, #tpu.memory_space<vmem>>, vector<1x1x128xf32>
    %348 = vector.shape_cast %347 : vector<1x1x128xf32> to vector<1x128xf32>
    %349 = vector.broadcast %348 : vector<1x128xf32> to vector<8x128xf32>
    %350 = arith.addf %345, %349 : vector<8x128xf32>
    %cst_151 = arith.constant dense<0.000000e+00> : vector<8xf32>
    %351 = vector.multi_reduction <add>, %350, %cst_151 [1] : vector<8x128xf32> to vector<8xf32>
    %352 = vector.shape_cast %351 : vector<8xf32> to vector<8x1xf32>
    %cst_152 = arith.constant 1.280000e+02 : f32
    %353 = vector.broadcast %cst_152 : f32 to vector<8x1xf32>
    %354 = arith.divf %352, %353 : vector<8x1xf32>
    %355 = arith.mulf %350, %350 : vector<8x128xf32>
    %cst_153 = arith.constant dense<0.000000e+00> : vector<8xf32>
    %356 = vector.multi_reduction <add>, %355, %cst_153 [1] : vector<8x128xf32> to vector<8xf32>
    %357 = vector.shape_cast %356 : vector<8xf32> to vector<8x1xf32>
    %cst_154 = arith.constant 1.280000e+02 : f32
    %358 = vector.broadcast %cst_154 : f32 to vector<8x1xf32>
    %359 = arith.divf %357, %358 : vector<8x1xf32>
    %360 = arith.mulf %354, %354 : vector<8x1xf32>
    %361 = arith.subf %359, %360 : vector<8x1xf32>
    %362 = vector.broadcast %354 : vector<8x1xf32> to vector<8x128xf32>
    %363 = arith.subf %350, %362 : vector<8x128xf32>
    %cst_155 = arith.constant 9.99999974E-6 : f32
    %364 = vector.broadcast %cst_155 : f32 to vector<8x1xf32>
    %365 = arith.addf %361, %364 : vector<8x1xf32>
    %366 = math.rsqrt %365 : vector<8x1xf32>
    %367 = vector.broadcast %366 : vector<8x1xf32> to vector<8x128xf32>
    %368 = arith.mulf %363, %367 : vector<8x128xf32>
    %369 = arith.mulf %337, %368 : vector<8x128xf32>
    %370 = arith.addf %369, %340 : vector<8x128xf32>
    %cst_156 = arith.constant 4.471500e-02 : f32
    %371 = vector.broadcast %cst_156 : f32 to vector<8x128xf32>
    %372 = arith.mulf %371, %370 : vector<8x128xf32>
    %373 = arith.mulf %372, %370 : vector<8x128xf32>
    %374 = arith.mulf %373, %370 : vector<8x128xf32>
    %375 = arith.addf %370, %374 : vector<8x128xf32>
    %cst_157 = arith.constant 0.797884583 : f32
    %376 = vector.broadcast %cst_157 : f32 to vector<8x128xf32>
    %377 = arith.mulf %376, %375 : vector<8x128xf32>
    %cst_158 = arith.constant 5.000000e-01 : f32
    %378 = vector.broadcast %cst_158 : f32 to vector<8x128xf32>
    %379 = arith.mulf %378, %370 : vector<8x128xf32>
    %380 = math.tanh %377 : vector<8x128xf32>
    %cst_159 = arith.constant 1.000000e+00 : f32
    %381 = vector.broadcast %cst_159 : f32 to vector<8x128xf32>
    %382 = arith.addf %381, %380 : vector<8x128xf32>
    %383 = arith.mulf %379, %382 : vector<8x128xf32>
    %384 = arith.index_cast %c3_i32 : i32 to index
    %c0_160 = arith.constant 0 : index
    %c0_161 = arith.constant 0 : index
    %385 = vector.load %arg21[%384, %c0_160, %c0_161] : memref<6x128x128xbf16, #tpu.memory_space<vmem>>, vector<1x128x128xbf16>
    %386 = vector.shape_cast %385 : vector<1x128x128xbf16> to vector<128x128xbf16>
    %387 = arith.truncf %383 : vector<8x128xf32> to vector<8x128xbf16>
    %cst_162 = arith.constant dense<0.000000e+00> : vector<8x128xf32>
    %388 = tpu.matmul %387, %386, %cst_162 {dimension_numbers = #tpu.dot_dimension_numbers<[1], [0], [0], [1], [0, 0, 1, 1], [], []>} : vector<8x128xbf16>, vector<128x128xbf16>, vector<8x128xf32> -> vector<8x128xf32>
    %389 = arith.index_cast %c3_i32 : i32 to index
    %c0_163 = arith.constant 0 : index
    %c0_164 = arith.constant 0 : index
    %390 = vector.load %arg22[%389, %c0_163, %c0_164] : memref<6x1x128xf32, #tpu.memory_space<vmem>>, vector<1x1x128xf32>
    %391 = vector.shape_cast %390 : vector<1x1x128xf32> to vector<1x128xf32>
    %392 = vector.broadcast %391 : vector<1x128xf32> to vector<8x128xf32>
    %393 = arith.addf %388, %392 : vector<8x128xf32>
    %cst_165 = arith.constant 4.471500e-02 : f32
    %394 = vector.broadcast %cst_165 : f32 to vector<8x128xf32>
    %395 = arith.mulf %394, %393 : vector<8x128xf32>
    %396 = arith.mulf %395, %393 : vector<8x128xf32>
    %397 = arith.mulf %396, %393 : vector<8x128xf32>
    %398 = arith.addf %393, %397 : vector<8x128xf32>
    %cst_166 = arith.constant 0.797884583 : f32
    %399 = vector.broadcast %cst_166 : f32 to vector<8x128xf32>
    %400 = arith.mulf %399, %398 : vector<8x128xf32>
    %cst_167 = arith.constant 5.000000e-01 : f32
    %401 = vector.broadcast %cst_167 : f32 to vector<8x128xf32>
    %402 = arith.mulf %401, %393 : vector<8x128xf32>
    %403 = math.tanh %400 : vector<8x128xf32>
    %cst_168 = arith.constant 1.000000e+00 : f32
    %404 = vector.broadcast %cst_168 : f32 to vector<8x128xf32>
    %405 = arith.addf %404, %403 : vector<8x128xf32>
    %406 = arith.mulf %402, %405 : vector<8x128xf32>
    %c4_i32 = arith.constant 4 : i32
    %c256_i32_169 = arith.constant 256 : i32
    %407 = arith.muli %c4_i32, %c256_i32_169 : i32
    %408 = tpu.assume_multiple %407, 256 : i32
    %c0_170 = arith.constant 0 : index
    %409 = arith.index_cast %408 : i32 to index
    %410 = vector.load %arg28[%c0_170, %409] : memref<8x1536xf32, #tpu.memory_space<vmem>>, vector<8x128xf32>
    %c128_i32_171 = arith.constant 128 : i32
    %411 = arith.addi %408, %c128_i32_171 : i32
    %c0_172 = arith.constant 0 : index
    %412 = arith.index_cast %411 : i32 to index
    %413 = vector.load %arg28[%c0_172, %412] : memref<8x1536xf32, #tpu.memory_space<vmem>>, vector<8x128xf32>
    %414 = arith.index_cast %c4_i32 : i32 to index
    %c0_173 = arith.constant 0 : index
    %c0_174 = arith.constant 0 : index
    %415 = vector.load %arg19[%414, %c0_173, %c0_174] : memref<6x128x128xbf16, #tpu.memory_space<vmem>>, vector<1x128x128xbf16>
    %416 = vector.shape_cast %415 : vector<1x128x128xbf16> to vector<128x128xbf16>
    %417 = arith.truncf %406 : vector<8x128xf32> to vector<8x128xbf16>
    %cst_175 = arith.constant dense<0.000000e+00> : vector<8x128xf32>
    %418 = tpu.matmul %417, %416, %cst_175 {dimension_numbers = #tpu.dot_dimension_numbers<[1], [0], [0], [1], [0, 0, 1, 1], [], []>} : vector<8x128xbf16>, vector<128x128xbf16>, vector<8x128xf32> -> vector<8x128xf32>
    %419 = arith.index_cast %c4_i32 : i32 to index
    %c0_176 = arith.constant 0 : index
    %c0_177 = arith.constant 0 : index
    %420 = vector.load %arg20[%419, %c0_176, %c0_177] : memref<6x1x128xf32, #tpu.memory_space<vmem>>, vector<1x1x128xf32>
    %421 = vector.shape_cast %420 : vector<1x1x128xf32> to vector<1x128xf32>
    %422 = vector.broadcast %421 : vector<1x128xf32> to vector<8x128xf32>
    %423 = arith.addf %418, %422 : vector<8x128xf32>
    %cst_178 = arith.constant dense<0.000000e+00> : vector<8xf32>
    %424 = vector.multi_reduction <add>, %423, %cst_178 [1] : vector<8x128xf32> to vector<8xf32>
    %425 = vector.shape_cast %424 : vector<8xf32> to vector<8x1xf32>
    %cst_179 = arith.constant 1.280000e+02 : f32
    %426 = vector.broadcast %cst_179 : f32 to vector<8x1xf32>
    %427 = arith.divf %425, %426 : vector<8x1xf32>
    %428 = arith.mulf %423, %423 : vector<8x128xf32>
    %cst_180 = arith.constant dense<0.000000e+00> : vector<8xf32>
    %429 = vector.multi_reduction <add>, %428, %cst_180 [1] : vector<8x128xf32> to vector<8xf32>
    %430 = vector.shape_cast %429 : vector<8xf32> to vector<8x1xf32>
    %cst_181 = arith.constant 1.280000e+02 : f32
    %431 = vector.broadcast %cst_181 : f32 to vector<8x1xf32>
    %432 = arith.divf %430, %431 : vector<8x1xf32>
    %433 = arith.mulf %427, %427 : vector<8x1xf32>
    %434 = arith.subf %432, %433 : vector<8x1xf32>
    %435 = vector.broadcast %427 : vector<8x1xf32> to vector<8x128xf32>
    %436 = arith.subf %423, %435 : vector<8x128xf32>
    %cst_182 = arith.constant 9.99999974E-6 : f32
    %437 = vector.broadcast %cst_182 : f32 to vector<8x1xf32>
    %438 = arith.addf %434, %437 : vector<8x1xf32>
    %439 = math.rsqrt %438 : vector<8x1xf32>
    %440 = vector.broadcast %439 : vector<8x1xf32> to vector<8x128xf32>
    %441 = arith.mulf %436, %440 : vector<8x128xf32>
    %442 = arith.mulf %410, %441 : vector<8x128xf32>
    %443 = arith.addf %442, %413 : vector<8x128xf32>
    %cst_183 = arith.constant 4.471500e-02 : f32
    %444 = vector.broadcast %cst_183 : f32 to vector<8x128xf32>
    %445 = arith.mulf %444, %443 : vector<8x128xf32>
    %446 = arith.mulf %445, %443 : vector<8x128xf32>
    %447 = arith.mulf %446, %443 : vector<8x128xf32>
    %448 = arith.addf %443, %447 : vector<8x128xf32>
    %cst_184 = arith.constant 0.797884583 : f32
    %449 = vector.broadcast %cst_184 : f32 to vector<8x128xf32>
    %450 = arith.mulf %449, %448 : vector<8x128xf32>
    %cst_185 = arith.constant 5.000000e-01 : f32
    %451 = vector.broadcast %cst_185 : f32 to vector<8x128xf32>
    %452 = arith.mulf %451, %443 : vector<8x128xf32>
    %453 = math.tanh %450 : vector<8x128xf32>
    %cst_186 = arith.constant 1.000000e+00 : f32
    %454 = vector.broadcast %cst_186 : f32 to vector<8x128xf32>
    %455 = arith.addf %454, %453 : vector<8x128xf32>
    %456 = arith.mulf %452, %455 : vector<8x128xf32>
    %457 = arith.index_cast %c4_i32 : i32 to index
    %c0_187 = arith.constant 0 : index
    %c0_188 = arith.constant 0 : index
    %458 = vector.load %arg21[%457, %c0_187, %c0_188] : memref<6x128x128xbf16, #tpu.memory_space<vmem>>, vector<1x128x128xbf16>
    %459 = vector.shape_cast %458 : vector<1x128x128xbf16> to vector<128x128xbf16>
    %460 = arith.truncf %456 : vector<8x128xf32> to vector<8x128xbf16>
    %cst_189 = arith.constant dense<0.000000e+00> : vector<8x128xf32>
    %461 = tpu.matmul %460, %459, %cst_189 {dimension_numbers = #tpu.dot_dimension_numbers<[1], [0], [0], [1], [0, 0, 1, 1], [], []>} : vector<8x128xbf16>, vector<128x128xbf16>, vector<8x128xf32> -> vector<8x128xf32>
    %462 = arith.index_cast %c4_i32 : i32 to index
    %c0_190 = arith.constant 0 : index
    %c0_191 = arith.constant 0 : index
    %463 = vector.load %arg22[%462, %c0_190, %c0_191] : memref<6x1x128xf32, #tpu.memory_space<vmem>>, vector<1x1x128xf32>
    %464 = vector.shape_cast %463 : vector<1x1x128xf32> to vector<1x128xf32>
    %465 = vector.broadcast %464 : vector<1x128xf32> to vector<8x128xf32>
    %466 = arith.addf %461, %465 : vector<8x128xf32>
    %cst_192 = arith.constant 4.471500e-02 : f32
    %467 = vector.broadcast %cst_192 : f32 to vector<8x128xf32>
    %468 = arith.mulf %467, %466 : vector<8x128xf32>
    %469 = arith.mulf %468, %466 : vector<8x128xf32>
    %470 = arith.mulf %469, %466 : vector<8x128xf32>
    %471 = arith.addf %466, %470 : vector<8x128xf32>
    %cst_193 = arith.constant 0.797884583 : f32
    %472 = vector.broadcast %cst_193 : f32 to vector<8x128xf32>
    %473 = arith.mulf %472, %471 : vector<8x128xf32>
    %cst_194 = arith.constant 5.000000e-01 : f32
    %474 = vector.broadcast %cst_194 : f32 to vector<8x128xf32>
    %475 = arith.mulf %474, %466 : vector<8x128xf32>
    %476 = math.tanh %473 : vector<8x128xf32>
    %cst_195 = arith.constant 1.000000e+00 : f32
    %477 = vector.broadcast %cst_195 : f32 to vector<8x128xf32>
    %478 = arith.addf %477, %476 : vector<8x128xf32>
    %479 = arith.mulf %475, %478 : vector<8x128xf32>
    %c5_i32 = arith.constant 5 : i32
    %c256_i32_196 = arith.constant 256 : i32
    %480 = arith.muli %c5_i32, %c256_i32_196 : i32
    %481 = tpu.assume_multiple %480, 256 : i32
    %c0_197 = arith.constant 0 : index
    %482 = arith.index_cast %481 : i32 to index
    %483 = vector.load %arg28[%c0_197, %482] : memref<8x1536xf32, #tpu.memory_space<vmem>>, vector<8x128xf32>
    %c128_i32_198 = arith.constant 128 : i32
    %484 = arith.addi %481, %c128_i32_198 : i32
    %c0_199 = arith.constant 0 : index
    %485 = arith.index_cast %484 : i32 to index
    %486 = vector.load %arg28[%c0_199, %485] : memref<8x1536xf32, #tpu.memory_space<vmem>>, vector<8x128xf32>
    %487 = arith.index_cast %c5_i32 : i32 to index
    %c0_200 = arith.constant 0 : index
    %c0_201 = arith.constant 0 : index
    %488 = vector.load %arg19[%487, %c0_200, %c0_201] : memref<6x128x128xbf16, #tpu.memory_space<vmem>>, vector<1x128x128xbf16>
    %489 = vector.shape_cast %488 : vector<1x128x128xbf16> to vector<128x128xbf16>
    %490 = arith.truncf %479 : vector<8x128xf32> to vector<8x128xbf16>
    %cst_202 = arith.constant dense<0.000000e+00> : vector<8x128xf32>
    %491 = tpu.matmul %490, %489, %cst_202 {dimension_numbers = #tpu.dot_dimension_numbers<[1], [0], [0], [1], [0, 0, 1, 1], [], []>} : vector<8x128xbf16>, vector<128x128xbf16>, vector<8x128xf32> -> vector<8x128xf32>
    %492 = arith.index_cast %c5_i32 : i32 to index
    %c0_203 = arith.constant 0 : index
    %c0_204 = arith.constant 0 : index
    %493 = vector.load %arg20[%492, %c0_203, %c0_204] : memref<6x1x128xf32, #tpu.memory_space<vmem>>, vector<1x1x128xf32>
    %494 = vector.shape_cast %493 : vector<1x1x128xf32> to vector<1x128xf32>
    %495 = vector.broadcast %494 : vector<1x128xf32> to vector<8x128xf32>
    %496 = arith.addf %491, %495 : vector<8x128xf32>
    %cst_205 = arith.constant dense<0.000000e+00> : vector<8xf32>
    %497 = vector.multi_reduction <add>, %496, %cst_205 [1] : vector<8x128xf32> to vector<8xf32>
    %498 = vector.shape_cast %497 : vector<8xf32> to vector<8x1xf32>
    %cst_206 = arith.constant 1.280000e+02 : f32
    %499 = vector.broadcast %cst_206 : f32 to vector<8x1xf32>
    %500 = arith.divf %498, %499 : vector<8x1xf32>
    %501 = arith.mulf %496, %496 : vector<8x128xf32>
    %cst_207 = arith.constant dense<0.000000e+00> : vector<8xf32>
    %502 = vector.multi_reduction <add>, %501, %cst_207 [1] : vector<8x128xf32> to vector<8xf32>
    %503 = vector.shape_cast %502 : vector<8xf32> to vector<8x1xf32>
    %cst_208 = arith.constant 1.280000e+02 : f32
    %504 = vector.broadcast %cst_208 : f32 to vector<8x1xf32>
    %505 = arith.divf %503, %504 : vector<8x1xf32>
    %506 = arith.mulf %500, %500 : vector<8x1xf32>
    %507 = arith.subf %505, %506 : vector<8x1xf32>
    %508 = vector.broadcast %500 : vector<8x1xf32> to vector<8x128xf32>
    %509 = arith.subf %496, %508 : vector<8x128xf32>
    %cst_209 = arith.constant 9.99999974E-6 : f32
    %510 = vector.broadcast %cst_209 : f32 to vector<8x1xf32>
    %511 = arith.addf %507, %510 : vector<8x1xf32>
    %512 = math.rsqrt %511 : vector<8x1xf32>
    %513 = vector.broadcast %512 : vector<8x1xf32> to vector<8x128xf32>
    %514 = arith.mulf %509, %513 : vector<8x128xf32>
    %515 = arith.mulf %483, %514 : vector<8x128xf32>
    %516 = arith.addf %515, %486 : vector<8x128xf32>
    %cst_210 = arith.constant 4.471500e-02 : f32
    %517 = vector.broadcast %cst_210 : f32 to vector<8x128xf32>
    %518 = arith.mulf %517, %516 : vector<8x128xf32>
    %519 = arith.mulf %518, %516 : vector<8x128xf32>
    %520 = arith.mulf %519, %516 : vector<8x128xf32>
    %521 = arith.addf %516, %520 : vector<8x128xf32>
    %cst_211 = arith.constant 0.797884583 : f32
    %522 = vector.broadcast %cst_211 : f32 to vector<8x128xf32>
    %523 = arith.mulf %522, %521 : vector<8x128xf32>
    %cst_212 = arith.constant 5.000000e-01 : f32
    %524 = vector.broadcast %cst_212 : f32 to vector<8x128xf32>
    %525 = arith.mulf %524, %516 : vector<8x128xf32>
    %526 = math.tanh %523 : vector<8x128xf32>
    %cst_213 = arith.constant 1.000000e+00 : f32
    %527 = vector.broadcast %cst_213 : f32 to vector<8x128xf32>
    %528 = arith.addf %527, %526 : vector<8x128xf32>
    %529 = arith.mulf %525, %528 : vector<8x128xf32>
    %530 = arith.index_cast %c5_i32 : i32 to index
    %c0_214 = arith.constant 0 : index
    %c0_215 = arith.constant 0 : index
    %531 = vector.load %arg21[%530, %c0_214, %c0_215] : memref<6x128x128xbf16, #tpu.memory_space<vmem>>, vector<1x128x128xbf16>
    %532 = vector.shape_cast %531 : vector<1x128x128xbf16> to vector<128x128xbf16>
    %533 = arith.truncf %529 : vector<8x128xf32> to vector<8x128xbf16>
    %cst_216 = arith.constant dense<0.000000e+00> : vector<8x128xf32>
    %534 = tpu.matmul %533, %532, %cst_216 {dimension_numbers = #tpu.dot_dimension_numbers<[1], [0], [0], [1], [0, 0, 1, 1], [], []>} : vector<8x128xbf16>, vector<128x128xbf16>, vector<8x128xf32> -> vector<8x128xf32>
    %535 = arith.index_cast %c5_i32 : i32 to index
    %c0_217 = arith.constant 0 : index
    %c0_218 = arith.constant 0 : index
    %536 = vector.load %arg22[%535, %c0_217, %c0_218] : memref<6x1x128xf32, #tpu.memory_space<vmem>>, vector<1x1x128xf32>
    %537 = vector.shape_cast %536 : vector<1x1x128xf32> to vector<1x128xf32>
    %538 = vector.broadcast %537 : vector<1x128xf32> to vector<8x128xf32>
    %539 = arith.addf %534, %538 : vector<8x128xf32>
    %cst_219 = arith.constant 4.471500e-02 : f32
    %540 = vector.broadcast %cst_219 : f32 to vector<8x128xf32>
    %541 = arith.mulf %540, %539 : vector<8x128xf32>
    %542 = arith.mulf %541, %539 : vector<8x128xf32>
    %543 = arith.mulf %542, %539 : vector<8x128xf32>
    %544 = arith.addf %539, %543 : vector<8x128xf32>
    %cst_220 = arith.constant 0.797884583 : f32
    %545 = vector.broadcast %cst_220 : f32 to vector<8x128xf32>
    %546 = arith.mulf %545, %544 : vector<8x128xf32>
    %cst_221 = arith.constant 5.000000e-01 : f32
    %547 = vector.broadcast %cst_221 : f32 to vector<8x128xf32>
    %548 = arith.mulf %547, %539 : vector<8x128xf32>
    %549 = math.tanh %546 : vector<8x128xf32>
    %cst_222 = arith.constant 1.000000e+00 : f32
    %550 = vector.broadcast %cst_222 : f32 to vector<8x128xf32>
    %551 = arith.addf %550, %549 : vector<8x128xf32>
    %552 = arith.mulf %548, %551 : vector<8x128xf32>
    %c6_i32 = arith.constant 6 : i32
    %c0_223 = arith.constant 0 : index
    %c0_224 = arith.constant 0 : index
    %553 = vector.load %arg23[%c0_223, %c0_224] : memref<128x128xbf16, #tpu.memory_space<vmem>>, vector<128x128xbf16>
    %554 = arith.truncf %552 : vector<8x128xf32> to vector<8x128xbf16>
    %cst_225 = arith.constant dense<0.000000e+00> : vector<8x128xf32>
    %555 = tpu.matmul %554, %553, %cst_225 {dimension_numbers = #tpu.dot_dimension_numbers<[1], [0], [0], [1], [0, 0, 1, 1], [], []>} : vector<8x128xbf16>, vector<128x128xbf16>, vector<8x128xf32> -> vector<8x128xf32>
    %c0_226 = arith.constant 0 : index
    %c0_227 = arith.constant 0 : index
    %556 = vector.load %arg24[%c0_226, %c0_227] : memref<1x128xf32, #tpu.memory_space<vmem>>, vector<1x128xf32>
    %557 = vector.broadcast %556 : vector<1x128xf32> to vector<8x128xf32>
    %558 = arith.addf %555, %557 : vector<8x128xf32>
    %cst_228 = arith.constant 4.471500e-02 : f32
    %559 = vector.broadcast %cst_228 : f32 to vector<8x128xf32>
    %560 = arith.mulf %559, %558 : vector<8x128xf32>
    %561 = arith.mulf %560, %558 : vector<8x128xf32>
    %562 = arith.mulf %561, %558 : vector<8x128xf32>
    %563 = arith.addf %558, %562 : vector<8x128xf32>
    %cst_229 = arith.constant 0.797884583 : f32
    %564 = vector.broadcast %cst_229 : f32 to vector<8x128xf32>
    %565 = arith.mulf %564, %563 : vector<8x128xf32>
    %cst_230 = arith.constant 5.000000e-01 : f32
    %566 = vector.broadcast %cst_230 : f32 to vector<8x128xf32>
    %567 = arith.mulf %566, %558 : vector<8x128xf32>
    %568 = math.tanh %565 : vector<8x128xf32>
    %cst_231 = arith.constant 1.000000e+00 : f32
    %569 = vector.broadcast %cst_231 : f32 to vector<8x128xf32>
    %570 = arith.addf %569, %568 : vector<8x128xf32>
    %571 = arith.mulf %567, %570 : vector<8x128xf32>
    %c0_232 = arith.constant 0 : index
    %c0_233 = arith.constant 0 : index
    %572 = vector.load %arg25[%c0_232, %c0_233] : memref<128x128xbf16, #tpu.memory_space<vmem>>, vector<128x128xbf16>
    %573 = arith.truncf %571 : vector<8x128xf32> to vector<8x128xbf16>
    %cst_234 = arith.constant dense<0.000000e+00> : vector<8x128xf32>
    %574 = tpu.matmul %573, %572, %cst_234 {dimension_numbers = #tpu.dot_dimension_numbers<[1], [0], [0], [1], [0, 0, 1, 1], [], []>} : vector<8x128xbf16>, vector<128x128xbf16>, vector<8x128xf32> -> vector<8x128xf32>
    %c0_235 = arith.constant 0 : index
    %c0_236 = arith.constant 0 : index
    %575 = vector.load %arg26[%c0_235, %c0_236] : memref<1x128xf32, #tpu.memory_space<vmem>>, vector<1x128xf32>
    %576 = vector.broadcast %575 : vector<1x128xf32> to vector<8x128xf32>
    %577 = arith.addf %574, %576 : vector<8x128xf32>
    %c0_237 = arith.constant 0 : index
    %c0_238 = arith.constant 0 : index
    %578 = vector.load %arg27[%c0_237, %c0_238] : memref<8x128xf32, #tpu.memory_space<vmem>>, vector<8x128xf32>
    tpu.vector_store %arg27[%c0_237, %c0_238], %577 {strides = array<i32>} : memref<8x128xf32, #tpu.memory_space<vmem>>, vector<8x128xf32>,
    return
  }
  func.func @transform_0(%arg0: i32) -> (i32, i32) {
    %c0_i32 = arith.constant 0 : i32
    %c0_i32_0 = arith.constant 0 : i32
    return %arg0, %c0_i32 : i32, i32
  }
  func.func @transform_1(%arg0: i32) -> (i32, i32) {
    %c0_i32 = arith.constant 0 : i32
    %c0_i32_0 = arith.constant 0 : i32
    return %arg0, %c0_i32 : i32, i32
  }
  func.func @transform_2(%arg0: i32) -> (i32, i32) {
    %c0_i32 = arith.constant 0 : i32
    %c0_i32_0 = arith.constant 0 : i32
    return %arg0, %c0_i32 : i32, i32
  }
  func.func @transform_3(%arg0: i32) -> (i32, i32) {
    %c0_i32 = arith.constant 0 : i32
    %c0_i32_0 = arith.constant 0 : i32
    return %arg0, %c0_i32 : i32, i32
  }
  func.func @transform_4(%arg0: i32) -> (i32, i32) {
    %c0_i32 = arith.constant 0 : i32
    %c0_i32_0 = arith.constant 0 : i32
    %c0_i32_1 = arith.constant 0 : i32
    return %c0_i32, %c0_i32_0 : i32, i32
  }
  func.func @transform_5(%arg0: i32) -> (i32, i32) {
    %c0_i32 = arith.constant 0 : i32
    %c0_i32_0 = arith.constant 0 : i32
    %c0_i32_1 = arith.constant 0 : i32
    return %c0_i32, %c0_i32_0 : i32, i32
  }
  func.func @transform_6(%arg0: i32) -> (i32, i32) {
    %c0_i32 = arith.constant 0 : i32
    %c0_i32_0 = arith.constant 0 : i32
    %c0_i32_1 = arith.constant 0 : i32
    return %c0_i32, %c0_i32_0 : i32, i32
  }
  func.func @transform_7(%arg0: i32) -> (i32, i32) {
    %c0_i32 = arith.constant 0 : i32
    %c0_i32_0 = arith.constant 0 : i32
    %c0_i32_1 = arith.constant 0 : i32
    return %c0_i32, %c0_i32_0 : i32, i32
  }
  func.func @transform_8(%arg0: i32) -> (i32, i32) {
    %c0_i32 = arith.constant 0 : i32
    %c0_i32_0 = arith.constant 0 : i32
    %c0_i32_1 = arith.constant 0 : i32
    return %c0_i32, %c0_i32_0 : i32, i32
  }
  func.func @transform_9(%arg0: i32) -> (i32, i32) {
    %c0_i32 = arith.constant 0 : i32
    %c0_i32_0 = arith.constant 0 : i32
    %c0_i32_1 = arith.constant 0 : i32
    return %c0_i32, %c0_i32_0 : i32, i32
  }
  func.func @transform_10(%arg0: i32) -> (i32, i32) {
    %c0_i32 = arith.constant 0 : i32
    %c0_i32_0 = arith.constant 0 : i32
    %c0_i32_1 = arith.constant 0 : i32
    return %c0_i32, %c0_i32_0 : i32, i32
  }
  func.func @transform_11(%arg0: i32) -> (i32, i32) {
    %c0_i32 = arith.constant 0 : i32
    %c0_i32_0 = arith.constant 0 : i32
    %c0_i32_1 = arith.constant 0 : i32
    return %c0_i32, %c0_i32_0 : i32, i32
  }
  func.func @transform_12(%arg0: i32) -> (i32, i32) {
    %c0_i32 = arith.constant 0 : i32
    %c0_i32_0 = arith.constant 0 : i32
    %c0_i32_1 = arith.constant 0 : i32
    return %c0_i32, %c0_i32_0 : i32, i32
  }
  func.func @transform_13(%arg0: i32) -> (i32, i32) {
    %c0_i32 = arith.constant 0 : i32
    %c0_i32_0 = arith.constant 0 : i32
    %c0_i32_1 = arith.constant 0 : i32
    return %c0_i32, %c0_i32_0 : i32, i32
  }
  func.func @transform_14(%arg0: i32) -> (i32, i32) {
    %c0_i32 = arith.constant 0 : i32
    %c0_i32_0 = arith.constant 0 : i32
    %c0_i32_1 = arith.constant 0 : i32
    return %c0_i32, %c0_i32_0 : i32, i32
  }
  func.func @transform_15(%arg0: i32) -> (i32, i32) {
    %c0_i32 = arith.constant 0 : i32
    %c0_i32_0 = arith.constant 0 : i32
    %c0_i32_1 = arith.constant 0 : i32
    return %c0_i32, %c0_i32_0 : i32, i32
  }
  func.func @transform_16(%arg0: i32) -> (i32, i32) {
    %c0_i32 = arith.constant 0 : i32
    %c0_i32_0 = arith.constant 0 : i32
    %c0_i32_1 = arith.constant 0 : i32
    return %c0_i32, %c0_i32_0 : i32, i32
  }
  func.func @transform_17(%arg0: i32) -> (i32, i32) {
    %c0_i32 = arith.constant 0 : i32
    %c0_i32_0 = arith.constant 0 : i32
    %c0_i32_1 = arith.constant 0 : i32
    return %c0_i32, %c0_i32_0 : i32, i32
  }
  func.func @transform_18(%arg0: i32) -> (i32, i32, i32) {
    %c0_i32 = arith.constant 0 : i32
    %c0_i32_0 = arith.constant 0 : i32
    %c0_i32_1 = arith.constant 0 : i32
    %c0_i32_2 = arith.constant 0 : i32
    return %c0_i32, %c0_i32_0, %c0_i32_1 : i32, i32, i32
  }
  func.func @transform_19(%arg0: i32) -> (i32, i32, i32) {
    %c0_i32 = arith.constant 0 : i32
    %c0_i32_0 = arith.constant 0 : i32
    %c0_i32_1 = arith.constant 0 : i32
    %c0_i32_2 = arith.constant 0 : i32
    return %c0_i32, %c0_i32_0, %c0_i32_1 : i32, i32, i32
  }
  func.func @transform_20(%arg0: i32) -> (i32, i32, i32) {
    %c0_i32 = arith.constant 0 : i32
    %c0_i32_0 = arith.constant 0 : i32
    %c0_i32_1 = arith.constant 0 : i32
    %c0_i32_2 = arith.constant 0 : i32
    return %c0_i32, %c0_i32_0, %c0_i32_1 : i32, i32, i32
  }
  func.func @transform_21(%arg0: i32) -> (i32, i32, i32) {
    %c0_i32 = arith.constant 0 : i32
    %c0_i32_0 = arith.constant 0 : i32
    %c0_i32_1 = arith.constant 0 : i32
    %c0_i32_2 = arith.constant 0 : i32
    return %c0_i32, %c0_i32_0, %c0_i32_1 : i32, i32, i32
  }
  func.func @transform_22(%arg0: i32) -> (i32, i32) {
    %c0_i32 = arith.constant 0 : i32
    %c0_i32_0 = arith.constant 0 : i32
    %c0_i32_1 = arith.constant 0 : i32
    return %c0_i32, %c0_i32_0 : i32, i32
  }
  func.func @transform_23(%arg0: i32) -> (i32, i32) {
    %c0_i32 = arith.constant 0 : i32
    %c0_i32_0 = arith.constant 0 : i32
    %c0_i32_1 = arith.constant 0 : i32
    return %c0_i32, %c0_i32_0 : i32, i32
  }
  func.func @transform_24(%arg0: i32) -> (i32, i32) {
    %c0_i32 = arith.constant 0 : i32
    %c0_i32_0 = arith.constant 0 : i32
    %c0_i32_1 = arith.constant 0 : i32
    return %c0_i32, %c0_i32_0 : i32, i32
  }
  func.func @transform_25(%arg0: i32) -> (i32, i32) {
    %c0_i32 = arith.constant 0 : i32
    %c0_i32_0 = arith.constant 0 : i32
    %c0_i32_1 = arith.constant 0 : i32
    return %c0_i32, %c0_i32_0 : i32, i32
  }
  func.func @transform_26(%arg0: i32) -> (i32, i32) {
    %c0_i32 = arith.constant 0 : i32
    %c0_i32_0 = arith.constant 0 : i32
    return %arg0, %c0_i32 : i32, i32
  }
}

</mosaic_0001>

<llo_original>
// kernel: eps_forward.1
$region0: #{eps_forward.1}
  #allocation0 [shape = 'u32[]', space=smem, size = 0x4, offset = 0x4, fixed_abs, tag = 'smem constant byte address 0x4 - core index']
  #allocation1 [shape = 'u32[144,128]{1,0:T(1,128)}', space=vmem, size = 0x12000, scoped, tag = 'internal scratch']
  #allocation2 [shape = 'f32[8,1536]{1,0:T(8,128)}', space=vmem, size = 0xc000, scoped, tag = 'scratch operand']
  %s0 = inlined_call_operand.hbm [shape: f32[8,128], index: 0, kind: input, shape index: {}]
  %s1 = inlined_call_operand.vmem [shape: f32[8,128], index: 1, kind: input, shape index: {}]
  %s2 = inlined_call_operand.vmem [shape: f32[8,128], index: 2, kind: input, shape index: {}]
  %s3 = inlined_call_operand.vmem [shape: f32[8,1], index: 3, kind: input, shape index: {}]
  %s4 = inlined_call_operand.vmem [shape: bf16[128,128], index: 4, kind: input, shape index: {}]
  %s5 = inlined_call_operand.vmem [shape: f32[1,128], index: 5, kind: input, shape index: {}]
  %s6 = inlined_call_operand.hbm [shape: bf16[128,128], index: 6, kind: input, shape index: {}]
  %s7 = inlined_call_operand.vmem [shape: f32[1,128], index: 7, kind: input, shape index: {}]
  %s8 = inlined_call_operand.hbm [shape: bf16[128,128], index: 8, kind: input, shape index: {}]
  %s9 = inlined_call_operand.hbm [shape: f32[1,128], index: 9, kind: input, shape index: {}]
  %s10 = inlined_call_operand.hbm [shape: bf16[128,128], index: 10, kind: input, shape index: {}]
  %s11 = inlined_call_operand.hbm [shape: f32[1,128], index: 11, kind: input, shape index: {}]
  %s12 = inlined_call_operand.hbm [shape: bf16[128,128], index: 12, kind: input, shape index: {}]
  %s13 = inlined_call_operand.hbm [shape: f32[1,128], index: 13, kind: input, shape index: {}]
  %s14 = inlined_call_operand.vmem [shape: bf16[128,128], index: 14, kind: input, shape index: {}]
  %s15 = inlined_call_operand.vmem [shape: f32[1,128], index: 15, kind: input, shape index: {}]
  %s16 = inlined_call_operand.hbm [shape: bf16[256,1536], index: 16, kind: input, shape index: {}]
  %s17 = inlined_call_operand.hbm [shape: f32[1,1536], index: 17, kind: input, shape index: {}]
  %s18 = inlined_call_operand.hbm [shape: bf16[6,128,128], index: 18, kind: input, shape index: {}]
  %s19 = inlined_call_operand.hbm [shape: f32[6,1,128], index: 19, kind: input, shape index: {}]
  %s20 = inlined_call_operand.hbm [shape: bf16[6,128,128], index: 20, kind: input, shape index: {}]
  %s21 = inlined_call_operand.hbm [shape: f32[6,1,128], index: 21, kind: input, shape index: {}]
  %s22 = inlined_call_operand.hbm [shape: bf16[128,128], index: 22, kind: input, shape index: {}]
  %s23 = inlined_call_operand.hbm [shape: f32[1,128], index: 23, kind: input, shape index: {}]
  %s24 = inlined_call_operand.hbm [shape: bf16[128,128], index: 24, kind: input, shape index: {}]
  %s25 = inlined_call_operand.hbm [shape: f32[1,128], index: 25, kind: input, shape index: {}]
  %s26 = inlined_call_operand.hbm [shape: f32[8,128], index: 26, kind: output, shape index: {}]
  %s27 = sld [smem:[#allocation0]]
  $region186: #{eps_forward.1} parent=0
    _
  %s29 = ssub.s32 1, %s27
  %s30 = scalar_select 0, %s29, %s27
  $region1: #{eps_forward.1} parent=0
    #allocation3 [shape = 'u8[4096]{0}', space=vmem, size = 0x1000, scoped, tag = 'input window, operand 0, single buffered']
    #allocation4 [shape = 's32[1]{0}', space=sflag, size = 0x4, scoped, tag = 'scoped memory for eps_forward.1']
    #allocation5 [shape = 's32[1]{0}', space=sflag, size = 0x4, scoped, tag = 'scoped memory for eps_forward.1']
    #allocation6 [shape = 'u8[32768]{0}', space=vmem, size = 0x8000, scoped, tag = 'input window, operand 6, single buffered']
    #allocation7 [shape = 's32[1]{0}', space=sflag, size = 0x4, scoped, tag = 'scoped memory for eps_forward.1']
    #allocation8 [shape = 'u8[32768]{0}', space=vmem, size = 0x8000, scoped, tag = 'input window, operand 8, single buffered']
    #allocation9 [shape = 'u8[512]{0}', space=vmem, size = 0x400, scoped, tag = 'input window, operand 9, single buffered']
    #allocation10 [shape = 's32[1]{0}', space=sflag, size = 0x4, scoped, tag = 'scoped memory for eps_forward.1']
    #allocation11 [shape = 'u8[32768]{0}', space=vmem, size = 0x8000, scoped, tag = 'input window, operand 10, single buffered']
    #allocation12 [shape = 'u8[512]{0}', space=vmem, size = 0x400, scoped, tag = 'input window, operand 11, single buffered']
    #allocation13 [shape = 's32[1]{0}', space=sflag, size = 0x4, scoped, tag = 'scoped memory for eps_forward.1']
    #allocation14 [shape = 'u8[32768]{0}', space=vmem, size = 0x8000, scoped, tag = 'input window, operand 12, single buffered']
    #allocation15 [shape = 'u8[512]{0}', space=vmem, size = 0x400, scoped, tag = 'input window, operand 13, single buffered']
    #allocation16 [shape = 's32[1]{0}', space=sflag, size = 0x4, scoped, tag = 'scoped memory for eps_forward.1']
    #allocation17 [shape = 'u8[786432]{0}', space=vmem, size = 0xc0000, scoped, tag = 'input window, operand 16, single buffered']
    #allocation18 [shape = 'u8[6144]{0}', space=vmem, size = 0x1800, scoped, tag = 'input window, operand 17, single buffered']
    #allocation19 [shape = 's32[1]{0}', space=sflag, size = 0x4, scoped, tag = 'scoped memory for eps_forward.1']
    #allocation20 [shape = 'u8[196608]{0}', space=vmem, size = 0x30000, scoped, tag = 'input window, operand 18, single buffered']
    #allocation21 [shape = 'u8[3072]{0}', space=vmem, size = 0xc00, scoped, tag = 'input window, operand 19, single buffered']
    #allocation22 [shape = 's32[1]{0}', space=sflag, size = 0x4, scoped, tag = 'scoped memory for eps_forward.1']
    #allocation23 [shape = 'u8[196608]{0}', space=vmem, size = 0x30000, scoped, tag = 'input window, operand 20, single buffered']
    #allocation24 [shape = 'u8[3072]{0}', space=vmem, size = 0xc00, scoped, tag = 'input window, operand 21, single buffered']
    #allocation25 [shape = 's32[1]{0}', space=sflag, size = 0x4, scoped, tag = 'scoped memory for eps_forward.1']
    #allocation26 [shape = 'u8[32768]{0}', space=vmem, size = 0x8000, scoped, tag = 'input window, operand 22, single buffered']
    #allocation27 [shape = 'u8[512]{0}', space=vmem, size = 0x400, scoped, tag = 'input window, operand 23, single buffered']
    #allocation28 [shape = 's32[1]{0}', space=sflag, size = 0x4, scoped, tag = 'scoped memory for eps_forward.1']
    #allocation29 [shape = 'u8[32768]{0}', space=vmem, size = 0x8000, scoped, tag = 'input window, operand 24, single buffered']
    #allocation30 [shape = 'u8[512]{0}', space=vmem, size = 0x400, scoped, tag = 'input window, operand 25, single buffered']
    #allocation31 [shape = 's32[1]{0}', space=sflag, size = 0x4, scoped, tag = 'scoped memory for eps_forward.1']
    #allocation32 [shape = 'u8[4096]{0}', space=vmem, size = 0x1000, scoped, tag = 'output window, operand 0, single buffered']
    %31 = vsyncpa [#allocation4], 0
    %32 = vsyncpa [#allocation7], 0
    %33 = vsyncpa [#allocation10], 0
    %34 = vsyncpa [#allocation13], 0
    %35 = vsyncpa [#allocation16], 0
    %36 = vsyncpa [#allocation19], 0
    %37 = vsyncpa [#allocation22], 0
    %38 = vsyncpa [#allocation25], 0
    %39 = vsyncpa [#allocation28], 0
    %40 = vsyncpa [#allocation31], 0
    %41 = vsyncpa [#allocation5], 0
    // Predicated region
    $region2: #{eps_forward.1} parent=1 // pred_check
      _
    $region3: #{eps_forward.1} parent=1 // pred_check_branch
      %43 = sbr.rel (0) target = $region5
    $region4: #{eps_forward.1} parent=1 // pred_region
      %s45 = ssub.s32 128, 128
      %46 = vsyncadd [#allocation4], %s45
      %s48 = sshll.u32 [#allocation3], 4
      %s49 = int_to_ptr.vmem [resolvable:$true] %s48
      %51 = dma.hbm_to_vmem [thread:$0]  %s0, 128, %s49, [#allocation4]
    $region5: #{eps_forward.1} parent=1 // pred_fallthru
      _
    // Predicated region
    $region6: #{eps_forward.1} parent=1 // pred_check
      _
    $region7: #{eps_forward.1} parent=1 // pred_check_branch
      %53 = sbr.rel (0) target = $region9
    $region8: #{eps_forward.1} parent=1 // pred_region
      _
    $region9: #{eps_forward.1} parent=1 // pred_fallthru
      _
    // Predicated region
    $region10: #{eps_forward.1} parent=1 // pred_check
      _
    $region11: #{eps_forward.1} parent=1 // pred_check_branch
      %55 = sbr.rel (0) target = $region13
    $region12: #{eps_forward.1} parent=1 // pred_region
      _
    $region13: #{eps_forward.1} parent=1 // pred_fallthru
      _
    // Predicated region
    $region14: #{eps_forward.1} parent=1 // pred_check
      _
    $region15: #{eps_forward.1} parent=1 // pred_check_branch
      %57 = sbr.rel (0) target = $region17
    $region16: #{eps_forward.1} parent=1 // pred_region
      _
    $region17: #{eps_forward.1} parent=1 // pred_fallthru
      _
    // Predicated region
    $region18: #{eps_forward.1} parent=1 // pred_check
      _
    $region19: #{eps_forward.1} parent=1 // pred_check_branch
      %59 = sbr.rel (0) target = $region21
    $region20: #{eps_forward.1} parent=1 // pred_region
      _
    $region21: #{eps_forward.1} parent=1 // pred_fallthru
      _
    // Predicated region
    $region22: #{eps_forward.1} parent=1 // pred_check
      _
    $region23: #{eps_forward.1} parent=1 // pred_check_branch
      %61 = sbr.rel (0) target = $region25
    $region24: #{eps_forward.1} parent=1 // pred_region
      _
    $region25: #{eps_forward.1} parent=1 // pred_fallthru
      _
    // Predicated region
    $region26: #{eps_forward.1} parent=1 // pred_check
      _
    $region27: #{eps_forward.1} parent=1 // pred_check_branch
      %63 = sbr.rel (0) target = $region29
    $region28: #{eps_forward.1} parent=1 // pred_region
      %s65 = ssub.s32 1024, 1024
      %66 = vsyncadd [#allocation7], %s65
      %s67 = sshll.u32 [#allocation6], 4
      %s68 = int_to_ptr.vmem [resolvable:$true] %s67
      %73 = dma.hbm_to_vmem [thread:$0]  %s6, 1024, %s68, [#allocation7], 64, 64, 4
    $region29: #{eps_forward.1} parent=1 // pred_fallthru
      _
    // Predicated region
    $region30: #{eps_forward.1} parent=1 // pred_check
      _
    $region31: #{eps_forward.1} parent=1 // pred_check_branch
      %75 = sbr.rel (0) target = $region33
    $region32: #{eps_forward.1} parent=1 // pred_region
      _
    $region33: #{eps_forward.1} parent=1 // pred_fallthru
      _
    // Predicated region
    $region34: #{eps_forward.1} parent=1 // pred_check
      _
    $region35: #{eps_forward.1} parent=1 // pred_check_branch
      %77 = sbr.rel (0) target = $region37
    $region36: #{eps_forward.1} parent=1 // pred_region
      %s79 = ssub.s32 1024, 1024
      %80 = vsyncadd [#allocation7], %s79
      %s81 = sshll.u32 [#allocation8], 4
      %s82 = int_to_ptr.vmem [resolvable:$true] %s81
      %87 = dma.hbm_to_vmem [thread:$0]  %s8, 1024, %s82, [#allocation7], 64, 64, 4
    $region37: #{eps_forward.1} parent=1 // pred_fallthru
      _
    // Predicated region
    $region38: #{eps_forward.1} parent=1 // pred_check
      _
    $region39: #{eps_forward.1} parent=1 // pred_check_branch
      %89 = sbr.rel (0) target = $region41
    $region40: #{eps_forward.1} parent=1 // pred_region
      %s91 = ssub.s32 16, 16
      %92 = vsyncadd [#allocation10], %s91
      %s94 = sshll.u32 [#allocation9], 4
      %s95 = int_to_ptr.vmem [resolvable:$true] %s94
      %97 = dma.hbm_to_vmem [thread:$0]  %s9, 16, %s95, [#allocation10]
    $region41: #{eps_forward.1} parent=1 // pred_fallthru
      _
    // Predicated region
    $region42: #{eps_forward.1} parent=1 // pred_check
      _
    $region43: #{eps_forward.1} parent=1 // pred_check_branch
      %99 = sbr.rel (0) target = $region45
    $region44: #{eps_forward.1} parent=1 // pred_region
      %s101 = ssub.s32 1024, 1024
      %102 = vsyncadd [#allocation10], %s101
      %s103 = sshll.u32 [#allocation11], 4
      %s104 = int_to_ptr.vmem [resolvable:$true] %s103
      %109 = dma.hbm_to_vmem [thread:$0]  %s10, 1024, %s104, [#allocation10], 64, 64, 4
    $region45: #{eps_forward.1} parent=1 // pred_fallthru
      _
    // Predicated region
    $region46: #{eps_forward.1} parent=1 // pred_check
      _
    $region47: #{eps_forward.1} parent=1 // pred_check_branch
      %111 = sbr.rel (0) target = $region49
    $region48: #{eps_forward.1} parent=1 // pred_region
      %s113 = ssub.s32 16, 16
      %114 = vsyncadd [#allocation13], %s113
      %s116 = sshll.u32 [#allocation12], 4
      %s117 = int_to_ptr.vmem [resolvable:$true] %s116
      %119 = dma.hbm_to_vmem [thread:$0]  %s11, 16, %s117, [#allocation13]
    $region49: #{eps_forward.1} parent=1 // pred_fallthru
      _
    // Predicated region
    $region50: #{eps_forward.1} parent=1 // pred_check
      _
    $region51: #{eps_forward.1} parent=1 // pred_check_branch
      %121 = sbr.rel (0) target = $region53
    $region52: #{eps_forward.1} parent=1 // pred_region
      %s123 = ssub.s32 1024, 1024
      %124 = vsyncadd [#allocation13], %s123
      %s125 = sshll.u32 [#allocation14], 4
      %s126 = int_to_ptr.vmem [resolvable:$true] %s125
      %131 = dma.hbm_to_vmem [thread:$0]  %s12, 1024, %s126, [#allocation13], 64, 64, 4
    $region53: #{eps_forward.1} parent=1 // pred_fallthru
      _
    // Predicated region
    $region54: #{eps_forward.1} parent=1 // pred_check
      _
    $region55: #{eps_forward.1} parent=1 // pred_check_branch
      %133 = sbr.rel (0) target = $region57
    $region56: #{eps_forward.1} parent=1 // pred_region
      %s135 = ssub.s32 16, 16
      %136 = vsyncadd [#allocation16], %s135
      %s138 = sshll.u32 [#allocation15], 4
      %s139 = int_to_ptr.vmem [resolvable:$true] %s138
      %141 = dma.hbm_to_vmem [thread:$0]  %s13, 16, %s139, [#allocation16]
    $region57: #{eps_forward.1} parent=1 // pred_fallthru
      _
    // Predicated region
    $region58: #{eps_forward.1} parent=1 // pred_check
      _
    $region59: #{eps_forward.1} parent=1 // pred_check_branch
      %143 = sbr.rel (0) target = $region61
    $region60: #{eps_forward.1} parent=1 // pred_region
      _
    $region61: #{eps_forward.1} parent=1 // pred_fallthru
      _
    // Predicated region
    $region62: #{eps_forward.1} parent=1 // pred_check
      _
    $region63: #{eps_forward.1} parent=1 // pred_check_branch
      %145 = sbr.rel (0) target = $region65
    $region64: #{eps_forward.1} parent=1 // pred_region
      _
    $region65: #{eps_forward.1} parent=1 // pred_fallthru
      _
    // Predicated region
    $region66: #{eps_forward.1} parent=1 // pred_check
      _
    $region67: #{eps_forward.1} parent=1 // pred_check_branch
      %147 = sbr.rel (0) target = $region69
    $region68: #{eps_forward.1} parent=1 // pred_region
      %s149 = ssub.s32 24576, 24576
      %150 = vsyncadd [#allocation16], %s149
      %s151 = sshll.u32 [#allocation17], 4
      %s152 = int_to_ptr.vmem [resolvable:$true] %s151
      %157 = dma.hbm_to_vmem [thread:$0]  %s16, 24576, %s152, [#allocation16], 768, 768, 48
    $region69: #{eps_forward.1} parent=1 // pred_fallthru
      _
    // Predicated region
    $region70: #{eps_forward.1} parent=1 // pred_check
      _
    $region71: #{eps_forward.1} parent=1 // pred_check_branch
      %159 = sbr.rel (0) target = $region73
    $region72: #{eps_forward.1} parent=1 // pred_region
      %s161 = ssub.s32 192, 192
      %162 = vsyncadd [#allocation19], %s161
      %s164 = sshll.u32 [#allocation18], 4
      %s165 = int_to_ptr.vmem [resolvable:$true] %s164
      %167 = dma.hbm_to_vmem [thread:$0]  %s17, 192, %s165, [#allocation19]
    $region73: #{eps_forward.1} parent=1 // pred_fallthru
      _
    // Predicated region
    $region74: #{eps_forward.1} parent=1 // pred_check
      _
    $region75: #{eps_forward.1} parent=1 // pred_check_branch
      %169 = sbr.rel (0) target = $region77
    $region76: #{eps_forward.1} parent=1 // pred_region
      %s171 = ssub.s32 6144, 6144
      %172 = vsyncadd [#allocation19], %s171
      %s173 = sshll.u32 [#allocation20], 4
      %s174 = int_to_ptr.vmem [resolvable:$true] %s173
      %179 = dma.hbm_to_vmem [thread:$0]  %s18, 6144, %s174, [#allocation19], 64, 64, 4
    $region77: #{eps_forward.1} parent=1 // pred_fallthru
      _
    // Predicated region
    $region78: #{eps_forward.1} parent=1 // pred_check
      _
    $region79: #{eps_forward.1} parent=1 // pred_check_branch
      %181 = sbr.rel (0) target = $region81
    $region80: #{eps_forward.1} parent=1 // pred_region
      %s183 = ssub.s32 96, 96
      %184 = vsyncadd [#allocation22], %s183
      %s185 = sshll.u32 [#allocation21], 4
      %s186 = int_to_ptr.vmem [resolvable:$true] %s185
      %191 = dma.hbm_to_vmem [thread:$0]  %s19, 96, %s186, [#allocation22], 16, 16, 1
    $region81: #{eps_forward.1} parent=1 // pred_fallthru
      _
    // Predicated region
    $region82: #{eps_forward.1} parent=1 // pred_check
      _
    $region83: #{eps_forward.1} parent=1 // pred_check_branch
      %193 = sbr.rel (0) target = $region85
    $region84: #{eps_forward.1} parent=1 // pred_region
      %s195 = ssub.s32 6144, 6144
      %196 = vsyncadd [#allocation22], %s195
      %s197 = sshll.u32 [#allocation23], 4
      %s198 = int_to_ptr.vmem [resolvable:$true] %s197
      %203 = dma.hbm_to_vmem [thread:$0]  %s20, 6144, %s198, [#allocation22], 64, 64, 4
    $region85: #{eps_forward.1} parent=1 // pred_fallthru
      _
    // Predicated region
    $region86: #{eps_forward.1} parent=1 // pred_check
      _
    $region87: #{eps_forward.1} parent=1 // pred_check_branch
      %205 = sbr.rel (0) target = $region89
    $region88: #{eps_forward.1} parent=1 // pred_region
      %s207 = ssub.s32 96, 96
      %208 = vsyncadd [#allocation25], %s207
      %s209 = sshll.u32 [#allocation24], 4
      %s210 = int_to_ptr.vmem [resolvable:$true] %s209
      %215 = dma.hbm_to_vmem [thread:$0]  %s21, 96, %s210, [#allocation25], 16, 16, 1
    $region89: #{eps_forward.1} parent=1 // pred_fallthru
      _
    // Predicated region
    $region90: #{eps_forward.1} parent=1 // pred_check
      _
    $region91: #{eps_forward.1} parent=1 // pred_check_branch
      %217 = sbr.rel (0) target = $region93
    $region92: #{eps_forward.1} parent=1 // pred_region
      %s219 = ssub.s32 1024, 1024
      %220 = vsyncadd [#allocation25], %s219
      %s221 = sshll.u32 [#allocation26], 4
      %s222 = int_to_ptr.vmem [resolvable:$true] %s221
      %227 = dma.hbm_to_vmem [thread:$0]  %s22, 1024, %s222, [#allocation25], 64, 64, 4
    $region93: #{eps_forward.1} parent=1 // pred_fallthru
      _
    // Predicated region
    $region94: #{eps_forward.1} parent=1 // pred_check
      _
    $region95: #{eps_forward.1} parent=1 // pred_check_branch
      %229 = sbr.rel (0) target = $region97
    $region96: #{eps_forward.1} parent=1 // pred_region
      %s231 = ssub.s32 16, 16
      %232 = vsyncadd [#allocation28], %s231
      %s234 = sshll.u32 [#allocation27], 4
      %s235 = int_to_ptr.vmem [resolvable:$true] %s234
      %237 = dma.hbm_to_vmem [thread:$0]  %s23, 16, %s235, [#allocation28]
    $region97: #{eps_forward.1} parent=1 // pred_fallthru
      _
    // Predicated region
    $region98: #{eps_forward.1} parent=1 // pred_check
      _
    $region99: #{eps_forward.1} parent=1 // pred_check_branch
      %239 = sbr.rel (0) target = $region101
    $region100: #{eps_forward.1} parent=1 // pred_region
      %s241 = ssub.s32 1024, 1024
      %242 = vsyncadd [#allocation28], %s241
      %s243 = sshll.u32 [#allocation29], 4
      %s244 = int_to_ptr.vmem [resolvable:$true] %s243
      %249 = dma.hbm_to_vmem [thread:$0]  %s24, 1024, %s244, [#allocation28], 64, 64, 4
    $region101: #{eps_forward.1} parent=1 // pred_fallthru
      _
    // Predicated region
    $region102: #{eps_forward.1} parent=1 // pred_check
      _
    $region103: #{eps_forward.1} parent=1 // pred_check_branch
      %251 = sbr.rel (0) target = $region105
    $region104: #{eps_forward.1} parent=1 // pred_region
      %s253 = ssub.s32 16, 16
      %254 = vsyncadd [#allocation31], %s253
      %s256 = sshll.u32 [#allocation30], 4
      %s257 = int_to_ptr.vmem [resolvable:$true] %s256
      %259 = dma.hbm_to_vmem [thread:$0]  %s25, 16, %s257, [#allocation31]
    $region105: #{eps_forward.1} parent=1 // pred_fallthru
      _
    // Predicated region
    $region106: #{eps_forward.1} parent=1 // pred_check
      _
    $region107: #{eps_forward.1} parent=1 // pred_check_branch
      %261 = sbr.rel (0) target = $region109
    $region108: #{eps_forward.1} parent=1 // pred_region
      %262 = dma.done [#allocation4], 128
    $region109: #{eps_forward.1} parent=1 // pred_fallthru
      _
    // Predicated region
    $region110: #{eps_forward.1} parent=1 // pred_check
      _
    $region111: #{eps_forward.1} parent=1 // pred_check_branch
      %264 = sbr.rel (0) target = $region113
    $region112: #{eps_forward.1} parent=1 // pred_region
      %265 = dma.done [#allocation7], 1024
    $region113: #{eps_forward.1} parent=1 // pred_fallthru
      _
    // Predicated region
    $region114: #{eps_forward.1} parent=1 // pred_check
      _
    $region115: #{eps_forward.1} parent=1 // pred_check_branch
      %267 = sbr.rel (0) target = $region117
    $region116: #{eps_forward.1} parent=1 // pred_region
      %268 = dma.done [#allocation7], 1024
    $region117: #{eps_forward.1} parent=1 // pred_fallthru
      _
    // Predicated region
    $region118: #{eps_forward.1} parent=1 // pred_check
      _
    $region119: #{eps_forward.1} parent=1 // pred_check_branch
      %270 = sbr.rel (0) target = $region121
    $region120: #{eps_forward.1} parent=1 // pred_region
      %271 = dma.done [#allocation10], 16
    $region121: #{eps_forward.1} parent=1 // pred_fallthru
      _
    // Predicated region
    $region122: #{eps_forward.1} parent=1 // pred_check
      _
    $region123: #{eps_forward.1} parent=1 // pred_check_branch
      %273 = sbr.rel (0) target = $region125
    $region124: #{eps_forward.1} parent=1 // pred_region
      %274 = dma.done [#allocation10], 1024
    $region125: #{eps_forward.1} parent=1 // pred_fallthru
      _
    // Predicated region
    $region126: #{eps_forward.1} parent=1 // pred_check
      _
    $region127: #{eps_forward.1} parent=1 // pred_check_branch
      %276 = sbr.rel (0) target = $region129
    $region128: #{eps_forward.1} parent=1 // pred_region
      %277 = dma.done [#allocation13], 16
    $region129: #{eps_forward.1} parent=1 // pred_fallthru
      _
    // Predicated region
    $region130: #{eps_forward.1} parent=1 // pred_check
      _
    $region131: #{eps_forward.1} parent=1 // pred_check_branch
      %279 = sbr.rel (0) target = $region133
    $region132: #{eps_forward.1} parent=1 // pred_region
      %280 = dma.done [#allocation13], 1024
    $region133: #{eps_forward.1} parent=1 // pred_fallthru
      _
    // Predicated region
    $region134: #{eps_forward.1} parent=1 // pred_check
      _
    $region135: #{eps_forward.1} parent=1 // pred_check_branch
      %282 = sbr.rel (0) target = $region137
    $region136: #{eps_forward.1} parent=1 // pred_region
      %283 = dma.done [#allocation16], 16
    $region137: #{eps_forward.1} parent=1 // pred_fallthru
      _
    // Predicated region
    $region138: #{eps_forward.1} parent=1 // pred_check
      _
    $region139: #{eps_forward.1} parent=1 // pred_check_branch
      %285 = sbr.rel (0) target = $region141
    $region140: #{eps_forward.1} parent=1 // pred_region
      %286 = dma.done [#allocation16], 24576
    $region141: #{eps_forward.1} parent=1 // pred_fallthru
      _
    // Predicated region
    $region142: #{eps_forward.1} parent=1 // pred_check
      _
    $region143: #{eps_forward.1} parent=1 // pred_check_branch
      %288 = sbr.rel (0) target = $region145
    $region144: #{eps_forward.1} parent=1 // pred_region
      %289 = dma.done [#allocation19], 192
    $region145: #{eps_forward.1} parent=1 // pred_fallthru
      _
    // Predicated region
    $region146: #{eps_forward.1} parent=1 // pred_check
      _
    $region147: #{eps_forward.1} parent=1 // pred_check_branch
      %291 = sbr.rel (0) target = $region149
    $region148: #{eps_forward.1} parent=1 // pred_region
      %292 = dma.done [#allocation19], 6144
    $region149: #{eps_forward.1} parent=1 // pred_fallthru
      _
    // Predicated region
    $region150: #{eps_forward.1} parent=1 // pred_check
      _
    $region151: #{eps_forward.1} parent=1 // pred_check_branch
      %294 = sbr.rel (0) target = $region153
    $region152: #{eps_forward.1} parent=1 // pred_region
      %295 = dma.done [#allocation22], 96
    $region153: #{eps_forward.1} parent=1 // pred_fallthru
      _
    // Predicated region
    $region154: #{eps_forward.1} parent=1 // pred_check
      _
    $region155: #{eps_forward.1} parent=1 // pred_check_branch
      %297 = sbr.rel (0) target = $region157
    $region156: #{eps_forward.1} parent=1 // pred_region
      %298 = dma.done [#allocation22], 6144
    $region157: #{eps_forward.1} parent=1 // pred_fallthru
      _
    // Predicated region
    $region158: #{eps_forward.1} parent=1 // pred_check
      _
    $region159: #{eps_forward.1} parent=1 // pred_check_branch
      %300 = sbr.rel (0) target = $region161
    $region160: #{eps_forward.1} parent=1 // pred_region
      %301 = dma.done [#allocation25], 96
    $region161: #{eps_forward.1} parent=1 // pred_fallthru
      _
    // Predicated region
    $region162: #{eps_forward.1} parent=1 // pred_check
      _
    $region163: #{eps_forward.1} parent=1 // pred_check_branch
      %303 = sbr.rel (0) target = $region165
    $region164: #{eps_forward.1} parent=1 // pred_region
      %304 = dma.done [#allocation25], 1024
    $region165: #{eps_forward.1} parent=1 // pred_fallthru
      _
    // Predicated region
    $region166: #{eps_forward.1} parent=1 // pred_check
      _
    $region167: #{eps_forward.1} parent=1 // pred_check_branch
      %306 = sbr.rel (0) target = $region169
    $region168: #{eps_forward.1} parent=1 // pred_region
      %307 = dma.done [#allocation28], 16
    $region169: #{eps_forward.1} parent=1 // pred_fallthru
      _
    // Predicated region
    $region170: #{eps_forward.1} parent=1 // pred_check
      _
    $region171: #{eps_forward.1} parent=1 // pred_check_branch
      %309 = sbr.rel (0) target = $region173
    $region172: #{eps_forward.1} parent=1 // pred_region
      %310 = dma.done [#allocation28], 1024
    $region173: #{eps_forward.1} parent=1 // pred_fallthru
      _
    // Predicated region
    $region174: #{eps_forward.1} parent=1 // pred_check
      _
    $region175: #{eps_forward.1} parent=1 // pred_check_branch
      %312 = sbr.rel (0) target = $region177
    $region176: #{eps_forward.1} parent=1 // pred_region
      %313 = dma.done [#allocation31], 16
    $region177: #{eps_forward.1} parent=1 // pred_fallthru
      _
    %v315 = vld [vmem:[%s1] sm:$0xff]
    %v316 = vld [vmem:[#allocation14] sm:$0xf]
    %v317 = vld [vmem:[#allocation14 + $0x4] sm:$0xf]
    %v318 = vld [vmem:[#allocation14 + $0x8] sm:$0xf]
    %v319 = vld [vmem:[#allocation14 + $0xc] sm:$0xf]
    %v320 = vld [vmem:[#allocation14 + $0x10] sm:$0xf]
    %v321 = vld [vmem:[#allocation14 + $0x14] sm:$0xf]
    %v322 = vld [vmem:[#allocation14 + $0x18] sm:$0xf]
    %v323 = vld [vmem:[#allocation14 + $0x1c] sm:$0xf]
    %v324 = vld [vmem:[#allocation14 + $0x20] sm:$0xf]
    %v325 = vld [vmem:[#allocation14 + $0x24] sm:$0xf]
    %v326 = vld [vmem:[#allocation14 + $0x28] sm:$0xf]
    %v327 = vld [vmem:[#allocation14 + $0x2c] sm:$0xf]
    %v328 = vld [vmem:[#allocation14 + $0x30] sm:$0xf]
    %v329 = vld [vmem:[#allocation14 + $0x34] sm:$0xf]
    %v330 = vld [vmem:[#allocation14 + $0x38] sm:$0xf]
    %v331 = vld [vmem:[#allocation14 + $0x3c] sm:$0xf]
    %v332 = vpack.c.bf16 %v315, %v315
    %v333 = vld [vmem:[#allocation15] sm:$0x1]
    %v335 = vlaneseq
    %v336 = vshrl.u32 %v335, 7
    %v337 = vsub.s32 0, %v336
    %v338 = vrot.slane %v333, %v337
    %v356 = vunpack.c.l.b16 %v316
    %v357 = vunpack.c.l.b16 %v317
    %v358 = vunpack.c.l.b16 %v318
    %v359 = vunpack.c.l.b16 %v319
    %v360 = vunpack.c.l.b16 %v320
    %v361 = vunpack.c.l.b16 %v321
    %v362 = vunpack.c.l.b16 %v322
    %v363 = vunpack.c.l.b16 %v323
    %v364 = vunpack.c.l.b16 %v324
    %v365 = vunpack.c.l.b16 %v325
    %v366 = vunpack.c.l.b16 %v326
    %v367 = vunpack.c.l.b16 %v327
    %v368 = vunpack.c.l.b16 %v328
    %v369 = vunpack.c.l.b16 %v329
    %v370 = vunpack.c.l.b16 %v330
    %v371 = vunpack.c.l.b16 %v331
    %v372 = vpack.c.b16 %v357, %v356
    %v373 = vpack.c.b16 %v359, %v358
    %v374 = vpack.c.b16 %v361, %v360
    %v375 = vpack.c.b16 %v363, %v362
    %v376 = vpack.c.b16 %v365, %v364
    %v377 = vpack.c.b16 %v367, %v366
    %v378 = vpack.c.b16 %v369, %v368
    %v379 = vpack.c.b16 %v371, %v370
    %388 = vmatprep.subr.bf16.mxu0 0
    %389 = vmatpush1.bf16.msra.mxu0 %v372
    %390 = vmatprep.subr.bf16.mxu0 0
    %391 = vmatpush1.bf16.msra.mxu0 %v373
    %392 = vmatprep.subr.bf16.mxu0 0
    %393 = vmatpush1.bf16.msra.mxu0 %v374
    %394 = vmatprep.subr.bf16.mxu0 0
    %395 = vmatpush1.bf16.msra.mxu0 %v375
    %396 = vmatprep.subr.bf16.mxu0 0
    %397 = vmatpush1.bf16.msra.mxu0 %v376
    %398 = vmatprep.subr.bf16.mxu0 0
    %399 = vmatpush1.bf16.msra.mxu0 %v377
    %400 = vmatprep.subr.bf16.mxu0 0
    %401 = vmatpush1.bf16.msra.mxu0 %v378
    %402 = vmatprep.subr.bf16.mxu0 0
    %403 = vmatpush1.bf16.msra.mxu0 %v379
    %404 = vmatprep.subr.bf16.mxu0 0
    %405 = vmatpush1.bf16.msra.mxu0 0
    %406 = vmatprep.subr.bf16.mxu0 0
    %407 = vmatpush1.bf16.msra.mxu0 0
    %408 = vmatprep.subr.bf16.mxu0 0
    %409 = vmatpush1.bf16.msra.mxu0 0
    %410 = vmatprep.subr.bf16.mxu0 0
    %411 = vmatpush1.bf16.msra.mxu0 0
    %412 = vmatprep.subr.bf16.mxu0 0
    %413 = vmatpush1.bf16.msra.mxu0 0
    %414 = vmatprep.subr.bf16.mxu0 0
    %415 = vmatpush1.bf16.msra.mxu0 0
    %416 = vmatprep.subr.bf16.mxu0 0
    %417 = vmatpush1.bf16.msra.mxu0 0
    %418 = vmatprep.subr.bf16.mxu0 0
    %419 = vmatpush1.bf16.msra.mxu0 0
    %420 = vmatprep.mubr.bf16.mxu0 0
    %421 = vmatmul.mubr.bf16.gmra.mrb[0].mxu0 %v332
    %v422 = vpop.f32.mrb[0].mxu0
    %v423 = vadd.f32 %v338, %v422
    %v424 = vpop.f32.mrb[0].mxu0
    %v425 = vpop.f32.mrb[0].mxu0
    %v426 = vpop.f32.mrb[0].mxu0
    %427 = vdwg.mxu0
    %v428 = vmul.f32 %v423, 0.044715
    %v429 = vmul.f32 %v428, %v423
    %v430 = vmul.f32 %v429, %v423
    %v431 = vadd.f32 %v423, %v430
    %v432 = vmul.f32 %v431, 0.7978846
    %v433 = vmul.f32 %v423, 0.5
    %v434 = vtanh.pop %v432
    %v435 = vadd.f32 %v434, 1.0
    %v436 = vmul.f32 %v433, %v435
    %v437 = vld [vmem:[%s14] sm:$0xf]
    %v438 = vld [vmem:[%s14 + $0x4] sm:$0xf]
    %v439 = vld [vmem:[%s14 + $0x8] sm:$0xf]
    %v440 = vld [vmem:[%s14 + $0xc] sm:$0xf]
    %v441 = vld [vmem:[%s14 + $0x10] sm:$0xf]
    %v442 = vld [vmem:[%s14 + $0x14] sm:$0xf]
    %v443 = vld [vmem:[%s14 + $0x18] sm:$0xf]
    %v444 = vld [vmem:[%s14 + $0x1c] sm:$0xf]
    %v445 = vld [vmem:[%s14 + $0x20] sm:$0xf]
    %v446 = vld [vmem:[%s14 + $0x24] sm:$0xf]
    %v447 = vld [vmem:[%s14 + $0x28] sm:$0xf]
    %v448 = vld [vmem:[%s14 + $0x2c] sm:$0xf]
    %v449 = vld [vmem:[%s14 + $0x30] sm:$0xf]
    %v450 = vld [vmem:[%s14 + $0x34] sm:$0xf]
    %v451 = vld [vmem:[%s14 + $0x38] sm:$0xf]
    %v452 = vld [vmem:[%s14 + $0x3c] sm:$0xf]
    %v453 = vpack.c.bf16 %v436, %v436
    %v454 = vld [vmem:[%s15] sm:$0x1]
    %v456 = vlaneseq
    %v457 = vshrl.u32 %v456, 7
    %v458 = vsub.s32 0, %v457
    %v459 = vrot.slane %v454, %v458
    %v477 = vunpack.c.l.b16 %v437
    %v478 = vunpack.c.l.b16 %v438
    %v479 = vunpack.c.l.b16 %v439
    %v480 = vunpack.c.l.b16 %v440
    %v481 = vunpack.c.l.b16 %v441
    %v482 = vunpack.c.l.b16 %v442
    %v483 = vunpack.c.l.b16 %v443
    %v484 = vunpack.c.l.b16 %v444
    %v485 = vunpack.c.l.b16 %v445
    %v486 = vunpack.c.l.b16 %v446
    %v487 = vunpack.c.l.b16 %v447
    %v488 = vunpack.c.l.b16 %v448
    %v489 = vunpack.c.l.b16 %v449
    %v490 = vunpack.c.l.b16 %v450
    %v491 = vunpack.c.l.b16 %v451
    %v492 = vunpack.c.l.b16 %v452
    %v493 = vpack.c.b16 %v478, %v477
    %v494 = vpack.c.b16 %v480, %v479
    %v495 = vpack.c.b16 %v482, %v481
    %v496 = vpack.c.b16 %v484, %v483
    %v497 = vpack.c.b16 %v486, %v485
    %v498 = vpack.c.b16 %v488, %v487
    %v499 = vpack.c.b16 %v490, %v489
    %v500 = vpack.c.b16 %v492, %v491
    %509 = vmatprep.subr.bf16.mxu0 0
    %510 = vmatpush1.bf16.msra.mxu0 %v493
    %511 = vmatprep.subr.bf16.mxu0 0
    %512 = vmatpush1.bf16.msra.mxu0 %v494
    %513 = vmatprep.subr.bf16.mxu0 0
    %514 = vmatpush1.bf16.msra.mxu0 %v495
    %515 = vmatprep.subr.bf16.mxu0 0
    %516 = vmatpush1.bf16.msra.mxu0 %v496
    %517 = vmatprep.subr.bf16.mxu0 0
    %518 = vmatpush1.bf16.msra.mxu0 %v497
    %519 = vmatprep.subr.bf16.mxu0 0
    %520 = vmatpush1.bf16.msra.mxu0 %v498
    %521 = vmatprep.subr.bf16.mxu0 0
    %522 = vmatpush1.bf16.msra.mxu0 %v499
    %523 = vmatprep.subr.bf16.mxu0 0
    %524 = vmatpush1.bf16.msra.mxu0 %v500
    %525 = vmatprep.subr.bf16.mxu0 0
    %526 = vmatpush1.bf16.msra.mxu0 0
    %527 = vmatprep.subr.bf16.mxu0 0
    %528 = vmatpush1.bf16.msra.mxu0 0
    %529 = vmatprep.subr.bf16.mxu0 0
    %530 = vmatpush1.bf16.msra.mxu0 0
    %531 = vmatprep.subr.bf16.mxu0 0
    %532 = vmatpush1.bf16.msra.mxu0 0
    %533 = vmatprep.subr.bf16.mxu0 0
    %534 = vmatpush1.bf16.msra.mxu0 0
    %535 = vmatprep.subr.bf16.mxu0 0
    %536 = vmatpush1.bf16.msra.mxu0 0
    %537 = vmatprep.subr.bf16.mxu0 0
    %538 = vmatpush1.bf16.msra.mxu0 0
    %539 = vmatprep.subr.bf16.mxu0 0
    %540 = vmatpush1.bf16.msra.mxu0 0
    %541 = vmatprep.mubr.bf16.mxu0 0
    %542 = vmatmul.mubr.bf16.gmra.mrb[0].mxu0 %v453
    %v543 = vpop.f32.mrb[0].mxu0
    %v544 = vadd.f32 %v459, %v543
    %v545 = vpop.f32.mrb[0].mxu0
    %v546 = vpop.f32.mrb[0].mxu0
    %v547 = vpop.f32.mrb[0].mxu0
    %548 = vdwg.mxu0
    %v549 = vld [vmem:[#allocation3] sm:$0xff]
    %v550 = vld [vmem:[%s4] sm:$0xf]
    %v551 = vld [vmem:[%s4 + $0x4] sm:$0xf]
    %v552 = vld [vmem:[%s4 + $0x8] sm:$0xf]
    %v553 = vld [vmem:[%s4 + $0xc] sm:$0xf]
    %v554 = vld [vmem:[%s4 + $0x10] sm:$0xf]
    %v555 = vld [vmem:[%s4 + $0x14] sm:$0xf]
    %v556 = vld [vmem:[%s4 + $0x18] sm:$0xf]
    %v557 = vld [vmem:[%s4 + $0x1c] sm:$0xf]
    %v558 = vld [vmem:[%s4 + $0x20] sm:$0xf]
    %v559 = vld [vmem:[%s4 + $0x24] sm:$0xf]
    %v560 = vld [vmem:[%s4 + $0x28] sm:$0xf]
    %v561 = vld [vmem:[%s4 + $0x2c] sm:$0xf]
    %v562 = vld [vmem:[%s4 + $0x30] sm:$0xf]
    %v563 = vld [vmem:[%s4 + $0x34] sm:$0xf]
    %v564 = vld [vmem:[%s4 + $0x38] sm:$0xf]
    %v565 = vld [vmem:[%s4 + $0x3c] sm:$0xf]
    %v566 = vpack.c.bf16 %v549, %v549
    %v567 = vld [vmem:[%s5] sm:$0x1]
    %v569 = vlaneseq
    %v570 = vshrl.u32 %v569, 7
    %v571 = vsub.s32 0, %v570
    %v572 = vrot.slane %v567, %v571
    %v590 = vunpack.c.l.b16 %v550
    %v591 = vunpack.c.l.b16 %v551
    %v592 = vunpack.c.l.b16 %v552
    %v593 = vunpack.c.l.b16 %v553
    %v594 = vunpack.c.l.b16 %v554
    %v595 = vunpack.c.l.b16 %v555
    %v596 = vunpack.c.l.b16 %v556
    %v597 = vunpack.c.l.b16 %v557
    %v598 = vunpack.c.l.b16 %v558
    %v599 = vunpack.c.l.b16 %v559
    %v600 = vunpack.c.l.b16 %v560
    %v601 = vunpack.c.l.b16 %v561
    %v602 = vunpack.c.l.b16 %v562
    %v603 = vunpack.c.l.b16 %v563
    %v604 = vunpack.c.l.b16 %v564
    %v605 = vunpack.c.l.b16 %v565
    %v606 = vpack.c.b16 %v591, %v590
    %v607 = vpack.c.b16 %v593, %v592
    %v608 = vpack.c.b16 %v595, %v594
    %v609 = vpack.c.b16 %v597, %v596
    %v610 = vpack.c.b16 %v599, %v598
    %v611 = vpack.c.b16 %v601, %v600
    %v612 = vpack.c.b16 %v603, %v602
    %v613 = vpack.c.b16 %v605, %v604
    %622 = vmatprep.subr.bf16.mxu0 0
    %623 = vmatpush1.bf16.msra.mxu0 %v606
    %624 = vmatprep.subr.bf16.mxu0 0
    %625 = vmatpush1.bf16.msra.mxu0 %v607
    %626 = vmatprep.subr.bf16.mxu0 0
    %627 = vmatpush1.bf16.msra.mxu0 %v608
    %628 = vmatprep.subr.bf16.mxu0 0
    %629 = vmatpush1.bf16.msra.mxu0 %v609
    %630 = vmatprep.subr.bf16.mxu0 0
    %631 = vmatpush1.bf16.msra.mxu0 %v610
    %632 = vmatprep.subr.bf16.mxu0 0
    %633 = vmatpush1.bf16.msra.mxu0 %v611
    %634 = vmatprep.subr.bf16.mxu0 0
    %635 = vmatpush1.bf16.msra.mxu0 %v612
    %636 = vmatprep.subr.bf16.mxu0 0
    %637 = vmatpush1.bf16.msra.mxu0 %v613
    %638 = vmatprep.subr.bf16.mxu0 0
    %639 = vmatpush1.bf16.msra.mxu0 0
    %640 = vmatprep.subr.bf16.mxu0 0
    %641 = vmatpush1.bf16.msra.mxu0 0
    %642 = vmatprep.subr.bf16.mxu0 0
    %643 = vmatpush1.bf16.msra.mxu0 0
    %644 = vmatprep.subr.bf16.mxu0 0
    %645 = vmatpush1.bf16.msra.mxu0 0
    %646 = vmatprep.subr.bf16.mxu0 0
    %647 = vmatpush1.bf16.msra.mxu0 0
    %648 = vmatprep.subr.bf16.mxu0 0
    %649 = vmatpush1.bf16.msra.mxu0 0
    %650 = vmatprep.subr.bf16.mxu0 0
    %651 = vmatpush1.bf16.msra.mxu0 0
    %652 = vmatprep.subr.bf16.mxu0 0
    %653 = vmatpush1.bf16.msra.mxu0 0
    %654 = vmatprep.mubr.bf16.mxu0 0
    %655 = vmatmul.mubr.bf16.gmra.mrb[0].mxu0 %v566
    %v656 = vpop.f32.mrb[0].mxu0
    %v657 = vadd.f32 %v572, %v656
    %v658 = vpop.f32.mrb[0].mxu0
    %v659 = vpop.f32.mrb[0].mxu0
    %v660 = vpop.f32.mrb[0].mxu0
    %661 = vdwg.mxu0
    %v662 = vmul.f32 %v657, 0.044715
    %v663 = vmul.f32 %v662, %v657
    %v664 = vmul.f32 %v663, %v657
    %v665 = vadd.f32 %v657, %v664
    %v666 = vmul.f32 %v665, 0.7978846
    %v667 = vmul.f32 %v657, 0.5
    %v668 = vtanh.pop %v666
    %v669 = vadd.f32 %v668, 1.0
    %v670 = vmul.f32 %v667, %v669
    %v671 = vld [vmem:[#allocation6] sm:$0xf]
    %v672 = vld [vmem:[#allocation6 + $0x4] sm:$0xf]
    %v673 = vld [vmem:[#allocation6 + $0x8] sm:$0xf]
    %v674 = vld [vmem:[#allocation6 + $0xc] sm:$0xf]
    %v675 = vld [vmem:[#allocation6 + $0x10] sm:$0xf]
    %v676 = vld [vmem:[#allocation6 + $0x14] sm:$0xf]
    %v677 = vld [vmem:[#allocation6 + $0x18] sm:$0xf]
    %v678 = vld [vmem:[#allocation6 + $0x1c] sm:$0xf]
    %v679 = vld [vmem:[#allocation6 + $0x20] sm:$0xf]
    %v680 = vld [vmem:[#allocation6 + $0x24] sm:$0xf]
    %v681 = vld [vmem:[#allocation6 + $0x28] sm:$0xf]
    %v682 = vld [vmem:[#allocation6 + $0x2c] sm:$0xf]
    %v683 = vld [vmem:[#allocation6 + $0x30] sm:$0xf]
    %v684 = vld [vmem:[#allocation6 + $0x34] sm:$0xf]
    %v685 = vld [vmem:[#allocation6 + $0x38] sm:$0xf]
    %v686 = vld [vmem:[#allocation6 + $0x3c] sm:$0xf]
    %v687 = vpack.c.bf16 %v670, %v670
    %v688 = vld [vmem:[%s7] sm:$0x1]
    %v690 = vlaneseq
    %v691 = vshrl.u32 %v690, 7
    %v692 = vsub.s32 0, %v691
    %v693 = vrot.slane %v688, %v692
    %v711 = vunpack.c.l.b16 %v671
    %v712 = vunpack.c.l.b16 %v672
    %v713 = vunpack.c.l.b16 %v673
    %v714 = vunpack.c.l.b16 %v674
    %v715 = vunpack.c.l.b16 %v675
    %v716 = vunpack.c.l.b16 %v676
    %v717 = vunpack.c.l.b16 %v677
    %v718 = vunpack.c.l.b16 %v678
    %v719 = vunpack.c.l.b16 %v679
    %v720 = vunpack.c.l.b16 %v680
    %v721 = vunpack.c.l.b16 %v681
    %v722 = vunpack.c.l.b16 %v682
    %v723 = vunpack.c.l.b16 %v683
    %v724 = vunpack.c.l.b16 %v684
    %v725 = vunpack.c.l.b16 %v685
    %v726 = vunpack.c.l.b16 %v686
    %v727 = vpack.c.b16 %v712, %v711
    %v728 = vpack.c.b16 %v714, %v713
    %v729 = vpack.c.b16 %v716, %v715
    %v730 = vpack.c.b16 %v718, %v717
    %v731 = vpack.c.b16 %v720, %v719
    %v732 = vpack.c.b16 %v722, %v721
    %v733 = vpack.c.b16 %v724, %v723
    %v734 = vpack.c.b16 %v726, %v725
    %743 = vmatprep.subr.bf16.mxu0 0
    %744 = vmatpush1.bf16.msra.mxu0 %v727
    %745 = vmatprep.subr.bf16.mxu0 0
    %746 = vmatpush1.bf16.msra.mxu0 %v728
    %747 = vmatprep.subr.bf16.mxu0 0
    %748 = vmatpush1.bf16.msra.mxu0 %v729
    %749 = vmatprep.subr.bf16.mxu0 0
    %750 = vmatpush1.bf16.msra.mxu0 %v730
    %751 = vmatprep.subr.bf16.mxu0 0
    %752 = vmatpush1.bf16.msra.mxu0 %v731
    %753 = vmatprep.subr.bf16.mxu0 0
    %754 = vmatpush1.bf16.msra.mxu0 %v732
    %755 = vmatprep.subr.bf16.mxu0 0
    %756 = vmatpush1.bf16.msra.mxu0 %v733
    %757 = vmatprep.subr.bf16.mxu0 0
    %758 = vmatpush1.bf16.msra.mxu0 %v734
    %759 = vmatprep.subr.bf16.mxu0 0
    %760 = vmatpush1.bf16.msra.mxu0 0
    %761 = vmatprep.subr.bf16.mxu0 0
    %762 = vmatpush1.bf16.msra.mxu0 0
    %763 = vmatprep.subr.bf16.mxu0 0
    %764 = vmatpush1.bf16.msra.mxu0 0
    %765 = vmatprep.subr.bf16.mxu0 0
    %766 = vmatpush1.bf16.msra.mxu0 0
    %767 = vmatprep.subr.bf16.mxu0 0
    %768 = vmatpush1.bf16.msra.mxu0 0
    %769 = vmatprep.subr.bf16.mxu0 0
    %770 = vmatpush1.bf16.msra.mxu0 0
    %771 = vmatprep.subr.bf16.mxu0 0
    %772 = vmatpush1.bf16.msra.mxu0 0
    %773 = vmatprep.subr.bf16.mxu0 0
    %774 = vmatpush1.bf16.msra.mxu0 0
    %775 = vmatprep.mubr.bf16.mxu0 0
    %776 = vmatmul.mubr.bf16.gmra.mrb[0].mxu0 %v687
    %v777 = vpop.f32.mrb[0].mxu0
    %v778 = vadd.f32 %v693, %v777
    %v779 = vpop.f32.mrb[0].mxu0
    %v780 = vpop.f32.mrb[0].mxu0
    %v781 = vpop.f32.mrb[0].mxu0
    %782 = vdwg.mxu0
    %v783 = vld [vmem:[%s2] sm:$0xff]
    %v784 = vld [vmem:[%s3] sm:$0xff]
    %786 = vset.pattern.permute.xlu0 0
    %787 = vperm.xlu0 %786, %v784
    %v788 = vpop.permute.xlu0 %787
    %v790 = vmul.f32 %v783, %v788
    %v791 = vld [vmem:[#allocation8] sm:$0xf]
    %v792 = vld [vmem:[#allocation8 + $0x4] sm:$0xf]
    %v793 = vld [vmem:[#allocation8 + $0x8] sm:$0xf]
    %v794 = vld [vmem:[#allocation8 + $0xc] sm:$0xf]
    %v795 = vld [vmem:[#allocation8 + $0x10] sm:$0xf]
    %v796 = vld [vmem:[#allocation8 + $0x14] sm:$0xf]
    %v797 = vld [vmem:[#allocation8 + $0x18] sm:$0xf]
    %v798 = vld [vmem:[#allocation8 + $0x1c] sm:$0xf]
    %v799 = vld [vmem:[#allocation8 + $0x20] sm:$0xf]
    %v800 = vld [vmem:[#allocation8 + $0x24] sm:$0xf]
    %v801 = vld [vmem:[#allocation8 + $0x28] sm:$0xf]
    %v802 = vld [vmem:[#allocation8 + $0x2c] sm:$0xf]
    %v803 = vld [vmem:[#allocation8 + $0x30] sm:$0xf]
    %v804 = vld [vmem:[#allocation8 + $0x34] sm:$0xf]
    %v805 = vld [vmem:[#allocation8 + $0x38] sm:$0xf]
    %v806 = vld [vmem:[#allocation8 + $0x3c] sm:$0xf]
    %v807 = vpack.c.bf16 %v790, %v790
    %v808 = vld [vmem:[#allocation9] sm:$0x1]
    %v810 = vlaneseq
    %v811 = vshrl.u32 %v810, 7
    %v812 = vsub.s32 0, %v811
    %v813 = vrot.slane %v808, %v812
    %v831 = vunpack.c.l.b16 %v791
    %v832 = vunpack.c.l.b16 %v792
    %v833 = vunpack.c.l.b16 %v793
    %v834 = vunpack.c.l.b16 %v794
    %v835 = vunpack.c.l.b16 %v795
    %v836 = vunpack.c.l.b16 %v796
    %v837 = vunpack.c.l.b16 %v797
    %v838 = vunpack.c.l.b16 %v798
    %v839 = vunpack.c.l.b16 %v799
    %v840 = vunpack.c.l.b16 %v800
    %v841 = vunpack.c.l.b16 %v801
    %v842 = vunpack.c.l.b16 %v802
    %v843 = vunpack.c.l.b16 %v803
    %v844 = vunpack.c.l.b16 %v804
    %v845 = vunpack.c.l.b16 %v805
    %v846 = vunpack.c.l.b16 %v806
    %v847 = vpack.c.b16 %v832, %v831
    %v848 = vpack.c.b16 %v834, %v833
    %v849 = vpack.c.b16 %v836, %v835
    %v850 = vpack.c.b16 %v838, %v837
    %v851 = vpack.c.b16 %v840, %v839
    %v852 = vpack.c.b16 %v842, %v841
    %v853 = vpack.c.b16 %v844, %v843
    %v854 = vpack.c.b16 %v846, %v845
    %863 = vmatprep.subr.bf16.mxu0 0
    %864 = vmatpush1.bf16.msra.mxu0 %v847
    %865 = vmatprep.subr.bf16.mxu0 0
    %866 = vmatpush1.bf16.msra.mxu0 %v848
    %867 = vmatprep.subr.bf16.mxu0 0
    %868 = vmatpush1.bf16.msra.mxu0 %v849
    %869 = vmatprep.subr.bf16.mxu0 0
    %870 = vmatpush1.bf16.msra.mxu0 %v850
    %871 = vmatprep.subr.bf16.mxu0 0
    %872 = vmatpush1.bf16.msra.mxu0 %v851
    %873 = vmatprep.subr.bf16.mxu0 0
    %874 = vmatpush1.bf16.msra.mxu0 %v852
    %875 = vmatprep.subr.bf16.mxu0 0
    %876 = vmatpush1.bf16.msra.mxu0 %v853
    %877 = vmatprep.subr.bf16.mxu0 0
    %878 = vmatpush1.bf16.msra.mxu0 %v854
    %879 = vmatprep.subr.bf16.mxu0 0
    %880 = vmatpush1.bf16.msra.mxu0 0
    %881 = vmatprep.subr.bf16.mxu0 0
    %882 = vmatpush1.bf16.msra.mxu0 0
    %883 = vmatprep.subr.bf16.mxu0 0
    %884 = vmatpush1.bf16.msra.mxu0 0
    %885 = vmatprep.subr.bf16.mxu0 0
    %886 = vmatpush1.bf16.msra.mxu0 0
    %887 = vmatprep.subr.bf16.mxu0 0
    %888 = vmatpush1.bf16.msra.mxu0 0
    %889 = vmatprep.subr.bf16.mxu0 0
    %890 = vmatpush1.bf16.msra.mxu0 0
    %891 = vmatprep.subr.bf16.mxu0 0
    %892 = vmatpush1.bf16.msra.mxu0 0
    %893 = vmatprep.subr.bf16.mxu0 0
    %894 = vmatpush1.bf16.msra.mxu0 0
    %895 = vmatprep.mubr.bf16.mxu0 0
    %896 = vmatmul.mubr.bf16.gmra.mrb[0].mxu0 %v807
    %v897 = vpop.f32.mrb[0].mxu0
    %v898 = vadd.f32 %v813, %v897
    %v899 = vpop.f32.mrb[0].mxu0
    %v900 = vpop.f32.mrb[0].mxu0
    %v901 = vpop.f32.mrb[0].mxu0
    %902 = vdwg.mxu0
    %v903 = vmul.f32 %v898, 0.044715
    %v904 = vmul.f32 %v903, %v898
    %v905 = vmul.f32 %v904, %v898
    %v906 = vadd.f32 %v898, %v905
    %v907 = vmul.f32 %v906, 0.7978846
    %v908 = vmul.f32 %v898, 0.5
    %v909 = vtanh.pop %v907
    %v910 = vadd.f32 %v909, 1.0
    %v911 = vmul.f32 %v908, %v910
    %v912 = vld [vmem:[#allocation11] sm:$0xf]
    %v913 = vld [vmem:[#allocation11 + $0x4] sm:$0xf]
    %v914 = vld [vmem:[#allocation11 + $0x8] sm:$0xf]
    %v915 = vld [vmem:[#allocation11 + $0xc] sm:$0xf]
    %v916 = vld [vmem:[#allocation11 + $0x10] sm:$0xf]
    %v917 = vld [vmem:[#allocation11 + $0x14] sm:$0xf]
    %v918 = vld [vmem:[#allocation11 + $0x18] sm:$0xf]
    %v919 = vld [vmem:[#allocation11 + $0x1c] sm:$0xf]
    %v920 = vld [vmem:[#allocation11 + $0x20] sm:$0xf]
    %v921 = vld [vmem:[#allocation11 + $0x24] sm:$0xf]
    %v922 = vld [vmem:[#allocation11 + $0x28] sm:$0xf]
    %v923 = vld [vmem:[#allocation11 + $0x2c] sm:$0xf]
    %v924 = vld [vmem:[#allocation11 + $0x30] sm:$0xf]
    %v925 = vld [vmem:[#allocation11 + $0x34] sm:$0xf]
    %v926 = vld [vmem:[#allocation11 + $0x38] sm:$0xf]
    %v927 = vld [vmem:[#allocation11 + $0x3c] sm:$0xf]
    %v928 = vpack.c.bf16 %v911, %v911
    %v929 = vld [vmem:[#allocation12] sm:$0x1]
    %v931 = vlaneseq
    %v932 = vshrl.u32 %v931, 7
    %v933 = vsub.s32 0, %v932
    %v934 = vrot.slane %v929, %v933
    %v952 = vunpack.c.l.b16 %v912
    %v953 = vunpack.c.l.b16 %v913
    %v954 = vunpack.c.l.b16 %v914
    %v955 = vunpack.c.l.b16 %v915
    %v956 = vunpack.c.l.b16 %v916
    %v957 = vunpack.c.l.b16 %v917
    %v958 = vunpack.c.l.b16 %v918
    %v959 = vunpack.c.l.b16 %v919
    %v960 = vunpack.c.l.b16 %v920
    %v961 = vunpack.c.l.b16 %v921
    %v962 = vunpack.c.l.b16 %v922
    %v963 = vunpack.c.l.b16 %v923
    %v964 = vunpack.c.l.b16 %v924
    %v965 = vunpack.c.l.b16 %v925
    %v966 = vunpack.c.l.b16 %v926
    %v967 = vunpack.c.l.b16 %v927
    %v968 = vpack.c.b16 %v953, %v952
    %v969 = vpack.c.b16 %v955, %v954
    %v970 = vpack.c.b16 %v957, %v956
    %v971 = vpack.c.b16 %v959, %v958
    %v972 = vpack.c.b16 %v961, %v960
    %v973 = vpack.c.b16 %v963, %v962
    %v974 = vpack.c.b16 %v965, %v964
    %v975 = vpack.c.b16 %v967, %v966
    %984 = vmatprep.subr.bf16.mxu0 0
    %985 = vmatpush1.bf16.msra.mxu0 %v968
    %986 = vmatprep.subr.bf16.mxu0 0
    %987 = vmatpush1.bf16.msra.mxu0 %v969
    %988 = vmatprep.subr.bf16.mxu0 0
    %989 = vmatpush1.bf16.msra.mxu0 %v970
    %990 = vmatprep.subr.bf16.mxu0 0
    %991 = vmatpush1.bf16.msra.mxu0 %v971
    %992 = vmatprep.subr.bf16.mxu0 0
    %993 = vmatpush1.bf16.msra.mxu0 %v972
    %994 = vmatprep.subr.bf16.mxu0 0
    %995 = vmatpush1.bf16.msra.mxu0 %v973
    %996 = vmatprep.subr.bf16.mxu0 0
    %997 = vmatpush1.bf16.msra.mxu0 %v974
    %998 = vmatprep.subr.bf16.mxu0 0
    %999 = vmatpush1.bf16.msra.mxu0 %v975
    %1000 = vmatprep.subr.bf16.mxu0 0
    %1001 = vmatpush1.bf16.msra.mxu0 0
    %1002 = vmatprep.subr.bf16.mxu0 0
    %1003 = vmatpush1.bf16.msra.mxu0 0
    %1004 = vmatprep.subr.bf16.mxu0 0
    %1005 = vmatpush1.bf16.msra.mxu0 0
    %1006 = vmatprep.subr.bf16.mxu0 0
    %1007 = vmatpush1.bf16.msra.mxu0 0
    %1008 = vmatprep.subr.bf16.mxu0 0
    %1009 = vmatpush1.bf16.msra.mxu0 0
    %1010 = vmatprep.subr.bf16.mxu0 0
    %1011 = vmatpush1.bf16.msra.mxu0 0
    %1012 = vmatprep.subr.bf16.mxu0 0
    %1013 = vmatpush1.bf16.msra.mxu0 0
    %1014 = vmatprep.subr.bf16.mxu0 0
    %1015 = vmatpush1.bf16.msra.mxu0 0
    %1016 = vmatprep.mubr.bf16.mxu0 0
    %1017 = vmatmul.mubr.bf16.gmra.mrb[0].mxu0 %v928
    %v1018 = vpop.f32.mrb[0].mxu0
    %v1019 = vadd.f32 %v934, %v1018
    %v1020 = vpop.f32.mrb[0].mxu0
    %v1021 = vpop.f32.mrb[0].mxu0
    %v1022 = vpop.f32.mrb[0].mxu0
    %1023 = vdwg.mxu0
    %v1024 = vmul.f32 %v544, 0.044715
    %v1025 = vmul.f32 %v1024, %v544
    %v1026 = vmul.f32 %v1025, %v544
    %v1027 = vadd.f32 %v544, %v1026
    %v1028 = vmul.f32 %v1027, 0.7978846
    %v1029 = vmul.f32 %v544, 0.5
    %v1030 = vtanh.pop %v1028
    %v1031 = vadd.f32 %v1030, 1.0
    %v1032 = vmul.f32 %v1029, %v1031
    %v1033 = vmul.f32 %v1019, 0.044715
    %v1034 = vmul.f32 %v1033, %v1019
    %v1035 = vmul.f32 %v1034, %v1019
    %v1036 = vadd.f32 %v1019, %v1035
    %v1037 = vmul.f32 %v1036, 0.7978846
    %v1038 = vmul.f32 %v1019, 0.5
    %v1039 = vtanh.pop %v1037
    %v1040 = vadd.f32 %v1039, 1.0
    %v1041 = vmul.f32 %v1038, %v1040
    %v1042 = vld [vmem:[#allocation17] sm:$0xff]
    %v1043 = vld [vmem:[#allocation17 + $0x8] sm:$0xff]
    %v1044 = vld [vmem:[#allocation17 + $0x10] sm:$0xff]
    %v1045 = vld [vmem:[#allocation17 + $0x18] sm:$0xff]
    %v1046 = vld [vmem:[#allocation17 + $0x20] sm:$0xff]
    %v1047 = vld [vmem:[#allocation17 + $0x28] sm:$0xff]
    %v1048 = vld [vmem:[#allocation17 + $0x30] sm:$0xff]
    %v1049 = vld [vmem:[#allocation17 + $0x38] sm:$0xff]
    %v1050 = vld [vmem:[#allocation17 + $0x40] sm:$0xff]
    %v1051 = vld [vmem:[#allocation17 + $0x48] sm:$0xff]
    %v1052 = vld [vmem:[#allocation17 + $0x50] sm:$0xff]
    %v1053 = vld [vmem:[#allocation17 + $0x58] sm:$0xff]
    %v1054 = vld [vmem:[#allocation17 + $0x60] sm:$0xff]
    %v1055 = vld [vmem:[#allocation17 + $0x68] sm:$0xff]
    %v1056 = vld [vmem:[#allocation17 + $0x70] sm:$0xff]
    %v1057 = vld [vmem:[#allocation17 + $0x78] sm:$0xff]
    %v1058 = vld [vmem:[#allocation17 + $0x80] sm:$0xff]
    %v1059 = vld [vmem:[#allocation17 + $0x88] sm:$0xff]
    %v1060 = vld [vmem:[#allocation17 + $0x90] sm:$0xff]
    %v1061 = vld [vmem:[#allocation17 + $0x98] sm:$0xff]
    %v1062 = vld [vmem:[#allocation17 + $0xa0] sm:$0xff]
    %v1063 = vld [vmem:[#allocation17 + $0xa8] sm:$0xff]
    %v1064 = vld [vmem:[#allocation17 + $0xb0] sm:$0xff]
    %v1065 = vld [vmem:[#allocation17 + $0xb8] sm:$0xff]
    %v1066 = vld [vmem:[#allocation17 + $0xc0] sm:$0xff]
    %v1067 = vld [vmem:[#allocation17 + $0xc8] sm:$0xff]
    %v1068 = vld [vmem:[#allocation17 + $0xd0] sm:$0xff]
    %v1069 = vld [vmem:[#allocation17 + $0xd8] sm:$0xff]
    %v1070 = vld [vmem:[#allocation17 + $0xe0] sm:$0xff]
    %v1071 = vld [vmem:[#allocation17 + $0xe8] sm:$0xff]
    %v1072 = vld [vmem:[#allocation17 + $0xf0] sm:$0xff]
    %v1073 = vld [vmem:[#allocation17 + $0xf8] sm:$0xff]
    %v1074 = vld [vmem:[#allocation17 + $0x100] sm:$0xff]
    %v1075 = vld [vmem:[#allocation17 + $0x108] sm:$0xff]
    %v1076 = vld [vmem:[#allocation17 + $0x110] sm:$0xff]
    %v1077 = vld [vmem:[#allocation17 + $0x118] sm:$0xff]
    %v1078 = vld [vmem:[#allocation17 + $0x120] sm:$0xff]
    %v1079 = vld [vmem:[#allocation17 + $0x128] sm:$0xff]
    %v1080 = vld [vmem:[#allocation17 + $0x130] sm:$0xff]
    %v1081 = vld [vmem:[#allocation17 + $0x138] sm:$0xff]
    %v1082 = vld [vmem:[#allocation17 + $0x140] sm:$0xff]
    %v1083 = vld [vmem:[#allocation17 + $0x148] sm:$0xff]
    %v1084 = vld [vmem:[#allocation17 + $0x150] sm:$0xff]
    %v1085 = vld [vmem:[#allocation17 + $0x158] sm:$0xff]
    %v1086 = vld [vmem:[#allocation17 + $0x160] sm:$0xff]
    %v1087 = vld [vmem:[#allocation17 + $0x168] sm:$0xff]
    %v1088 = vld [vmem:[#allocation17 + $0x170] sm:$0xff]
    %v1089 = vld [vmem:[#allocation17 + $0x178] sm:$0xff]
    %v1090 = vld [vmem:[#allocation17 + $0x180] sm:$0xff]
    %v1091 = vld [vmem:[#allocation17 + $0x188] sm:$0xff]
    %v1092 = vld [vmem:[#allocation17 + $0x190] sm:$0xff]
    %v1093 = vld [vmem:[#allocation17 + $0x198] sm:$0xff]
    %v1094 = vld [vmem:[#allocation17 + $0x1a0] sm:$0xff]
    %v1095 = vld [vmem:[#allocation17 + $0x1a8] sm:$0xff]
    %v1096 = vld [vmem:[#allocation17 + $0x1b0] sm:$0xff]
    %v1097 = vld [vmem:[#allocation17 + $0x1b8] sm:$0xff]
    %v1098 = vld [vmem:[#allocation17 + $0x1c0] sm:$0xff]
    %v1099 = vld [vmem:[#allocation17 + $0x1c8] sm:$0xff]
    %v1100 = vld [vmem:[#allocation17 + $0x1d0] sm:$0xff]
    %v1101 = vld [vmem:[#allocation17 + $0x1d8] sm:$0xff]
    %v1102 = vld [vmem:[#allocation17 + $0x1e0] sm:$0xff]
    %v1103 = vld [vmem:[#allocation17 + $0x1e8] sm:$0xff]
    %v1104 = vld [vmem:[#allocation17 + $0x1f0] sm:$0xff]
    %v1105 = vld [vmem:[#allocation17 + $0x1f8] sm:$0xff]
    %v1106 = vld [vmem:[#allocation17 + $0x200] sm:$0xff]
    %v1107 = vld [vmem:[#allocation17 + $0x208] sm:$0xff]
    %v1108 = vld [vmem:[#allocation17 + $0x210] sm:$0xff]
    %v1109 = vld [vmem:[#allocation17 + $0x218] sm:$0xff]
    %v1110 = vld [vmem:[#allocation17 + $0x220] sm:$0xff]
    %v1111 = vld [vmem:[#allocation17 + $0x228] sm:$0xff]
    %v1112 = vld [vmem:[#allocation17 + $0x230] sm:$0xff]
    %v1113 = vld [vmem:[#allocation17 + $0x238] sm:$0xff]
    %v1114 = vld [vmem:[#allocation17 + $0x240] sm:$0xff]
    %v1115 = vld [vmem:[#allocation17 + $0x248] sm:$0xff]
    %v1116 = vld [vmem:[#allocation17 + $0x250] sm:$0xff]
    %v1117 = vld [vmem:[#allocation17 + $0x258] sm:$0xff]
    %v1118 = vld [vmem:[#allocation17 + $0x260] sm:$0xff]
    %v1119 = vld [vmem:[#allocation17 + $0x268] sm:$0xff]
    %v1120 = vld [vmem:[#allocation17 + $0x270] sm:$0xff]
    %v1121 = vld [vmem:[#allocation17 + $0x278] sm:$0xff]
    %v1122 = vld [vmem:[#allocation17 + $0x280] sm:$0xff]
    %v1123 = vld [vmem:[#allocation17 + $0x288] sm:$0xff]
    %v1124 = vld [vmem:[#allocation17 + $0x290] sm:$0xff]
    %v1125 = vld [vmem:[#allocation17 + $0x298] sm:$0xff]
    %v1126 = vld [vmem:[#allocation17 + $0x2a0] sm:$0xff]
    %v1127 = vld [vmem:[#allocation17 + $0x2a8] sm:$0xff]
    %v1128 = vld [vmem:[#allocation17 + $0x2b0] sm:$0xff]
    %v1129 = vld [vmem:[#allocation17 + $0x2b8] sm:$0xff]
    %v1130 = vld [vmem:[#allocation17 + $0x2c0] sm:$0xff]
    %v1131 = vld [vmem:[#allocation17 + $0x2c8] sm:$0xff]
    %v1132 = vld [vmem:[#allocation17 + $0x2d0] sm:$0xff]
    %v1133 = vld [vmem:[#allocation17 + $0x2d8] sm:$0xff]
    %v1134 = vld [vmem:[#allocation17 + $0x2e0] sm:$0xff]
    %v1135 = vld [vmem:[#allocation17 + $0x2e8] sm:$0xff]
    %v1136 = vld [vmem:[#allocation17 + $0x2f0] sm:$0xff]
    %v1137 = vld [vmem:[#allocation17 + $0x2f8] sm:$0xff]
    %v1138 = vld [vmem:[#allocation17 + $0x300] sm:$0xff]
    %v1139 = vld [vmem:[#allocation17 + $0x308] sm:$0xff]
    %v1140 = vld [vmem:[#allocation17 + $0x310] sm:$0xff]
    %v1141 = vld [vmem:[#allocation17 + $0x318] sm:$0xff]
    %v1142 = vld [vmem:[#allocation17 + $0x320] sm:$0xff]
    %v1143 = vld [vmem:[#allocation17 + $0x328] sm:$0xff]
    %v1144 = vld [vmem:[#allocation17 + $0x330] sm:$0xff]
    %v1145 = vld [vmem:[#allocation17 + $0x338] sm:$0xff]
    %v1146 = vld [vmem:[#allocation17 + $0x340] sm:$0xff]
    %v1147 = vld [vmem:[#allocation17 + $0x348] sm:$0xff]
    %v1148 = vld [vmem:[#allocation17 + $0x350] sm:$0xff]
    %v1149 = vld [vmem:[#allocation17 + $0x358] sm:$0xff]
    %v1150 = vld [vmem:[#allocation17 + $0x360] sm:$0xff]
    %v1151 = vld [vmem:[#allocation17 + $0x368] sm:$0xff]
    %v1152 = vld [vmem:[#allocation17 + $0x370] sm:$0xff]
    %v1153 = vld [vmem:[#allocation17 + $0x378] sm:$0xff]
    %v1154 = vld [vmem:[#allocation17 + $0x380] sm:$0xff]
    %v1155 = vld [vmem:[#allocation17 + $0x388] sm:$0xff]
    %v1156 = vld [vmem:[#allocation17 + $0x390] sm:$0xff]
    %v1157 = vld [vmem:[#allocation17 + $0x398] sm:$0xff]
    %v1158 = vld [vmem:[#allocation17 + $0x3a0] sm:$0xff]
    %v1159 = vld [vmem:[#allocation17 + $0x3a8] sm:$0xff]
    %v1160 = vld [vmem:[#allocation17 + $0x3b0] sm:$0xff]
    %v1161 = vld [vmem:[#allocation17 + $0x3b8] sm:$0xff]
    %v1162 = vld [vmem:[#allocation17 + $0x3c0] sm:$0xff]
    %v1163 = vld [vmem:[#allocation17 + $0x3c8] sm:$0xff]
    %v1164 = vld [vmem:[#allocation17 + $0x3d0] sm:$0xff]
    %v1165 = vld [vmem:[#allocation17 + $0x3d8] sm:$0xff]
    %v1166 = vld [vmem:[#allocation17 + $0x3e0] sm:$0xff]
    %v1167 = vld [vmem:[#allocation17 + $0x3e8] sm:$0xff]
    %v1168 = vld [vmem:[#allocation17 + $0x3f0] sm:$0xff]
    %v1169 = vld [vmem:[#allocation17 + $0x3f8] sm:$0xff]
    %v1170 = vld [vmem:[#allocation17 + $0x400] sm:$0xff]
    %v1171 = vld [vmem:[#allocation17 + $0x408] sm:$0xff]
    %v1172 = vld [vmem:[#allocation17 + $0x410] sm:$0xff]
    %v1173 = vld [vmem:[#allocation17 + $0x418] sm:$0xff]
    %v1174 = vld [vmem:[#allocation17 + $0x420] sm:$0xff]
    %v1175 = vld [vmem:[#allocation17 + $0x428] sm:$0xff]
    %v1176 = vld [vmem:[#allocation17 + $0x430] sm:$0xff]
    %v1177 = vld [vmem:[#allocation17 + $0x438] sm:$0xff]
    %v1178 = vld [vmem:[#allocation17 + $0x440] sm:$0xff]
    %v1179 = vld [vmem:[#allocation17 + $0x448] sm:$0xff]
    %v1180 = vld [vmem:[#allocation17 + $0x450] sm:$0xff]
    %v1181 = vld [vmem:[#allocation17 + $0x458] sm:$0xff]
    %v1182 = vld [vmem:[#allocation17 + $0x460] sm:$0xff]
    %v1183 = vld [vmem:[#allocation17 + $0x468] sm:$0xff]
    %v1184 = vld [vmem:[#allocation17 + $0x470] sm:$0xff]
    %v1185 = vld [vmem:[#allocation17 + $0x478] sm:$0xff]
    %v1186 = vld [vmem:[#allocation17 + $0x480] sm:$0xff]
    %v1187 = vld [vmem:[#allocation17 + $0x488] sm:$0xff]
    %v1188 = vld [vmem:[#allocation17 + $0x490] sm:$0xff]
    %v1189 = vld [vmem:[#allocation17 + $0x498] sm:$0xff]
    %v1190 = vld [vmem:[#allocation17 + $0x4a0] sm:$0xff]
    %v1191 = vld [vmem:[#allocation17 + $0x4a8] sm:$0xff]
    %v1192 = vld [vmem:[#allocation17 + $0x4b0] sm:$0xff]
    %v1193 = vld [vmem:[#allocation17 + $0x4b8] sm:$0xff]
    %v1194 = vld [vmem:[#allocation17 + $0x4c0] sm:$0xff]
    %v1195 = vld [vmem:[#allocation17 + $0x4c8] sm:$0xff]
    %v1196 = vld [vmem:[#allocation17 + $0x4d0] sm:$0xff]
    %v1197 = vld [vmem:[#allocation17 + $0x4d8] sm:$0xff]
    %v1198 = vld [vmem:[#allocation17 + $0x4e0] sm:$0xff]
    %v1199 = vld [vmem:[#allocation17 + $0x4e8] sm:$0xff]
    %v1200 = vld [vmem:[#allocation17 + $0x4f0] sm:$0xff]
    %v1201 = vld [vmem:[#allocation17 + $0x4f8] sm:$0xff]
    %v1202 = vld [vmem:[#allocation17 + $0x500] sm:$0xff]
    %v1203 = vld [vmem:[#allocation17 + $0x508] sm:$0xff]
    %v1204 = vld [vmem:[#allocation17 + $0x510] sm:$0xff]
    %v1205 = vld [vmem:[#allocation17 + $0x518] sm:$0xff]
    %v1206 = vld [vmem:[#allocation17 + $0x520] sm:$0xff]
    %v1207 = vld [vmem:[#allocation17 + $0x528] sm:$0xff]
    %v1208 = vld [vmem:[#allocation17 + $0x530] sm:$0xff]
    %v1209 = vld [vmem:[#allocation17 + $0x538] sm:$0xff]
    %v1210 = vld [vmem:[#allocation17 + $0x540] sm:$0xff]
    %v1211 = vld [vmem:[#allocation17 + $0x548] sm:$0xff]
    %v1212 = vld [vmem:[#allocation17 + $0x550] sm:$0xff]
    %v1213 = vld [vmem:[#allocation17 + $0x558] sm:$0xff]
    %v1214 = vld [vmem:[#allocation17 + $0x560] sm:$0xff]
    %v1215 = vld [vmem:[#allocation17 + $0x568] sm:$0xff]
    %v1216 = vld [vmem:[#allocation17 + $0x570] sm:$0xff]
    %v1217 = vld [vmem:[#allocation17 + $0x578] sm:$0xff]
    %v1218 = vld [vmem:[#allocation17 + $0x580] sm:$0xff]
    %v1219 = vld [vmem:[#allocation17 + $0x588] sm:$0xff]
    %v1220 = vld [vmem:[#allocation17 + $0x590] sm:$0xff]
    %v1221 = vld [vmem:[#allocation17 + $0x598] sm:$0xff]
    %v1222 = vld [vmem:[#allocation17 + $0x5a0] sm:$0xff]
    %v1223 = vld [vmem:[#allocation17 + $0x5a8] sm:$0xff]
    %v1224 = vld [vmem:[#allocation17 + $0x5b0] sm:$0xff]
    %v1225 = vld [vmem:[#allocation17 + $0x5b8] sm:$0xff]
    %v1226 = vld [vmem:[#allocation17 + $0x5c0] sm:$0xff]
    %v1227 = vld [vmem:[#allocation17 + $0x5c8] sm:$0xff]
    %v1228 = vld [vmem:[#allocation17 + $0x5d0] sm:$0xff]
    %v1229 = vld [vmem:[#allocation17 + $0x5d8] sm:$0xff]
    %v1230 = vld [vmem:[#allocation17 + $0x5e0] sm:$0xff]
    %v1231 = vld [vmem:[#allocation17 + $0x5e8] sm:$0xff]
    %v1232 = vld [vmem:[#allocation17 + $0x5f0] sm:$0xff]
    %v1233 = vld [vmem:[#allocation17 + $0x5f8] sm:$0xff]
    %v1234 = vpack.c.bf16 %v1032, %v1032
    %v1235 = vpack.c.bf16 %v1041, %v1041
    %v1236 = vld [vmem:[#allocation18] sm:$0xff]
    %v1237 = vld [vmem:[#allocation18 + $0x8] sm:$0xf]
    %v1240 = vlaneseq
    %v1241 = vshrl.u32 %v1240, 7
    %v1242 = vsub.s32 0, %v1241
    %v1243 = vrot.slane %v1236, %v1242
    %v1244 = vlaneseq
    %v1245 = vshrl.u32 %v1244, 7
    %v1246 = vsub.s32 1, %v1245
    %v1247 = vrot.slane %v1236, %v1246
    %v1248 = vlaneseq
    %v1249 = vshrl.u32 %v1248, 7
    %v1250 = vsub.s32 2, %v1249
    %v1251 = vrot.slane %v1236, %v1250
    %v1252 = vlaneseq
    %v1253 = vshrl.u32 %v1252, 7
    %v1254 = vsub.s32 3, %v1253
    %v1255 = vrot.slane %v1236, %v1254
    %v1256 = vlaneseq
    %v1257 = vshrl.u32 %v1256, 7
    %v1258 = vsub.s32 4, %v1257
    %v1259 = vrot.slane %v1236, %v1258
    %v1260 = vlaneseq
    %v1261 = vshrl.u32 %v1260, 7
    %v1262 = vsub.s32 5, %v1261
    %v1263 = vrot.slane %v1236, %v1262
    %v1264 = vlaneseq
    %v1265 = vshrl.u32 %v1264, 7
    %v1266 = vsub.s32 6, %v1265
    %v1267 = vrot.slane %v1236, %v1266
    %v1268 = vlaneseq
    %v1269 = vshrl.u32 %v1268, 7
    %v1270 = vsub.s32 7, %v1269
    %v1271 = vrot.slane %v1236, %v1270
    %v1272 = vlaneseq
    %v1273 = vshrl.u32 %v1272, 7
    %v1274 = vsub.s32 0, %v1273
    %v1275 = vrot.slane %v1237, %v1274
    %v1276 = vlaneseq
    %v1277 = vshrl.u32 %v1276, 7
    %v1278 = vsub.s32 1, %v1277
    %v1279 = vrot.slane %v1237, %v1278
    %v1280 = vlaneseq
    %v1281 = vshrl.u32 %v1280, 7
    %v1282 = vsub.s32 2, %v1281
    %v1283 = vrot.slane %v1237, %v1282
    %v1284 = vlaneseq
    %v1285 = vshrl.u32 %v1284, 7
    %v1286 = vsub.s32 3, %v1285
    %v1287 = vrot.slane %v1237, %v1286
    %v1492 = vunpack.c.l.b16 %v1042
    %v1493 = vunpack.c.h.b16 %v1042
    %v1494 = vunpack.c.l.b16 %v1043
    %v1495 = vunpack.c.h.b16 %v1043
    %v1496 = vunpack.c.l.b16 %v1044
    %v1497 = vunpack.c.h.b16 %v1044
    %v1498 = vunpack.c.l.b16 %v1045
    %v1499 = vunpack.c.h.b16 %v1045
    %v1500 = vunpack.c.l.b16 %v1046
    %v1501 = vunpack.c.h.b16 %v1046
    %v1502 = vunpack.c.l.b16 %v1047
    %v1503 = vunpack.c.h.b16 %v1047
    %v1504 = vunpack.c.l.b16 %v1048
    %v1505 = vunpack.c.h.b16 %v1048
    %v1506 = vunpack.c.l.b16 %v1049
    %v1507 = vunpack.c.h.b16 %v1049
    %v1508 = vunpack.c.l.b16 %v1050
    %v1509 = vunpack.c.h.b16 %v1050
    %v1510 = vunpack.c.l.b16 %v1051
    %v1511 = vunpack.c.h.b16 %v1051
    %v1512 = vunpack.c.l.b16 %v1052
    %v1513 = vunpack.c.h.b16 %v1052
    %v1514 = vunpack.c.l.b16 %v1053
    %v1515 = vunpack.c.h.b16 %v1053
    %v1516 = vunpack.c.l.b16 %v1054
    %v1517 = vunpack.c.h.b16 %v1054
    %v1518 = vunpack.c.l.b16 %v1055
    %v1519 = vunpack.c.h.b16 %v1055
    %v1520 = vunpack.c.l.b16 %v1056
    %v1521 = vunpack.c.h.b16 %v1056
    %v1522 = vunpack.c.l.b16 %v1057
    %v1523 = vunpack.c.h.b16 %v1057
    %v1524 = vunpack.c.l.b16 %v1058
    %v1525 = vunpack.c.h.b16 %v1058
    %v1526 = vunpack.c.l.b16 %v1059
    %v1527 = vunpack.c.h.b16 %v1059
    %v1528 = vunpack.c.l.b16 %v1060
    %v1529 = vunpack.c.h.b16 %v1060
    %v1530 = vunpack.c.l.b16 %v1061
    %v1531 = vunpack.c.h.b16 %v1061
    %v1532 = vunpack.c.l.b16 %v1062
    %v1533 = vunpack.c.h.b16 %v1062
    %v1534 = vunpack.c.l.b16 %v1063
    %v1535 = vunpack.c.h.b16 %v1063
    %v1536 = vunpack.c.l.b16 %v1064
    %v1537 = vunpack.c.h.b16 %v1064
    %v1538 = vunpack.c.l.b16 %v1065
    %v1539 = vunpack.c.h.b16 %v1065
    %v1540 = vunpack.c.l.b16 %v1066
    %v1541 = vunpack.c.h.b16 %v1066
    %v1542 = vunpack.c.l.b16 %v1067
    %v1543 = vunpack.c.h.b16 %v1067
    %v1544 = vunpack.c.l.b16 %v1068
    %v1545 = vunpack.c.h.b16 %v1068
    %v1546 = vunpack.c.l.b16 %v1069
    %v1547 = vunpack.c.h.b16 %v1069
    %v1548 = vunpack.c.l.b16 %v1070
    %v1549 = vunpack.c.h.b16 %v1070
    %v1550 = vunpack.c.l.b16 %v1071
    %v1551 = vunpack.c.h.b16 %v1071
    %v1552 = vunpack.c.l.b16 %v1072
    %v1553 = vunpack.c.h.b16 %v1072
    %v1554 = vunpack.c.l.b16 %v1073
    %v1555 = vunpack.c.h.b16 %v1073
    %v1556 = vunpack.c.l.b16 %v1074
    %v1557 = vunpack.c.h.b16 %v1074
    %v1558 = vunpack.c.l.b16 %v1075
    %v1559 = vunpack.c.h.b16 %v1075
    %v1560 = vunpack.c.l.b16 %v1076
    %v1561 = vunpack.c.h.b16 %v1076
    %v1562 = vunpack.c.l.b16 %v1077
    %v1563 = vunpack.c.h.b16 %v1077
    %v1564 = vunpack.c.l.b16 %v1078
    %v1565 = vunpack.c.h.b16 %v1078
    %v1566 = vunpack.c.l.b16 %v1079
    %v1567 = vunpack.c.h.b16 %v1079
    %v1568 = vunpack.c.l.b16 %v1080
    %v1569 = vunpack.c.h.b16 %v1080
    %v1570 = vunpack.c.l.b16 %v1081
    %v1571 = vunpack.c.h.b16 %v1081
    %v1572 = vunpack.c.l.b16 %v1082
    %v1573 = vunpack.c.h.b16 %v1082
    %v1574 = vunpack.c.l.b16 %v1083
    %v1575 = vunpack.c.h.b16 %v1083
    %v1576 = vunpack.c.l.b16 %v1084
    %v1577 = vunpack.c.h.b16 %v1084
    %v1578 = vunpack.c.l.b16 %v1085
    %v1579 = vunpack.c.h.b16 %v1085
    %v1580 = vunpack.c.l.b16 %v1086
    %v1581 = vunpack.c.h.b16 %v1086
    %v1582 = vunpack.c.l.b16 %v1087
    %v1583 = vunpack.c.h.b16 %v1087
    %v1584 = vunpack.c.l.b16 %v1088
    %v1585 = vunpack.c.h.b16 %v1088
    %v1586 = vunpack.c.l.b16 %v1089
    %v1587 = vunpack.c.h.b16 %v1089
    %v1588 = vunpack.c.l.b16 %v1090
    %v1589 = vunpack.c.h.b16 %v1090
    %v1590 = vunpack.c.l.b16 %v1091
    %v1591 = vunpack.c.h.b16 %v1091
    %v1592 = vunpack.c.l.b16 %v1092
    %v1593 = vunpack.c.h.b16 %v1092
    %v1594 = vunpack.c.l.b16 %v1093
    %v1595 = vunpack.c.h.b16 %v1093
    %v1596 = vunpack.c.l.b16 %v1094
    %v1597 = vunpack.c.h.b16 %v1094
    %v1598 = vunpack.c.l.b16 %v1095
    %v1599 = vunpack.c.h.b16 %v1095
    %v1600 = vunpack.c.l.b16 %v1096
    %v1601 = vunpack.c.h.b16 %v1096
    %v1602 = vunpack.c.l.b16 %v1097
    %v1603 = vunpack.c.h.b16 %v1097
    %v1604 = vunpack.c.l.b16 %v1098
    %v1605 = vunpack.c.h.b16 %v1098
    %v1606 = vunpack.c.l.b16 %v1099
    %v1607 = vunpack.c.h.b16 %v1099
    %v1608 = vunpack.c.l.b16 %v1100
    %v1609 = vunpack.c.h.b16 %v1100
    %v1610 = vunpack.c.l.b16 %v1101
    %v1611 = vunpack.c.h.b16 %v1101
    %v1612 = vunpack.c.l.b16 %v1102
    %v1613 = vunpack.c.h.b16 %v1102
    %v1614 = vunpack.c.l.b16 %v1103
    %v1615 = vunpack.c.h.b16 %v1103
    %v1616 = vunpack.c.l.b16 %v1104
    %v1617 = vunpack.c.h.b16 %v1104
    %v1618 = vunpack.c.l.b16 %v1105
    %v1619 = vunpack.c.h.b16 %v1105
    %v1620 = vunpack.c.l.b16 %v1106
    %v1621 = vunpack.c.h.b16 %v1106
    %v1622 = vunpack.c.l.b16 %v1107
    %v1623 = vunpack.c.h.b16 %v1107
    %v1624 = vunpack.c.l.b16 %v1108
    %v1625 = vunpack.c.h.b16 %v1108
    %v1626 = vunpack.c.l.b16 %v1109
    %v1627 = vunpack.c.h.b16 %v1109
    %v1628 = vunpack.c.l.b16 %v1110
    %v1629 = vunpack.c.h.b16 %v1110
    %v1630 = vunpack.c.l.b16 %v1111
    %v1631 = vunpack.c.h.b16 %v1111
    %v1632 = vunpack.c.l.b16 %v1112
    %v1633 = vunpack.c.h.b16 %v1112
    %v1634 = vunpack.c.l.b16 %v1113
    %v1635 = vunpack.c.h.b16 %v1113
    %v1636 = vunpack.c.l.b16 %v1114
    %v1637 = vunpack.c.h.b16 %v1114
    %v1638 = vunpack.c.l.b16 %v1115
    %v1639 = vunpack.c.h.b16 %v1115
    %v1640 = vunpack.c.l.b16 %v1116
    %v1641 = vunpack.c.h.b16 %v1116
    %v1642 = vunpack.c.l.b16 %v1117
    %v1643 = vunpack.c.h.b16 %v1117
    %v1644 = vunpack.c.l.b16 %v1118
    %v1645 = vunpack.c.h.b16 %v1118
    %v1646 = vunpack.c.l.b16 %v1119
    %v1647 = vunpack.c.h.b16 %v1119
    %v1648 = vunpack.c.l.b16 %v1120
    %v1649 = vunpack.c.h.b16 %v1120
    %v1650 = vunpack.c.l.b16 %v1121
    %v1651 = vunpack.c.h.b16 %v1121
    %v1652 = vunpack.c.l.b16 %v1122
    %v1653 = vunpack.c.h.b16 %v1122
    %v1654 = vunpack.c.l.b16 %v1123
    %v1655 = vunpack.c.h.b16 %v1123
    %v1656 = vunpack.c.l.b16 %v1124
    %v1657 = vunpack.c.h.b16 %v1124
    %v1658 = vunpack.c.l.b16 %v1125
    %v1659 = vunpack.c.h.b16 %v1125
    %v1660 = vunpack.c.l.b16 %v1126
    %v1661 = vunpack.c.h.b16 %v1126
    %v1662 = vunpack.c.l.b16 %v1127
    %v1663 = vunpack.c.h.b16 %v1127
    %v1664 = vunpack.c.l.b16 %v1128
    %v1665 = vunpack.c.h.b16 %v1128
    %v1666 = vunpack.c.l.b16 %v1129
    %v1667 = vunpack.c.h.b16 %v1129
    %v1668 = vunpack.c.l.b16 %v1130
    %v1669 = vunpack.c.h.b16 %v1130
    %v1670 = vunpack.c.l.b16 %v1131
    %v1671 = vunpack.c.h.b16 %v1131
    %v1672 = vunpack.c.l.b16 %v1132
    %v1673 = vunpack.c.h.b16 %v1132
    %v1674 = vunpack.c.l.b16 %v1133
    %v1675 = vunpack.c.h.b16 %v1133
    %v1676 = vunpack.c.l.b16 %v1134
    %v1677 = vunpack.c.h.b16 %v1134
    %v1678 = vunpack.c.l.b16 %v1135
    %v1679 = vunpack.c.h.b16 %v1135
    %v1680 = vunpack.c.l.b16 %v1136
    %v1681 = vunpack.c.h.b16 %v1136
    %v1682 = vunpack.c.l.b16 %v1137
    %v1683 = vunpack.c.h.b16 %v1137
    %v1684 = vunpack.c.l.b16 %v1138
    %v1685 = vunpack.c.h.b16 %v1138
    %v1686 = vunpack.c.l.b16 %v1139
    %v1687 = vunpack.c.h.b16 %v1139
    %v1688 = vunpack.c.l.b16 %v1140
    %v1689 = vunpack.c.h.b16 %v1140
    %v1690 = vunpack.c.l.b16 %v1141
    %v1691 = vunpack.c.h.b16 %v1141
    %v1692 = vunpack.c.l.b16 %v1142
    %v1693 = vunpack.c.h.b16 %v1142
    %v1694 = vunpack.c.l.b16 %v1143
    %v1695 = vunpack.c.h.b16 %v1143
    %v1696 = vunpack.c.l.b16 %v1144
    %v1697 = vunpack.c.h.b16 %v1144
    %v1698 = vunpack.c.l.b16 %v1145
    %v1699 = vunpack.c.h.b16 %v1145
    %v1700 = vunpack.c.l.b16 %v1146
    %v1701 = vunpack.c.h.b16 %v1146
    %v1702 = vunpack.c.l.b16 %v1147
    %v1703 = vunpack.c.h.b16 %v1147
    %v1704 = vunpack.c.l.b16 %v1148
    %v1705 = vunpack.c.h.b16 %v1148
    %v1706 = vunpack.c.l.b16 %v1149
    %v1707 = vunpack.c.h.b16 %v1149
    %v1708 = vunpack.c.l.b16 %v1150
    %v1709 = vunpack.c.h.b16 %v1150
    %v1710 = vunpack.c.l.b16 %v1151
    %v1711 = vunpack.c.h.b16 %v1151
    %v1712 = vunpack.c.l.b16 %v1152
    %v1713 = vunpack.c.h.b16 %v1152
    %v1714 = vunpack.c.l.b16 %v1153
    %v1715 = vunpack.c.h.b16 %v1153
    %v1716 = vunpack.c.l.b16 %v1154
    %v1717 = vunpack.c.h.b16 %v1154
    %v1718 = vunpack.c.l.b16 %v1155
    %v1719 = vunpack.c.h.b16 %v1155
    %v1720 = vunpack.c.l.b16 %v1156
    %v1721 = vunpack.c.h.b16 %v1156
    %v1722 = vunpack.c.l.b16 %v1157
    %v1723 = vunpack.c.h.b16 %v1157
    %v1724 = vunpack.c.l.b16 %v1158
    %v1725 = vunpack.c.h.b16 %v1158
    %v1726 = vunpack.c.l.b16 %v1159
    %v1727 = vunpack.c.h.b16 %v1159
    %v1728 = vunpack.c.l.b16 %v1160
    %v1729 = vunpack.c.h.b16 %v1160
    %v1730 = vunpack.c.l.b16 %v1161
    %v1731 = vunpack.c.h.b16 %v1161
    %v1732 = vunpack.c.l.b16 %v1162
    %v1733 = vunpack.c.h.b16 %v1162
    %v1734 = vunpack.c.l.b16 %v1163
    %v1735 = vunpack.c.h.b16 %v1163
    %v1736 = vunpack.c.l.b16 %v1164
    %v1737 = vunpack.c.h.b16 %v1164
    %v1738 = vunpack.c.l.b16 %v1165
    %v1739 = vunpack.c.h.b16 %v1165
    %v1740 = vunpack.c.l.b16 %v1166
    %v1741 = vunpack.c.h.b16 %v1166
    %v1742 = vunpack.c.l.b16 %v1167
    %v1743 = vunpack.c.h.b16 %v1167
    %v1744 = vunpack.c.l.b16 %v1168
    %v1745 = vunpack.c.h.b16 %v1168
    %v1746 = vunpack.c.l.b16 %v1169
    %v1747 = vunpack.c.h.b16 %v1169
    %v1748 = vunpack.c.l.b16 %v1170
    %v1749 = vunpack.c.h.b16 %v1170
    %v1750 = vunpack.c.l.b16 %v1171
    %v1751 = vunpack.c.h.b16 %v1171
    %v1752 = vunpack.c.l.b16 %v1172
    %v1753 = vunpack.c.h.b16 %v1172
    %v1754 = vunpack.c.l.b16 %v1173
    %v1755 = vunpack.c.h.b16 %v1173
    %v1756 = vunpack.c.l.b16 %v1174
    %v1757 = vunpack.c.h.b16 %v1174
    %v1758 = vunpack.c.l.b16 %v1175
    %v1759 = vunpack.c.h.b16 %v1175
    %v1760 = vunpack.c.l.b16 %v1176
    %v1761 = vunpack.c.h.b16 %v1176
    %v1762 = vunpack.c.l.b16 %v1177
    %v1763 = vunpack.c.h.b16 %v1177
    %v1764 = vunpack.c.l.b16 %v1178
    %v1765 = vunpack.c.h.b16 %v1178
    %v1766 = vunpack.c.l.b16 %v1179
    %v1767 = vunpack.c.h.b16 %v1179
    %v1768 = vunpack.c.l.b16 %v1180
    %v1769 = vunpack.c.h.b16 %v1180
    %v1770 = vunpack.c.l.b16 %v1181
    %v1771 = vunpack.c.h.b16 %v1181
    %v1772 = vunpack.c.l.b16 %v1182
    %v1773 = vunpack.c.h.b16 %v1182
    %v1774 = vunpack.c.l.b16 %v1183
    %v1775 = vunpack.c.h.b16 %v1183
    %v1776 = vunpack.c.l.b16 %v1184
    %v1777 = vunpack.c.h.b16 %v1184
    %v1778 = vunpack.c.l.b16 %v1185
    %v1779 = vunpack.c.h.b16 %v1185
    %v1780 = vunpack.c.l.b16 %v1186
    %v1781 = vunpack.c.h.b16 %v1186
    %v1782 = vunpack.c.l.b16 %v1187
    %v1783 = vunpack.c.h.b16 %v1187
    %v1784 = vunpack.c.l.b16 %v1188
    %v1785 = vunpack.c.h.b16 %v1188
    %v1786 = vunpack.c.l.b16 %v1189
    %v1787 = vunpack.c.h.b16 %v1189
    %v1788 = vunpack.c.l.b16 %v1190
    %v1789 = vunpack.c.h.b16 %v1190
    %v1790 = vunpack.c.l.b16 %v1191
    %v1791 = vunpack.c.h.b16 %v1191
    %v1792 = vunpack.c.l.b16 %v1192
    %v1793 = vunpack.c.h.b16 %v1192
    %v1794 = vunpack.c.l.b16 %v1193
    %v1795 = vunpack.c.h.b16 %v1193
    %v1796 = vunpack.c.l.b16 %v1194
    %v1797 = vunpack.c.h.b16 %v1194
    %v1798 = vunpack.c.l.b16 %v1195
    %v1799 = vunpack.c.h.b16 %v1195
    %v1800 = vunpack.c.l.b16 %v1196
    %v1801 = vunpack.c.h.b16 %v1196
    %v1802 = vunpack.c.l.b16 %v1197
    %v1803 = vunpack.c.h.b16 %v1197
    %v1804 = vunpack.c.l.b16 %v1198
    %v1805 = vunpack.c.h.b16 %v1198
    %v1806 = vunpack.c.l.b16 %v1199
    %v1807 = vunpack.c.h.b16 %v1199
    %v1808 = vunpack.c.l.b16 %v1200
    %v1809 = vunpack.c.h.b16 %v1200
    %v1810 = vunpack.c.l.b16 %v1201
    %v1811 = vunpack.c.h.b16 %v1201
    %v1812 = vunpack.c.l.b16 %v1202
    %v1813 = vunpack.c.h.b16 %v1202
    %v1814 = vunpack.c.l.b16 %v1203
    %v1815 = vunpack.c.h.b16 %v1203
    %v1816 = vunpack.c.l.b16 %v1204
    %v1817 = vunpack.c.h.b16 %v1204
    %v1818 = vunpack.c.l.b16 %v1205
    %v1819 = vunpack.c.h.b16 %v1205
    %v1820 = vunpack.c.l.b16 %v1206
    %v1821 = vunpack.c.h.b16 %v1206
    %v1822 = vunpack.c.l.b16 %v1207
    %v1823 = vunpack.c.h.b16 %v1207
    %v1824 = vunpack.c.l.b16 %v1208
    %v1825 = vunpack.c.h.b16 %v1208
    %v1826 = vunpack.c.l.b16 %v1209
    %v1827 = vunpack.c.h.b16 %v1209
    %v1828 = vunpack.c.l.b16 %v1210
    %v1829 = vunpack.c.h.b16 %v1210
    %v1830 = vunpack.c.l.b16 %v1211
    %v1831 = vunpack.c.h.b16 %v1211
    %v1832 = vunpack.c.l.b16 %v1212
    %v1833 = vunpack.c.h.b16 %v1212
    %v1834 = vunpack.c.l.b16 %v1213
    %v1835 = vunpack.c.h.b16 %v1213
    %v1836 = vunpack.c.l.b16 %v1214
    %v1837 = vunpack.c.h.b16 %v1214
    %v1838 = vunpack.c.l.b16 %v1215
    %v1839 = vunpack.c.h.b16 %v1215
    %v1840 = vunpack.c.l.b16 %v1216
    %v1841 = vunpack.c.h.b16 %v1216
    %v1842 = vunpack.c.l.b16 %v1217
    %v1843 = vunpack.c.h.b16 %v1217
    %v1844 = vunpack.c.l.b16 %v1218
    %v1845 = vunpack.c.h.b16 %v1218
    %v1846 = vunpack.c.l.b16 %v1219
    %v1847 = vunpack.c.h.b16 %v1219
    %v1848 = vunpack.c.l.b16 %v1220
    %v1849 = vunpack.c.h.b16 %v1220
    %v1850 = vunpack.c.l.b16 %v1221
    %v1851 = vunpack.c.h.b16 %v1221
    %v1852 = vunpack.c.l.b16 %v1222
    %v1853 = vunpack.c.h.b16 %v1222
    %v1854 = vunpack.c.l.b16 %v1223
    %v1855 = vunpack.c.h.b16 %v1223
    %v1856 = vunpack.c.l.b16 %v1224
    %v1857 = vunpack.c.h.b16 %v1224
    %v1858 = vunpack.c.l.b16 %v1225
    %v1859 = vunpack.c.h.b16 %v1225
    %v1860 = vunpack.c.l.b16 %v1226
    %v1861 = vunpack.c.h.b16 %v1226
    %v1862 = vunpack.c.l.b16 %v1227
    %v1863 = vunpack.c.h.b16 %v1227
    %v1864 = vunpack.c.l.b16 %v1228
    %v1865 = vunpack.c.h.b16 %v1228
    %v1866 = vunpack.c.l.b16 %v1229
    %v1867 = vunpack.c.h.b16 %v1229
    %v1868 = vunpack.c.l.b16 %v1230
    %v1869 = vunpack.c.h.b16 %v1230
    %v1870 = vunpack.c.l.b16 %v1231
    %v1871 = vunpack.c.h.b16 %v1231
    %v1872 = vunpack.c.l.b16 %v1232
    %v1873 = vunpack.c.h.b16 %v1232
    %v1874 = vunpack.c.l.b16 %v1233
    %v1875 = vunpack.c.h.b16 %v1233
    %v1876 = vpack.c.b16 %v1504, %v1492
    %v1877 = vpack.c.b16 %v1505, %v1493
    %v1878 = vpack.c.b16 %v1506, %v1494
    %v1879 = vpack.c.b16 %v1507, %v1495
    %v1880 = vpack.c.b16 %v1508, %v1496
    %v1881 = vpack.c.b16 %v1509, %v1497
    %v1882 = vpack.c.b16 %v1510, %v1498
    %v1883 = vpack.c.b16 %v1511, %v1499
    %v1884 = vpack.c.b16 %v1512, %v1500
    %v1885 = vpack.c.b16 %v1513, %v1501
    %v1886 = vpack.c.b16 %v1514, %v1502
    %v1887 = vpack.c.b16 %v1515, %v1503
    %v1888 = vpack.c.b16 %v1528, %v1516
    %v1889 = vpack.c.b16 %v1529, %v1517
    %v1890 = vpack.c.b16 %v1530, %v1518
    %v1891 = vpack.c.b16 %v1531, %v1519
    %v1892 = vpack.c.b16 %v1532, %v1520
    %v1893 = vpack.c.b16 %v1533, %v1521
    %v1894 = vpack.c.b16 %v1534, %v1522
    %v1895 = vpack.c.b16 %v1535, %v1523
    %v1896 = vpack.c.b16 %v1536, %v1524
    %v1897 = vpack.c.b16 %v1537, %v1525
    %v1898 = vpack.c.b16 %v1538, %v1526
    %v1899 = vpack.c.b16 %v1539, %v1527
    %v1900 = vpack.c.b16 %v1552, %v1540
    %v1901 = vpack.c.b16 %v1553, %v1541
    %v1902 = vpack.c.b16 %v1554, %v1542
    %v1903 = vpack.c.b16 %v1555, %v1543
    %v1904 = vpack.c.b16 %v1556, %v1544
    %v1905 = vpack.c.b16 %v1557, %v1545
    %v1906 = vpack.c.b16 %v1558, %v1546
    %v1907 = vpack.c.b16 %v1559, %v1547
    %v1908 = vpack.c.b16 %v1560, %v1548
    %v1909 = vpack.c.b16 %v1561, %v1549
    %v1910 = vpack.c.b16 %v1562, %v1550
    %v1911 = vpack.c.b16 %v1563, %v1551
    %v1912 = vpack.c.b16 %v1576, %v1564
    %v1913 = vpack.c.b16 %v1577, %v1565
    %v1914 = vpack.c.b16 %v1578, %v1566
    %v1915 = vpack.c.b16 %v1579, %v1567
    %v1916 = vpack.c.b16 %v1580, %v1568
    %v1917 = vpack.c.b16 %v1581, %v1569
    %v1918 = vpack.c.b16 %v1582, %v1570
    %v1919 = vpack.c.b16 %v1583, %v1571
    %v1920 = vpack.c.b16 %v1584, %v1572
    %v1921 = vpack.c.b16 %v1585, %v1573
    %v1922 = vpack.c.b16 %v1586, %v1574
    %v1923 = vpack.c.b16 %v1587, %v1575
    %v1924 = vpack.c.b16 %v1600, %v1588
    %v1925 = vpack.c.b16 %v1601, %v1589
    %v1926 = vpack.c.b16 %v1602, %v1590
    %v1927 = vpack.c.b16 %v1603, %v1591
    %v1928 = vpack.c.b16 %v1604, %v1592
    %v1929 = vpack.c.b16 %v1605, %v1593
    %v1930 = vpack.c.b16 %v1606, %v1594
    %v1931 = vpack.c.b16 %v1607, %v1595
    %v1932 = vpack.c.b16 %v1608, %v1596
    %v1933 = vpack.c.b16 %v1609, %v1597
    %v1934 = vpack.c.b16 %v1610, %v1598
    %v1935 = vpack.c.b16 %v1611, %v1599
    %v1936 = vpack.c.b16 %v1624, %v1612
    %v1937 = vpack.c.b16 %v1625, %v1613
    %v1938 = vpack.c.b16 %v1626, %v1614
    %v1939 = vpack.c.b16 %v1627, %v1615
    %v1940 = vpack.c.b16 %v1628, %v1616
    %v1941 = vpack.c.b16 %v1629, %v1617
    %v1942 = vpack.c.b16 %v1630, %v1618
    %v1943 = vpack.c.b16 %v1631, %v1619
    %v1944 = vpack.c.b16 %v1632, %v1620
    %v1945 = vpack.c.b16 %v1633, %v1621
    %v1946 = vpack.c.b16 %v1634, %v1622
    %v1947 = vpack.c.b16 %v1635, %v1623
    %v1948 = vpack.c.b16 %v1648, %v1636
    %v1949 = vpack.c.b16 %v1649, %v1637
    %v1950 = vpack.c.b16 %v1650, %v1638
    %v1951 = vpack.c.b16 %v1651, %v1639
    %v1952 = vpack.c.b16 %v1652, %v1640
    %v1953 = vpack.c.b16 %v1653, %v1641
    %v1954 = vpack.c.b16 %v1654, %v1642
    %v1955 = vpack.c.b16 %v1655, %v1643
    %v1956 = vpack.c.b16 %v1656, %v1644
    %v1957 = vpack.c.b16 %v1657, %v1645
    %v1958 = vpack.c.b16 %v1658, %v1646
    %v1959 = vpack.c.b16 %v1659, %v1647
    %v1960 = vpack.c.b16 %v1672, %v1660
    %v1961 = vpack.c.b16 %v1673, %v1661
    %v1962 = vpack.c.b16 %v1674, %v1662
    %v1963 = vpack.c.b16 %v1675, %v1663
    %v1964 = vpack.c.b16 %v1676, %v1664
    %v1965 = vpack.c.b16 %v1677, %v1665
    %v1966 = vpack.c.b16 %v1678, %v1666
    %v1967 = vpack.c.b16 %v1679, %v1667
    %v1968 = vpack.c.b16 %v1680, %v1668
    %v1969 = vpack.c.b16 %v1681, %v1669
    %v1970 = vpack.c.b16 %v1682, %v1670
    %v1971 = vpack.c.b16 %v1683, %v1671
    %v1972 = vpack.c.b16 %v1696, %v1684
    %v1973 = vpack.c.b16 %v1697, %v1685
    %v1974 = vpack.c.b16 %v1698, %v1686
    %v1975 = vpack.c.b16 %v1699, %v1687
    %v1976 = vpack.c.b16 %v1700, %v1688
    %v1977 = vpack.c.b16 %v1701, %v1689
    %v1978 = vpack.c.b16 %v1702, %v1690
    %v1979 = vpack.c.b16 %v1703, %v1691
    %v1980 = vpack.c.b16 %v1704, %v1692
    %v1981 = vpack.c.b16 %v1705, %v1693
    %v1982 = vpack.c.b16 %v1706, %v1694
    %v1983 = vpack.c.b16 %v1707, %v1695
    %v1984 = vpack.c.b16 %v1720, %v1708
    %v1985 = vpack.c.b16 %v1721, %v1709
    %v1986 = vpack.c.b16 %v1722, %v1710
    %v1987 = vpack.c.b16 %v1723, %v1711
    %v1988 = vpack.c.b16 %v1724, %v1712
    %v1989 = vpack.c.b16 %v1725, %v1713
    %v1990 = vpack.c.b16 %v1726, %v1714
    %v1991 = vpack.c.b16 %v1727, %v1715
    %v1992 = vpack.c.b16 %v1728, %v1716
    %v1993 = vpack.c.b16 %v1729, %v1717
    %v1994 = vpack.c.b16 %v1730, %v1718
    %v1995 = vpack.c.b16 %v1731, %v1719
    %v1996 = vpack.c.b16 %v1744, %v1732
    %v1997 = vpack.c.b16 %v1745, %v1733
    %v1998 = vpack.c.b16 %v1746, %v1734
    %v1999 = vpack.c.b16 %v1747, %v1735
    %v2000 = vpack.c.b16 %v1748, %v1736
    %v2001 = vpack.c.b16 %v1749, %v1737
    %v2002 = vpack.c.b16 %v1750, %v1738
    %v2003 = vpack.c.b16 %v1751, %v1739
    %v2004 = vpack.c.b16 %v1752, %v1740
    %v2005 = vpack.c.b16 %v1753, %v1741
    %v2006 = vpack.c.b16 %v1754, %v1742
    %v2007 = vpack.c.b16 %v1755, %v1743
    %v2008 = vpack.c.b16 %v1768, %v1756
    %v2009 = vpack.c.b16 %v1769, %v1757
    %v2010 = vpack.c.b16 %v1770, %v1758
    %v2011 = vpack.c.b16 %v1771, %v1759
    %v2012 = vpack.c.b16 %v1772, %v1760
    %v2013 = vpack.c.b16 %v1773, %v1761
    %v2014 = vpack.c.b16 %v1774, %v1762
    %v2015 = vpack.c.b16 %v1775, %v1763
    %v2016 = vpack.c.b16 %v1776, %v1764
    %v2017 = vpack.c.b16 %v1777, %v1765
    %v2018 = vpack.c.b16 %v1778, %v1766
    %v2019 = vpack.c.b16 %v1779, %v1767
    %v2020 = vpack.c.b16 %v1792, %v1780
    %v2021 = vpack.c.b16 %v1793, %v1781
    %v2022 = vpack.c.b16 %v1794, %v1782
    %v2023 = vpack.c.b16 %v1795, %v1783
    %v2024 = vpack.c.b16 %v1796, %v1784
    %v2025 = vpack.c.b16 %v1797, %v1785
    %v2026 = vpack.c.b16 %v1798, %v1786
    %v2027 = vpack.c.b16 %v1799, %v1787
    %v2028 = vpack.c.b16 %v1800, %v1788
    %v2029 = vpack.c.b16 %v1801, %v1789
    %v2030 = vpack.c.b16 %v1802, %v1790
    %v2031 = vpack.c.b16 %v1803, %v1791
    %v2032 = vpack.c.b16 %v1816, %v1804
    %v2033 = vpack.c.b16 %v1817, %v1805
    %v2034 = vpack.c.b16 %v1818, %v1806
    %v2035 = vpack.c.b16 %v1819, %v1807
    %v2036 = vpack.c.b16 %v1820, %v1808
    %v2037 = vpack.c.b16 %v1821, %v1809
    %v2038 = vpack.c.b16 %v1822, %v1810
    %v2039 = vpack.c.b16 %v1823, %v1811
    %v2040 = vpack.c.b16 %v1824, %v1812
    %v2041 = vpack.c.b16 %v1825, %v1813
    %v2042 = vpack.c.b16 %v1826, %v1814
    %v2043 = vpack.c.b16 %v1827, %v1815
    %v2044 = vpack.c.b16 %v1840, %v1828
    %v2045 = vpack.c.b16 %v1841, %v1829
    %v2046 = vpack.c.b16 %v1842, %v1830
    %v2047 = vpack.c.b16 %v1843, %v1831
    %v2048 = vpack.c.b16 %v1844, %v1832
    %v2049 = vpack.c.b16 %v1845, %v1833
    %v2050 = vpack.c.b16 %v1846, %v1834
    %v2051 = vpack.c.b16 %v1847, %v1835
    %v2052 = vpack.c.b16 %v1848, %v1836
    %v2053 = vpack.c.b16 %v1849, %v1837
    %v2054 = vpack.c.b16 %v1850, %v1838
    %v2055 = vpack.c.b16 %v1851, %v1839
    %v2056 = vpack.c.b16 %v1864, %v1852
    %v2057 = vpack.c.b16 %v1865, %v1853
    %v2058 = vpack.c.b16 %v1866, %v1854
    %v2059 = vpack.c.b16 %v1867, %v1855
    %v2060 = vpack.c.b16 %v1868, %v1856
    %v2061 = vpack.c.b16 %v1869, %v1857
    %v2062 = vpack.c.b16 %v1870, %v1858
    %v2063 = vpack.c.b16 %v1871, %v1859
    %v2064 = vpack.c.b16 %v1872, %v1860
    %v2065 = vpack.c.b16 %v1873, %v1861
    %v2066 = vpack.c.b16 %v1874, %v1862
    %v2067 = vpack.c.b16 %v1875, %v1863
    %2260 = vmatprep.subr.bf16.mxu0 %v1877
    %2261 = vmatpush1.bf16.msra.mxu0 %v1876
    %2262 = vmatprep.subr.bf16.mxu0 %v1889
    %2263 = vmatpush1.bf16.msra.mxu0 %v1888
    %2264 = vmatprep.subr.bf16.mxu0 %v1901
    %2265 = vmatpush1.bf16.msra.mxu0 %v1900
    %2266 = vmatprep.subr.bf16.mxu0 %v1913
    %2267 = vmatpush1.bf16.msra.mxu0 %v1912
    %2268 = vmatprep.subr.bf16.mxu0 %v1925
    %2269 = vmatpush1.bf16.msra.mxu0 %v1924
    %2270 = vmatprep.subr.bf16.mxu0 %v1937
    %2271 = vmatpush1.bf16.msra.mxu0 %v1936
    %2272 = vmatprep.subr.bf16.mxu0 %v1949
    %2273 = vmatpush1.bf16.msra.mxu0 %v1948
    %2274 = vmatprep.subr.bf16.mxu0 %v1961
    %2275 = vmatpush1.bf16.msra.mxu0 %v1960
    %2276 = vmatprep.subr.bf16.mxu0 %v1973
    %2277 = vmatpush1.bf16.msra.mxu0 %v1972
    %2278 = vmatprep.subr.bf16.mxu0 %v1985
    %2279 = vmatpush1.bf16.msra.mxu0 %v1984
    %2280 = vmatprep.subr.bf16.mxu0 %v1997
    %2281 = vmatpush1.bf16.msra.mxu0 %v1996
    %2282 = vmatprep.subr.bf16.mxu0 %v2009
    %2283 = vmatpush1.bf16.msra.mxu0 %v2008
    %2284 = vmatprep.subr.bf16.mxu0 %v2021
    %2285 = vmatpush1.bf16.msra.mxu0 %v2020
    %2286 = vmatprep.subr.bf16.mxu0 %v2033
    %2287 = vmatpush1.bf16.msra.mxu0 %v2032
    %2288 = vmatprep.subr.bf16.mxu0 %v2045
    %2289 = vmatpush1.bf16.msra.mxu0 %v2044
    %2290 = vmatprep.subr.bf16.mxu0 %v2057
    %2291 = vmatpush1.bf16.msra.mxu0 %v2056
    %2292 = vmatprep.mubr.bf16.mxu0 %v1235
    %2293 = vmatmul.mubr.bf16.gmra.mrb[0].mxu0 %v1234
    %v2294 = vpop.f32.mrb[0].mxu0
    %v2295 = vadd.f32 %v1243, %v2294
    %v2296 = vpop.f32.mrb[0].mxu0
    %v2297 = vadd.f32 %v1247, %v2296
    %v2298 = vpop.f32.mrb[0].mxu0
    %v2299 = vpop.f32.mrb[0].mxu0
    %2300 = vdwg.mxu0
    %2301 = vmatprep.subr.bf16.mxu0 %v1879
    %2302 = vmatpush1.bf16.msra.mxu0 %v1878
    %2303 = vmatprep.subr.bf16.mxu0 %v1891
    %2304 = vmatpush1.bf16.msra.mxu0 %v1890
    %2305 = vmatprep.subr.bf16.mxu0 %v1903
    %2306 = vmatpush1.bf16.msra.mxu0 %v1902
    %2307 = vmatprep.subr.bf16.mxu0 %v1915
    %2308 = vmatpush1.bf16.msra.mxu0 %v1914
    %2309 = vmatprep.subr.bf16.mxu0 %v1927
    %2310 = vmatpush1.bf16.msra.mxu0 %v1926
    %2311 = vmatprep.subr.bf16.mxu0 %v1939
    %2312 = vmatpush1.bf16.msra.mxu0 %v1938
    %2313 = vmatprep.subr.bf16.mxu0 %v1951
    %2314 = vmatpush1.bf16.msra.mxu0 %v1950
    %2315 = vmatprep.subr.bf16.mxu0 %v1963
    %2316 = vmatpush1.bf16.msra.mxu0 %v1962
    %2317 = vmatprep.subr.bf16.mxu0 %v1975
    %2318 = vmatpush1.bf16.msra.mxu0 %v1974
    %2319 = vmatprep.subr.bf16.mxu0 %v1987
    %2320 = vmatpush1.bf16.msra.mxu0 %v1986
    %2321 = vmatprep.subr.bf16.mxu0 %v1999
    %2322 = vmatpush1.bf16.msra.mxu0 %v1998
    %2323 = vmatprep.subr.bf16.mxu0 %v2011
    %2324 = vmatpush1.bf16.msra.mxu0 %v2010
    %2325 = vmatprep.subr.bf16.mxu0 %v2023
    %2326 = vmatpush1.bf16.msra.mxu0 %v2022
    %2327 = vmatprep.subr.bf16.mxu0 %v2035
    %2328 = vmatpush1.bf16.msra.mxu0 %v2034
    %2329 = vmatprep.subr.bf16.mxu0 %v2047
    %2330 = vmatpush1.bf16.msra.mxu0 %v2046
    %2331 = vmatprep.subr.bf16.mxu0 %v2059
    %2332 = vmatpush1.bf16.msra.mxu0 %v2058
    %2333 = vmatprep.mubr.bf16.mxu0 %v1235
    %2334 = vmatmul.mubr.bf16.gmra.mrb[0].mxu0 %v1234
    %v2335 = vpop.f32.mrb[0].mxu0
    %v2336 = vadd.f32 %v1251, %v2335
    %v2337 = vpop.f32.mrb[0].mxu0
    %v2338 = vadd.f32 %v1255, %v2337
    %v2339 = vpop.f32.mrb[0].mxu0
    %v2340 = vpop.f32.mrb[0].mxu0
    %2341 = vdwg.mxu0
    %2342 = vmatprep.subr.bf16.mxu0 %v1881
    %2343 = vmatpush1.bf16.msra.mxu0 %v1880
    %2344 = vmatprep.subr.bf16.mxu0 %v1893
    %2345 = vmatpush1.bf16.msra.mxu0 %v1892
    %2346 = vmatprep.subr.bf16.mxu0 %v1905
    %2347 = vmatpush1.bf16.msra.mxu0 %v1904
    %2348 = vmatprep.subr.bf16.mxu0 %v1917
    %2349 = vmatpush1.bf16.msra.mxu0 %v1916
    %2350 = vmatprep.subr.bf16.mxu0 %v1929
    %2351 = vmatpush1.bf16.msra.mxu0 %v1928
    %2352 = vmatprep.subr.bf16.mxu0 %v1941
    %2353 = vmatpush1.bf16.msra.mxu0 %v1940
    %2354 = vmatprep.subr.bf16.mxu0 %v1953
    %2355 = vmatpush1.bf16.msra.mxu0 %v1952
    %2356 = vmatprep.subr.bf16.mxu0 %v1965
    %2357 = vmatpush1.bf16.msra.mxu0 %v1964
    %2358 = vmatprep.subr.bf16.mxu0 %v1977
    %2359 = vmatpush1.bf16.msra.mxu0 %v1976
    %2360 = vmatprep.subr.bf16.mxu0 %v1989
    %2361 = vmatpush1.bf16.msra.mxu0 %v1988
    %2362 = vmatprep.subr.bf16.mxu0 %v2001
    %2363 = vmatpush1.bf16.msra.mxu0 %v2000
    %2364 = vmatprep.subr.bf16.mxu0 %v2013
    %2365 = vmatpush1.bf16.msra.mxu0 %v2012
    %2366 = vmatprep.subr.bf16.mxu0 %v2025
    %2367 = vmatpush1.bf16.msra.mxu0 %v2024
    %2368 = vmatprep.subr.bf16.mxu0 %v2037
    %2369 = vmatpush1.bf16.msra.mxu0 %v2036
    %2370 = vmatprep.subr.bf16.mxu0 %v2049
    %2371 = vmatpush1.bf16.msra.mxu0 %v2048
    %2372 = vmatprep.subr.bf16.mxu0 %v2061
    %2373 = vmatpush1.bf16.msra.mxu0 %v2060
    %2374 = vmatprep.mubr.bf16.mxu0 %v1235
    %2375 = vmatmul.mubr.bf16.gmra.mrb[0].mxu0 %v1234
    %v2376 = vpop.f32.mrb[0].mxu0
    %v2377 = vadd.f32 %v1259, %v2376
    %v2378 = vpop.f32.mrb[0].mxu0
    %v2379 = vadd.f32 %v1263, %v2378
    %v2380 = vpop.f32.mrb[0].mxu0
    %v2381 = vpop.f32.mrb[0].mxu0
    %2382 = vdwg.mxu0
    %2383 = vmatprep.subr.bf16.mxu0 %v1883
    %2384 = vmatpush1.bf16.msra.mxu0 %v1882
    %2385 = vmatprep.subr.bf16.mxu0 %v1895
    %2386 = vmatpush1.bf16.msra.mxu0 %v1894
    %2387 = vmatprep.subr.bf16.mxu0 %v1907
    %2388 = vmatpush1.bf16.msra.mxu0 %v1906
    %2389 = vmatprep.subr.bf16.mxu0 %v1919
    %2390 = vmatpush1.bf16.msra.mxu0 %v1918
    %2391 = vmatprep.subr.bf16.mxu0 %v1931
    %2392 = vmatpush1.bf16.msra.mxu0 %v1930
    %2393 = vmatprep.subr.bf16.mxu0 %v1943
    %2394 = vmatpush1.bf16.msra.mxu0 %v1942
    %2395 = vmatprep.subr.bf16.mxu0 %v1955
    %2396 = vmatpush1.bf16.msra.mxu0 %v1954
    %2397 = vmatprep.subr.bf16.mxu0 %v1967
    %2398 = vmatpush1.bf16.msra.mxu0 %v1966
    %2399 = vmatprep.subr.bf16.mxu0 %v1979
    %2400 = vmatpush1.bf16.msra.mxu0 %v1978
    %2401 = vmatprep.subr.bf16.mxu0 %v1991
    %2402 = vmatpush1.bf16.msra.mxu0 %v1990
    %2403 = vmatprep.subr.bf16.mxu0 %v2003
    %2404 = vmatpush1.bf16.msra.mxu0 %v2002
    %2405 = vmatprep.subr.bf16.mxu0 %v2015
    %2406 = vmatpush1.bf16.msra.mxu0 %v2014
    %2407 = vmatprep.subr.bf16.mxu0 %v2027
    %2408 = vmatpush1.bf16.msra.mxu0 %v2026
    %2409 = vmatprep.subr.bf16.mxu0 %v2039
    %2410 = vmatpush1.bf16.msra.mxu0 %v2038
    %2411 = vmatprep.subr.bf16.mxu0 %v2051
    %2412 = vmatpush1.bf16.msra.mxu0 %v2050
    %2413 = vmatprep.subr.bf16.mxu0 %v2063
    %2414 = vmatpush1.bf16.msra.mxu0 %v2062
    %2415 = vmatprep.mubr.bf16.mxu0 %v1235
    %2416 = vmatmul.mubr.bf16.gmra.mrb[0].mxu0 %v1234
    %v2417 = vpop.f32.mrb[0].mxu0
    %v2418 = vadd.f32 %v1267, %v2417
    %v2419 = vpop.f32.mrb[0].mxu0
    %v2420 = vadd.f32 %v1271, %v2419
    %v2421 = vpop.f32.mrb[0].mxu0
    %v2422 = vpop.f32.mrb[0].mxu0
    %2423 = vdwg.mxu0
    %2424 = vmatprep.subr.bf16.mxu0 %v1885
    %2425 = vmatpush1.bf16.msra.mxu0 %v1884
    %2426 = vmatprep.subr.bf16.mxu0 %v1897
    %2427 = vmatpush1.bf16.msra.mxu0 %v1896
    %2428 = vmatprep.subr.bf16.mxu0 %v1909
    %2429 = vmatpush1.bf16.msra.mxu0 %v1908
    %2430 = vmatprep.subr.bf16.mxu0 %v1921
    %2431 = vmatpush1.bf16.msra.mxu0 %v1920
    %2432 = vmatprep.subr.bf16.mxu0 %v1933
    %2433 = vmatpush1.bf16.msra.mxu0 %v1932
    %2434 = vmatprep.subr.bf16.mxu0 %v1945
    %2435 = vmatpush1.bf16.msra.mxu0 %v1944
    %2436 = vmatprep.subr.bf16.mxu0 %v1957
    %2437 = vmatpush1.bf16.msra.mxu0 %v1956
    %2438 = vmatprep.subr.bf16.mxu0 %v1969
    %2439 = vmatpush1.bf16.msra.mxu0 %v1968
    %2440 = vmatprep.subr.bf16.mxu0 %v1981
    %2441 = vmatpush1.bf16.msra.mxu0 %v1980
    %2442 = vmatprep.subr.bf16.mxu0 %v1993
    %2443 = vmatpush1.bf16.msra.mxu0 %v1992
    %2444 = vmatprep.subr.bf16.mxu0 %v2005
    %2445 = vmatpush1.bf16.msra.mxu0 %v2004
    %2446 = vmatprep.subr.bf16.mxu0 %v2017
    %2447 = vmatpush1.bf16.msra.mxu0 %v2016
    %2448 = vmatprep.subr.bf16.mxu0 %v2029
    %2449 = vmatpush1.bf16.msra.mxu0 %v2028
    %2450 = vmatprep.subr.bf16.mxu0 %v2041
    %2451 = vmatpush1.bf16.msra.mxu0 %v2040
    %2452 = vmatprep.subr.bf16.mxu0 %v2053
    %2453 = vmatpush1.bf16.msra.mxu0 %v2052
    %2454 = vmatprep.subr.bf16.mxu0 %v2065
    %2455 = vmatpush1.bf16.msra.mxu0 %v2064
    %2456 = vmatprep.mubr.bf16.mxu0 %v1235
    %2457 = vmatmul.mubr.bf16.gmra.mrb[0].mxu0 %v1234
    %v2458 = vpop.f32.mrb[0].mxu0
    %v2459 = vadd.f32 %v1275, %v2458
    %v2460 = vpop.f32.mrb[0].mxu0
    %v2461 = vadd.f32 %v1279, %v2460
    %v2462 = vpop.f32.mrb[0].mxu0
    %v2463 = vpop.f32.mrb[0].mxu0
    %2464 = vdwg.mxu0
    %2465 = vmatprep.subr.bf16.mxu0 %v1887
    %2466 = vmatpush1.bf16.msra.mxu0 %v1886
    %2467 = vmatprep.subr.bf16.mxu0 %v1899
    %2468 = vmatpush1.bf16.msra.mxu0 %v1898
    %2469 = vmatprep.subr.bf16.mxu0 %v1911
    %2470 = vmatpush1.bf16.msra.mxu0 %v1910
    %2471 = vmatprep.subr.bf16.mxu0 %v1923
    %2472 = vmatpush1.bf16.msra.mxu0 %v1922
    %2473 = vmatprep.subr.bf16.mxu0 %v1935
    %2474 = vmatpush1.bf16.msra.mxu0 %v1934
    %2475 = vmatprep.subr.bf16.mxu0 %v1947
    %2476 = vmatpush1.bf16.msra.mxu0 %v1946
    %2477 = vmatprep.subr.bf16.mxu0 %v1959
    %2478 = vmatpush1.bf16.msra.mxu0 %v1958
    %2479 = vmatprep.subr.bf16.mxu0 %v1971
    %2480 = vmatpush1.bf16.msra.mxu0 %v1970
    %2481 = vmatprep.subr.bf16.mxu0 %v1983
    %2482 = vmatpush1.bf16.msra.mxu0 %v1982
    %2483 = vmatprep.subr.bf16.mxu0 %v1995
    %2484 = vmatpush1.bf16.msra.mxu0 %v1994
    %2485 = vmatprep.subr.bf16.mxu0 %v2007
    %2486 = vmatpush1.bf16.msra.mxu0 %v2006
    %2487 = vmatprep.subr.bf16.mxu0 %v2019
    %2488 = vmatpush1.bf16.msra.mxu0 %v2018
    %2489 = vmatprep.subr.bf16.mxu0 %v2031
    %2490 = vmatpush1.bf16.msra.mxu0 %v2030
    %2491 = vmatprep.subr.bf16.mxu0 %v2043
    %2492 = vmatpush1.bf16.msra.mxu0 %v2042
    %2493 = vmatprep.subr.bf16.mxu0 %v2055
    %2494 = vmatpush1.bf16.msra.mxu0 %v2054
    %2495 = vmatprep.subr.bf16.mxu0 %v2067
    %2496 = vmatpush1.bf16.msra.mxu0 %v2066
    %2497 = vmatprep.mubr.bf16.mxu0 %v1235
    %2498 = vmatmul.mubr.bf16.gmra.mrb[0].mxu0 %v1234
    %v2499 = vpop.f32.mrb[0].mxu0
    %v2500 = vadd.f32 %v1283, %v2499
    %v2501 = vpop.f32.mrb[0].mxu0
    %v2502 = vadd.f32 %v1287, %v2501
    %v2503 = vpop.f32.mrb[0].mxu0
    %v2504 = vpop.f32.mrb[0].mxu0
    %2505 = vdwg.mxu0
    %2506 = vst [vmem:[#allocation2] sm:$0xff] %v2295
    %2507 = vst [vmem:[#allocation2 + $0x8] sm:$0xff] %v2297
    %2508 = vst [vmem:[#allocation2 + $0x10] sm:$0xff] %v2336
    %2509 = vst [vmem:[#allocation2 + $0x18] sm:$0xff] %v2338
    %2510 = vst [vmem:[#allocation2 + $0x20] sm:$0xff] %v2377
    %2511 = vst [vmem:[#allocation2 + $0x28] sm:$0xff] %v2379
    %2512 = vst [vmem:[#allocation2 + $0x30] sm:$0xff] %v2418
    %2513 = vst [vmem:[#allocation2 + $0x38] sm:$0xff] %v2420
    %2514 = vst [vmem:[#allocation2 + $0x40] sm:$0xff] %v2459
    %2515 = vst [vmem:[#allocation2 + $0x48] sm:$0xff] %v2461
    %2516 = vst [vmem:[#allocation2 + $0x50] sm:$0xff] %v2500
    %2517 = vst [vmem:[#allocation2 + $0x58] sm:$0xff] %v2502
    %v2518 = vld [vmem:[#allocation2] sm:$0xff]
    %s2519 = sadd.s32 0, 128
    %s2520 = sshra.s32 %s2519, 7
    %s2521 = sand.u32 %s2519, 127
    %s2522 = smul.addr %s2520, 8
    %s2523 = scalar_lea.vmem [#allocation2], %s2522
    %v2524 = vld [vmem:[%s2523] sm:$0xff]
    %v2525 = vld [vmem:[#allocation20] sm:$0xf]
    %v2526 = vld [vmem:[#allocation20 + $0x4] sm:$0xf]
    %v2527 = vld [vmem:[#allocation20 + $0x8] sm:$0xf]
    %v2528 = vld [vmem:[#allocation20 + $0xc] sm:$0xf]
    %v2529 = vld [vmem:[#allocation20 + $0x10] sm:$0xf]
    %v2530 = vld [vmem:[#allocation20 + $0x14] sm:$0xf]
    %v2531 = vld [vmem:[#allocation20 + $0x18] sm:$0xf]
    %v2532 = vld [vmem:[#allocation20 + $0x1c] sm:$0xf]
    %v2533 = vld [vmem:[#allocation20 + $0x20] sm:$0xf]
    %v2534 = vld [vmem:[#allocation20 + $0x24] sm:$0xf]
    %v2535 = vld [vmem:[#allocation20 + $0x28] sm:$0xf]
    %v2536 = vld [vmem:[#allocation20 + $0x2c] sm:$0xf]
    %v2537 = vld [vmem:[#allocation20 + $0x30] sm:$0xf]
    %v2538 = vld [vmem:[#allocation20 + $0x34] sm:$0xf]
    %v2539 = vld [vmem:[#allocation20 + $0x38] sm:$0xf]
    %v2540 = vld [vmem:[#allocation20 + $0x3c] sm:$0xf]
    %v2541 = vpack.c.bf16 %v778, %v778
    %v2542 = vld [vmem:[#allocation21] sm:$0x1]
    %v2544 = vlaneseq
    %v2545 = vshrl.u32 %v2544, 7
    %v2546 = vsub.s32 0, %v2545
    %v2547 = vrot.slane %v2542, %v2546
    %v2565 = vunpack.c.l.b16 %v2525
    %v2566 = vunpack.c.l.b16 %v2526
    %v2567 = vunpack.c.l.b16 %v2527
    %v2568 = vunpack.c.l.b16 %v2528
    %v2569 = vunpack.c.l.b16 %v2529
    %v2570 = vunpack.c.l.b16 %v2530
    %v2571 = vunpack.c.l.b16 %v2531
    %v2572 = vunpack.c.l.b16 %v2532
    %v2573 = vunpack.c.l.b16 %v2533
    %v2574 = vunpack.c.l.b16 %v2534
    %v2575 = vunpack.c.l.b16 %v2535
    %v2576 = vunpack.c.l.b16 %v2536
    %v2577 = vunpack.c.l.b16 %v2537
    %v2578 = vunpack.c.l.b16 %v2538
    %v2579 = vunpack.c.l.b16 %v2539
    %v2580 = vunpack.c.l.b16 %v2540
    %v2581 = vpack.c.b16 %v2566, %v2565
    %v2582 = vpack.c.b16 %v2568, %v2567
    %v2583 = vpack.c.b16 %v2570, %v2569
    %v2584 = vpack.c.b16 %v2572, %v2571
    %v2585 = vpack.c.b16 %v2574, %v2573
    %v2586 = vpack.c.b16 %v2576, %v2575
    %v2587 = vpack.c.b16 %v2578, %v2577
    %v2588 = vpack.c.b16 %v2580, %v2579
    %2597 = vmatprep.subr.bf16.mxu0 0
    %2598 = vmatpush1.bf16.msra.mxu0 %v2581
    %2599 = vmatprep.subr.bf16.mxu0 0
    %2600 = vmatpush1.bf16.msra.mxu0 %v2582
    %2601 = vmatprep.subr.bf16.mxu0 0
    %2602 = vmatpush1.bf16.msra.mxu0 %v2583
    %2603 = vmatprep.subr.bf16.mxu0 0
    %2604 = vmatpush1.bf16.msra.mxu0 %v2584
    %2605 = vmatprep.subr.bf16.mxu0 0
    %2606 = vmatpush1.bf16.msra.mxu0 %v2585
    %2607 = vmatprep.subr.bf16.mxu0 0
    %2608 = vmatpush1.bf16.msra.mxu0 %v2586
    %2609 = vmatprep.subr.bf16.mxu0 0
    %2610 = vmatpush1.bf16.msra.mxu0 %v2587
    %2611 = vmatprep.subr.bf16.mxu0 0
    %2612 = vmatpush1.bf16.msra.mxu0 %v2588
    %2613 = vmatprep.subr.bf16.mxu0 0
    %2614 = vmatpush1.bf16.msra.mxu0 0
    %2615 = vmatprep.subr.bf16.mxu0 0
    %2616 = vmatpush1.bf16.msra.mxu0 0
    %2617 = vmatprep.subr.bf16.mxu0 0
    %2618 = vmatpush1.bf16.msra.mxu0 0
    %2619 = vmatprep.subr.bf16.mxu0 0
    %2620 = vmatpush1.bf16.msra.mxu0 0
    %2621 = vmatprep.subr.bf16.mxu0 0
    %2622 = vmatpush1.bf16.msra.mxu0 0
    %2623 = vmatprep.subr.bf16.mxu0 0
    %2624 = vmatpush1.bf16.msra.mxu0 0
    %2625 = vmatprep.subr.bf16.mxu0 0
    %2626 = vmatpush1.bf16.msra.mxu0 0
    %2627 = vmatprep.subr.bf16.mxu0 0
    %2628 = vmatpush1.bf16.msra.mxu0 0
    %2629 = vmatprep.mubr.bf16.mxu0 0
    %2630 = vmatmul.mubr.bf16.gmra.mrb[0].mxu0 %v2541
    %v2631 = vpop.f32.mrb[0].mxu0
    %v2632 = vadd.f32 %v2547, %v2631
    %v2633 = vpop.f32.mrb[0].mxu0
    %v2634 = vpop.f32.mrb[0].mxu0
    %v2635 = vpop.f32.mrb[0].mxu0
    %2636 = vdwg.mxu0
    %2637 = vadd.xlane.f32.xlu0 %v2632
    %v2638 = vpop.xlane.xlu0 %2637
    %v2639 = vrcp.pop 128.0
    %v2640 = vmul.f32 %v2638, %v2639
    %v2641 = vmul.f32 %v2632, %v2632
    %2642 = vadd.xlane.f32.xlu0 %v2641
    %v2643 = vpop.xlane.xlu0 %2642
    %v2644 = vmul.f32 %v2643, %v2639
    %v2645 = vmul.f32 %v2640, %v2640
    %v2646 = vsub.f32 %v2644, %v2645
    %v2647 = vsub.f32 %v2632, %v2640
    %v2648 = vadd.f32 %v2646, 1e-05
    %v2649 = vrsqrt.pop %v2648
    %v2650 = vmul.f32 %v2647, %v2649
    %v2651 = vmul.f32 %v2518, %v2650
    %v2652 = vadd.f32 %v2651, %v2524
    %v2653 = vmul.f32 %v2652, 0.044715
    %v2654 = vmul.f32 %v2653, %v2652
    %v2655 = vmul.f32 %v2654, %v2652
    %v2656 = vadd.f32 %v2652, %v2655
    %v2657 = vmul.f32 %v2656, 0.7978846
    %v2658 = vmul.f32 %v2652, 0.5
    %v2659 = vtanh.pop %v2657
    %v2660 = vadd.f32 %v2659, 1.0
    %v2661 = vmul.f32 %v2658, %v2660
    %v2662 = vld [vmem:[#allocation23] sm:$0xf]
    %v2663 = vld [vmem:[#allocation23 + $0x4] sm:$0xf]
    %v2664 = vld [vmem:[#allocation23 + $0x8] sm:$0xf]
    %v2665 = vld [vmem:[#allocation23 + $0xc] sm:$0xf]
    %v2666 = vld [vmem:[#allocation23 + $0x10] sm:$0xf]
    %v2667 = vld [vmem:[#allocation23 + $0x14] sm:$0xf]
    %v2668 = vld [vmem:[#allocation23 + $0x18] sm:$0xf]
    %v2669 = vld [vmem:[#allocation23 + $0x1c] sm:$0xf]
    %v2670 = vld [vmem:[#allocation23 + $0x20] sm:$0xf]
    %v2671 = vld [vmem:[#allocation23 + $0x24] sm:$0xf]
    %v2672 = vld [vmem:[#allocation23 + $0x28] sm:$0xf]
    %v2673 = vld [vmem:[#allocation23 + $0x2c] sm:$0xf]
    %v2674 = vld [vmem:[#allocation23 + $0x30] sm:$0xf]
    %v2675 = vld [vmem:[#allocation23 + $0x34] sm:$0xf]
    %v2676 = vld [vmem:[#allocation23 + $0x38] sm:$0xf]
    %v2677 = vld [vmem:[#allocation23 + $0x3c] sm:$0xf]
    %v2678 = vpack.c.bf16 %v2661, %v2661
    %v2679 = vld [vmem:[#allocation24] sm:$0x1]
    %v2681 = vlaneseq
    %v2682 = vshrl.u32 %v2681, 7
    %v2683 = vsub.s32 0, %v2682
    %v2684 = vrot.slane %v2679, %v2683
    %v2702 = vunpack.c.l.b16 %v2662
    %v2703 = vunpack.c.l.b16 %v2663
    %v2704 = vunpack.c.l.b16 %v2664
    %v2705 = vunpack.c.l.b16 %v2665
    %v2706 = vunpack.c.l.b16 %v2666
    %v2707 = vunpack.c.l.b16 %v2667
    %v2708 = vunpack.c.l.b16 %v2668
    %v2709 = vunpack.c.l.b16 %v2669
    %v2710 = vunpack.c.l.b16 %v2670
    %v2711 = vunpack.c.l.b16 %v2671
    %v2712 = vunpack.c.l.b16 %v2672
    %v2713 = vunpack.c.l.b16 %v2673
    %v2714 = vunpack.c.l.b16 %v2674
    %v2715 = vunpack.c.l.b16 %v2675
    %v2716 = vunpack.c.l.b16 %v2676
    %v2717 = vunpack.c.l.b16 %v2677
    %v2718 = vpack.c.b16 %v2703, %v2702
    %v2719 = vpack.c.b16 %v2705, %v2704
    %v2720 = vpack.c.b16 %v2707, %v2706
    %v2721 = vpack.c.b16 %v2709, %v2708
    %v2722 = vpack.c.b16 %v2711, %v2710
    %v2723 = vpack.c.b16 %v2713, %v2712
    %v2724 = vpack.c.b16 %v2715, %v2714
    %v2725 = vpack.c.b16 %v2717, %v2716
    %2734 = vmatprep.subr.bf16.mxu0 0
    %2735 = vmatpush1.bf16.msra.mxu0 %v2718
    %2736 = vmatprep.subr.bf16.mxu0 0
    %2737 = vmatpush1.bf16.msra.mxu0 %v2719
    %2738 = vmatprep.subr.bf16.mxu0 0
    %2739 = vmatpush1.bf16.msra.mxu0 %v2720
    %2740 = vmatprep.subr.bf16.mxu0 0
    %2741 = vmatpush1.bf16.msra.mxu0 %v2721
    %2742 = vmatprep.subr.bf16.mxu0 0
    %2743 = vmatpush1.bf16.msra.mxu0 %v2722
    %2744 = vmatprep.subr.bf16.mxu0 0
    %2745 = vmatpush1.bf16.msra.mxu0 %v2723
    %2746 = vmatprep.subr.bf16.mxu0 0
    %2747 = vmatpush1.bf16.msra.mxu0 %v2724
    %2748 = vmatprep.subr.bf16.mxu0 0
    %2749 = vmatpush1.bf16.msra.mxu0 %v2725
    %2750 = vmatprep.subr.bf16.mxu0 0
    %2751 = vmatpush1.bf16.msra.mxu0 0
    %2752 = vmatprep.subr.bf16.mxu0 0
    %2753 = vmatpush1.bf16.msra.mxu0 0
    %2754 = vmatprep.subr.bf16.mxu0 0
    %2755 = vmatpush1.bf16.msra.mxu0 0
    %2756 = vmatprep.subr.bf16.mxu0 0
    %2757 = vmatpush1.bf16.msra.mxu0 0
    %2758 = vmatprep.subr.bf16.mxu0 0
    %2759 = vmatpush1.bf16.msra.mxu0 0
    %2760 = vmatprep.subr.bf16.mxu0 0
    %2761 = vmatpush1.bf16.msra.mxu0 0
    %2762 = vmatprep.subr.bf16.mxu0 0
    %2763 = vmatpush1.bf16.msra.mxu0 0
    %2764 = vmatprep.subr.bf16.mxu0 0
    %2765 = vmatpush1.bf16.msra.mxu0 0
    %2766 = vmatprep.mubr.bf16.mxu0 0
    %2767 = vmatmul.mubr.bf16.gmra.mrb[0].mxu0 %v2678
    %v2768 = vpop.f32.mrb[0].mxu0
    %v2769 = vadd.f32 %v2684, %v2768
    %v2770 = vpop.f32.mrb[0].mxu0
    %v2771 = vpop.f32.mrb[0].mxu0
    %v2772 = vpop.f32.mrb[0].mxu0
    %2773 = vdwg.mxu0
    %v2774 = vmul.f32 %v2769, 0.044715
    %v2775 = vmul.f32 %v2774, %v2769
    %v2776 = vmul.f32 %v2775, %v2769
    %v2777 = vadd.f32 %v2769, %v2776
    %v2778 = vmul.f32 %v2777, 0.7978846
    %v2779 = vmul.f32 %v2769, 0.5
    %v2780 = vtanh.pop %v2778
    %v2781 = vadd.f32 %v2780, 1.0
    %v2782 = vmul.f32 %v2779, %v2781
    %s2783 = scalar_lea.vmem [#allocation2], 16
    %v2784 = vld [vmem:[%s2783] sm:$0xff]
    %s2785 = sadd.s32 256, 128
    %s2786 = sshra.s32 %s2785, 7
    %s2787 = sand.u32 %s2785, 127
    %s2788 = smul.addr %s2786, 8
    %s2789 = scalar_lea.vmem [#allocation2], %s2788
    %v2790 = vld [vmem:[%s2789] sm:$0xff]
    %s2791 = scalar_lea.vmem [#allocation20], 64
    %v2792 = vld [vmem:[%s2791] sm:$0xf]
    %v2793 = vld [vmem:[%s2791 + $0x4] sm:$0xf]
    %v2794 = vld [vmem:[%s2791 + $0x8] sm:$0xf]
    %v2795 = vld [vmem:[%s2791 + $0xc] sm:$0xf]
    %v2796 = vld [vmem:[%s2791 + $0x10] sm:$0xf]
    %v2797 = vld [vmem:[%s2791 + $0x14] sm:$0xf]
    %v2798 = vld [vmem:[%s2791 + $0x18] sm:$0xf]
    %v2799 = vld [vmem:[%s2791 + $0x1c] sm:$0xf]
    %v2800 = vld [vmem:[%s2791 + $0x20] sm:$0xf]
    %v2801 = vld [vmem:[%s2791 + $0x24] sm:$0xf]
    %v2802 = vld [vmem:[%s2791 + $0x28] sm:$0xf]
    %v2803 = vld [vmem:[%s2791 + $0x2c] sm:$0xf]
    %v2804 = vld [vmem:[%s2791 + $0x30] sm:$0xf]
    %v2805 = vld [vmem:[%s2791 + $0x34] sm:$0xf]
    %v2806 = vld [vmem:[%s2791 + $0x38] sm:$0xf]
    %v2807 = vld [vmem:[%s2791 + $0x3c] sm:$0xf]
    %v2808 = vpack.c.bf16 %v2782, %v2782
    %s2809 = scalar_lea.vmem [#allocation21], 1
    %v2810 = vld [vmem:[%s2809] sm:$0x1]
    %v2812 = vlaneseq
    %v2813 = vshrl.u32 %v2812, 7
    %v2814 = vsub.s32 0, %v2813
    %v2815 = vrot.slane %v2810, %v2814
    %v2833 = vunpack.c.l.b16 %v2792
    %v2834 = vunpack.c.l.b16 %v2793
    %v2835 = vunpack.c.l.b16 %v2794
    %v2836 = vunpack.c.l.b16 %v2795
    %v2837 = vunpack.c.l.b16 %v2796
    %v2838 = vunpack.c.l.b16 %v2797
    %v2839 = vunpack.c.l.b16 %v2798
    %v2840 = vunpack.c.l.b16 %v2799
    %v2841 = vunpack.c.l.b16 %v2800
    %v2842 = vunpack.c.l.b16 %v2801
    %v2843 = vunpack.c.l.b16 %v2802
    %v2844 = vunpack.c.l.b16 %v2803
    %v2845 = vunpack.c.l.b16 %v2804
    %v2846 = vunpack.c.l.b16 %v2805
    %v2847 = vunpack.c.l.b16 %v2806
    %v2848 = vunpack.c.l.b16 %v2807
    %v2849 = vpack.c.b16 %v2834, %v2833
    %v2850 = vpack.c.b16 %v2836, %v2835
    %v2851 = vpack.c.b16 %v2838, %v2837
    %v2852 = vpack.c.b16 %v2840, %v2839
    %v2853 = vpack.c.b16 %v2842, %v2841
    %v2854 = vpack.c.b16 %v2844, %v2843
    %v2855 = vpack.c.b16 %v2846, %v2845
    %v2856 = vpack.c.b16 %v2848, %v2847
    %2865 = vmatprep.subr.bf16.mxu0 0
    %2866 = vmatpush1.bf16.msra.mxu0 %v2849
    %2867 = vmatprep.subr.bf16.mxu0 0
    %2868 = vmatpush1.bf16.msra.mxu0 %v2850
    %2869 = vmatprep.subr.bf16.mxu0 0
    %2870 = vmatpush1.bf16.msra.mxu0 %v2851
    %2871 = vmatprep.subr.bf16.mxu0 0
    %2872 = vmatpush1.bf16.msra.mxu0 %v2852
    %2873 = vmatprep.subr.bf16.mxu0 0
    %2874 = vmatpush1.bf16.msra.mxu0 %v2853
    %2875 = vmatprep.subr.bf16.mxu0 0
    %2876 = vmatpush1.bf16.msra.mxu0 %v2854
    %2877 = vmatprep.subr.bf16.mxu0 0
    %2878 = vmatpush1.bf16.msra.mxu0 %v2855
    %2879 = vmatprep.subr.bf16.mxu0 0
    %2880 = vmatpush1.bf16.msra.mxu0 %v2856
    %2881 = vmatprep.subr.bf16.mxu0 0
    %2882 = vmatpush1.bf16.msra.mxu0 0
    %2883 = vmatprep.subr.bf16.mxu0 0
    %2884 = vmatpush1.bf16.msra.mxu0 0
    %2885 = vmatprep.subr.bf16.mxu0 0
    %2886 = vmatpush1.bf16.msra.mxu0 0
    %2887 = vmatprep.subr.bf16.mxu0 0
    %2888 = vmatpush1.bf16.msra.mxu0 0
    %2889 = vmatprep.subr.bf16.mxu0 0
    %2890 = vmatpush1.bf16.msra.mxu0 0
    %2891 = vmatprep.subr.bf16.mxu0 0
    %2892 = vmatpush1.bf16.msra.mxu0 0
    %2893 = vmatprep.subr.bf16.mxu0 0
    %2894 = vmatpush1.bf16.msra.mxu0 0
    %2895 = vmatprep.subr.bf16.mxu0 0
    %2896 = vmatpush1.bf16.msra.mxu0 0
    %2897 = vmatprep.mubr.bf16.mxu0 0
    %2898 = vmatmul.mubr.bf16.gmra.mrb[0].mxu0 %v2808
    %v2899 = vpop.f32.mrb[0].mxu0
    %v2900 = vadd.f32 %v2815, %v2899
    %v2901 = vpop.f32.mrb[0].mxu0
    %v2902 = vpop.f32.mrb[0].mxu0
    %v2903 = vpop.f32.mrb[0].mxu0
    %2904 = vdwg.mxu0
    %2905 = vadd.xlane.f32.xlu0 %v2900
    %v2906 = vpop.xlane.xlu0 %2905
    %v2907 = vmul.f32 %v2906, %v2639
    %v2908 = vmul.f32 %v2900, %v2900
    %2909 = vadd.xlane.f32.xlu0 %v2908
    %v2910 = vpop.xlane.xlu0 %2909
    %v2911 = vmul.f32 %v2910, %v2639
    %v2912 = vmul.f32 %v2907, %v2907
    %v2913 = vsub.f32 %v2911, %v2912
    %v2914 = vsub.f32 %v2900, %v2907
    %v2915 = vadd.f32 %v2913, 1e-05
    %v2916 = vrsqrt.pop %v2915
    %v2917 = vmul.f32 %v2914, %v2916
    %v2918 = vmul.f32 %v2784, %v2917
    %v2919 = vadd.f32 %v2918, %v2790
    %v2920 = vmul.f32 %v2919, 0.044715
    %v2921 = vmul.f32 %v2920, %v2919
    %v2922 = vmul.f32 %v2921, %v2919
    %v2923 = vadd.f32 %v2919, %v2922
    %v2924 = vmul.f32 %v2923, 0.7978846
    %v2925 = vmul.f32 %v2919, 0.5
    %v2926 = vtanh.pop %v2924
    %v2927 = vadd.f32 %v2926, 1.0
    %v2928 = vmul.f32 %v2925, %v2927
    %s2929 = scalar_lea.vmem [#allocation23], 64
    %v2930 = vld [vmem:[%s2929] sm:$0xf]
    %v2931 = vld [vmem:[%s2929 + $0x4] sm:$0xf]
    %v2932 = vld [vmem:[%s2929 + $0x8] sm:$0xf]
    %v2933 = vld [vmem:[%s2929 + $0xc] sm:$0xf]
    %v2934 = vld [vmem:[%s2929 + $0x10] sm:$0xf]
    %v2935 = vld [vmem:[%s2929 + $0x14] sm:$0xf]
    %v2936 = vld [vmem:[%s2929 + $0x18] sm:$0xf]
    %v2937 = vld [vmem:[%s2929 + $0x1c] sm:$0xf]
    %v2938 = vld [vmem:[%s2929 + $0x20] sm:$0xf]
    %v2939 = vld [vmem:[%s2929 + $0x24] sm:$0xf]
    %v2940 = vld [vmem:[%s2929 + $0x28] sm:$0xf]
    %v2941 = vld [vmem:[%s2929 + $0x2c] sm:$0xf]
    %v2942 = vld [vmem:[%s2929 + $0x30] sm:$0xf]
    %v2943 = vld [vmem:[%s2929 + $0x34] sm:$0xf]
    %v2944 = vld [vmem:[%s2929 + $0x38] sm:$0xf]
    %v2945 = vld [vmem:[%s2929 + $0x3c] sm:$0xf]
    %v2946 = vpack.c.bf16 %v2928, %v2928
    %s2947 = scalar_lea.vmem [#allocation24], 1
    %v2948 = vld [vmem:[%s2947] sm:$0x1]
    %v2950 = vlaneseq
    %v2951 = vshrl.u32 %v2950, 7
    %v2952 = vsub.s32 0, %v2951
    %v2953 = vrot.slane %v2948, %v2952
    %v2971 = vunpack.c.l.b16 %v2930
    %v2972 = vunpack.c.l.b16 %v2931
    %v2973 = vunpack.c.l.b16 %v2932
    %v2974 = vunpack.c.l.b16 %v2933
    %v2975 = vunpack.c.l.b16 %v2934
    %v2976 = vunpack.c.l.b16 %v2935
    %v2977 = vunpack.c.l.b16 %v2936
    %v2978 = vunpack.c.l.b16 %v2937
    %v2979 = vunpack.c.l.b16 %v2938
    %v2980 = vunpack.c.l.b16 %v2939
    %v2981 = vunpack.c.l.b16 %v2940
    %v2982 = vunpack.c.l.b16 %v2941
    %v2983 = vunpack.c.l.b16 %v2942
    %v2984 = vunpack.c.l.b16 %v2943
    %v2985 = vunpack.c.l.b16 %v2944
    %v2986 = vunpack.c.l.b16 %v2945
    %v2987 = vpack.c.b16 %v2972, %v2971
    %v2988 = vpack.c.b16 %v2974, %v2973
    %v2989 = vpack.c.b16 %v2976, %v2975
    %v2990 = vpack.c.b16 %v2978, %v2977
    %v2991 = vpack.c.b16 %v2980, %v2979
    %v2992 = vpack.c.b16 %v2982, %v2981
    %v2993 = vpack.c.b16 %v2984, %v2983
    %v2994 = vpack.c.b16 %v2986, %v2985
    %3003 = vmatprep.subr.bf16.mxu0 0
    %3004 = vmatpush1.bf16.msra.mxu0 %v2987
    %3005 = vmatprep.subr.bf16.mxu0 0
    %3006 = vmatpush1.bf16.msra.mxu0 %v2988
    %3007 = vmatprep.subr.bf16.mxu0 0
    %3008 = vmatpush1.bf16.msra.mxu0 %v2989
    %3009 = vmatprep.subr.bf16.mxu0 0
    %3010 = vmatpush1.bf16.msra.mxu0 %v2990
    %3011 = vmatprep.subr.bf16.mxu0 0
    %3012 = vmatpush1.bf16.msra.mxu0 %v2991
    %3013 = vmatprep.subr.bf16.mxu0 0
    %3014 = vmatpush1.bf16.msra.mxu0 %v2992
    %3015 = vmatprep.subr.bf16.mxu0 0
    %3016 = vmatpush1.bf16.msra.mxu0 %v2993
    %3017 = vmatprep.subr.bf16.mxu0 0
    %3018 = vmatpush1.bf16.msra.mxu0 %v2994
    %3019 = vmatprep.subr.bf16.mxu0 0
    %3020 = vmatpush1.bf16.msra.mxu0 0
    %3021 = vmatprep.subr.bf16.mxu0 0
    %3022 = vmatpush1.bf16.msra.mxu0 0
    %3023 = vmatprep.subr.bf16.mxu0 0
    %3024 = vmatpush1.bf16.msra.mxu0 0
    %3025 = vmatprep.subr.bf16.mxu0 0
    %3026 = vmatpush1.bf16.msra.mxu0 0
    %3027 = vmatprep.subr.bf16.mxu0 0
    %3028 = vmatpush1.bf16.msra.mxu0 0
    %3029 = vmatprep.subr.bf16.mxu0 0
    %3030 = vmatpush1.bf16.msra.mxu0 0
    %3031 = vmatprep.subr.bf16.mxu0 0
    %3032 = vmatpush1.bf16.msra.mxu0 0
    %3033 = vmatprep.subr.bf16.mxu0 0
    %3034 = vmatpush1.bf16.msra.mxu0 0
    %3035 = vmatprep.mubr.bf16.mxu0 0
    %3036 = vmatmul.mubr.bf16.gmra.mrb[0].mxu0 %v2946
    %v3037 = vpop.f32.mrb[0].mxu0
    %v3038 = vadd.f32 %v2953, %v3037
    %v3039 = vpop.f32.mrb[0].mxu0
    %v3040 = vpop.f32.mrb[0].mxu0
    %v3041 = vpop.f32.mrb[0].mxu0
    %3042 = vdwg.mxu0
    %v3043 = vmul.f32 %v3038, 0.044715
    %v3044 = vmul.f32 %v3043, %v3038
    %v3045 = vmul.f32 %v3044, %v3038
    %v3046 = vadd.f32 %v3038, %v3045
    %v3047 = vmul.f32 %v3046, 0.7978846
    %v3048 = vmul.f32 %v3038, 0.5
    %v3049 = vtanh.pop %v3047
    %v3050 = vadd.f32 %v3049, 1.0
    %v3051 = vmul.f32 %v3048, %v3050
    %s3052 = scalar_lea.vmem [#allocation2], 32
    %v3053 = vld [vmem:[%s3052] sm:$0xff]
    %s3054 = sadd.s32 512, 128
    %s3055 = sshra.s32 %s3054, 7
    %s3056 = sand.u32 %s3054, 127
    %s3057 = smul.addr %s3055, 8
    %s3058 = scalar_lea.vmem [#allocation2], %s3057
    %v3059 = vld [vmem:[%s3058] sm:$0xff]
    %s3060 = scalar_lea.vmem [#allocation20], 128
    %v3061 = vld [vmem:[%s3060] sm:$0xf]
    %v3062 = vld [vmem:[%s3060 + $0x4] sm:$0xf]
    %v3063 = vld [vmem:[%s3060 + $0x8] sm:$0xf]
    %v3064 = vld [vmem:[%s3060 + $0xc] sm:$0xf]
    %v3065 = vld [vmem:[%s3060 + $0x10] sm:$0xf]
    %v3066 = vld [vmem:[%s3060 + $0x14] sm:$0xf]
    %v3067 = vld [vmem:[%s3060 + $0x18] sm:$0xf]
    %v3068 = vld [vmem:[%s3060 + $0x1c] sm:$0xf]
    %v3069 = vld [vmem:[%s3060 + $0x20] sm:$0xf]
    %v3070 = vld [vmem:[%s3060 + $0x24] sm:$0xf]
    %v3071 = vld [vmem:[%s3060 + $0x28] sm:$0xf]
    %v3072 = vld [vmem:[%s3060 + $0x2c] sm:$0xf]
    %v3073 = vld [vmem:[%s3060 + $0x30] sm:$0xf]
    %v3074 = vld [vmem:[%s3060 + $0x34] sm:$0xf]
    %v3075 = vld [vmem:[%s3060 + $0x38] sm:$0xf]
    %v3076 = vld [vmem:[%s3060 + $0x3c] sm:$0xf]
    %v3077 = vpack.c.bf16 %v3051, %v3051
    %s3078 = scalar_lea.vmem [#allocation21], 2
    %v3079 = vld [vmem:[%s3078] sm:$0x1]
    %v3081 = vlaneseq
    %v3082 = vshrl.u32 %v3081, 7
    %v3083 = vsub.s32 0, %v3082
    %v3084 = vrot.slane %v3079, %v3083
    %v3102 = vunpack.c.l.b16 %v3061
    %v3103 = vunpack.c.l.b16 %v3062
    %v3104 = vunpack.c.l.b16 %v3063
    %v3105 = vunpack.c.l.b16 %v3064
    %v3106 = vunpack.c.l.b16 %v3065
    %v3107 = vunpack.c.l.b16 %v3066
    %v3108 = vunpack.c.l.b16 %v3067
    %v3109 = vunpack.c.l.b16 %v3068
    %v3110 = vunpack.c.l.b16 %v3069
    %v3111 = vunpack.c.l.b16 %v3070
    %v3112 = vunpack.c.l.b16 %v3071
    %v3113 = vunpack.c.l.b16 %v3072
    %v3114 = vunpack.c.l.b16 %v3073
    %v3115 = vunpack.c.l.b16 %v3074
    %v3116 = vunpack.c.l.b16 %v3075
    %v3117 = vunpack.c.l.b16 %v3076
    %v3118 = vpack.c.b16 %v3103, %v3102
    %v3119 = vpack.c.b16 %v3105, %v3104
    %v3120 = vpack.c.b16 %v3107, %v3106
    %v3121 = vpack.c.b16 %v3109, %v3108
    %v3122 = vpack.c.b16 %v3111, %v3110
    %v3123 = vpack.c.b16 %v3113, %v3112
    %v3124 = vpack.c.b16 %v3115, %v3114
    %v3125 = vpack.c.b16 %v3117, %v3116
    %3134 = vmatprep.subr.bf16.mxu0 0
    %3135 = vmatpush1.bf16.msra.mxu0 %v3118
    %3136 = vmatprep.subr.bf16.mxu0 0
    %3137 = vmatpush1.bf16.msra.mxu0 %v3119
    %3138 = vmatprep.subr.bf16.mxu0 0
    %3139 = vmatpush1.bf16.msra.mxu0 %v3120
    %3140 = vmatprep.subr.bf16.mxu0 0
    %3141 = vmatpush1.bf16.msra.mxu0 %v3121
    %3142 = vmatprep.subr.bf16.mxu0 0
    %3143 = vmatpush1.bf16.msra.mxu0 %v3122
    %3144 = vmatprep.subr.bf16.mxu0 0
    %3145 = vmatpush1.bf16.msra.mxu0 %v3123
    %3146 = vmatprep.subr.bf16.mxu0 0
    %3147 = vmatpush1.bf16.msra.mxu0 %v3124
    %3148 = vmatprep.subr.bf16.mxu0 0
    %3149 = vmatpush1.bf16.msra.mxu0 %v3125
    %3150 = vmatprep.subr.bf16.mxu0 0
    %3151 = vmatpush1.bf16.msra.mxu0 0
    %3152 = vmatprep.subr.bf16.mxu0 0
    %3153 = vmatpush1.bf16.msra.mxu0 0
    %3154 = vmatprep.subr.bf16.mxu0 0
    %3155 = vmatpush1.bf16.msra.mxu0 0
    %3156 = vmatprep.subr.bf16.mxu0 0
    %3157 = vmatpush1.bf16.msra.mxu0 0
    %3158 = vmatprep.subr.bf16.mxu0 0
    %3159 = vmatpush1.bf16.msra.mxu0 0
    %3160 = vmatprep.subr.bf16.mxu0 0
    %3161 = vmatpush1.bf16.msra.mxu0 0
    %3162 = vmatprep.subr.bf16.mxu0 0
    %3163 = vmatpush1.bf16.msra.mxu0 0
    %3164 = vmatprep.subr.bf16.mxu0 0
    %3165 = vmatpush1.bf16.msra.mxu0 0
    %3166 = vmatprep.mubr.bf16.mxu0 0
    %3167 = vmatmul.mubr.bf16.gmra.mrb[0].mxu0 %v3077
    %v3168 = vpop.f32.mrb[0].mxu0
    %v3169 = vadd.f32 %v3084, %v3168
    %v3170 = vpop.f32.mrb[0].mxu0
    %v3171 = vpop.f32.mrb[0].mxu0
    %v3172 = vpop.f32.mrb[0].mxu0
    %3173 = vdwg.mxu0
    %3174 = vadd.xlane.f32.xlu0 %v3169
    %v3175 = vpop.xlane.xlu0 %3174
    %v3176 = vmul.f32 %v3175, %v2639
    %v3177 = vmul.f32 %v3169, %v3169
    %3178 = vadd.xlane.f32.xlu0 %v3177
    %v3179 = vpop.xlane.xlu0 %3178
    %v3180 = vmul.f32 %v3179, %v2639
    %v3181 = vmul.f32 %v3176, %v3176
    %v3182 = vsub.f32 %v3180, %v3181
    %v3183 = vsub.f32 %v3169, %v3176
    %v3184 = vadd.f32 %v3182, 1e-05
    %v3185 = vrsqrt.pop %v3184
    %v3186 = vmul.f32 %v3183, %v3185
    %v3187 = vmul.f32 %v3053, %v3186
    %v3188 = vadd.f32 %v3187, %v3059
    %v3189 = vmul.f32 %v3188, 0.044715
    %v3190 = vmul.f32 %v3189, %v3188
    %v3191 = vmul.f32 %v3190, %v3188
    %v3192 = vadd.f32 %v3188, %v3191
    %v3193 = vmul.f32 %v3192, 0.7978846
    %v3194 = vmul.f32 %v3188, 0.5
    %v3195 = vtanh.pop %v3193
    %v3196 = vadd.f32 %v3195, 1.0
    %v3197 = vmul.f32 %v3194, %v3196
    %s3198 = scalar_lea.vmem [#allocation23], 128
    %v3199 = vld [vmem:[%s3198] sm:$0xf]
    %v3200 = vld [vmem:[%s3198 + $0x4] sm:$0xf]
    %v3201 = vld [vmem:[%s3198 + $0x8] sm:$0xf]
    %v3202 = vld [vmem:[%s3198 + $0xc] sm:$0xf]
    %v3203 = vld [vmem:[%s3198 + $0x10] sm:$0xf]
    %v3204 = vld [vmem:[%s3198 + $0x14] sm:$0xf]
    %v3205 = vld [vmem:[%s3198 + $0x18] sm:$0xf]
    %v3206 = vld [vmem:[%s3198 + $0x1c] sm:$0xf]
    %v3207 = vld [vmem:[%s3198 + $0x20] sm:$0xf]
    %v3208 = vld [vmem:[%s3198 + $0x24] sm:$0xf]
    %v3209 = vld [vmem:[%s3198 + $0x28] sm:$0xf]
    %v3210 = vld [vmem:[%s3198 + $0x2c] sm:$0xf]
    %v3211 = vld [vmem:[%s3198 + $0x30] sm:$0xf]
    %v3212 = vld [vmem:[%s3198 + $0x34] sm:$0xf]
    %v3213 = vld [vmem:[%s3198 + $0x38] sm:$0xf]
    %v3214 = vld [vmem:[%s3198 + $0x3c] sm:$0xf]
    %v3215 = vpack.c.bf16 %v3197, %v3197
    %s3216 = scalar_lea.vmem [#allocation24], 2
    %v3217 = vld [vmem:[%s3216] sm:$0x1]
    %v3219 = vlaneseq
    %v3220 = vshrl.u32 %v3219, 7
    %v3221 = vsub.s32 0, %v3220
    %v3222 = vrot.slane %v3217, %v3221
    %v3240 = vunpack.c.l.b16 %v3199
    %v3241 = vunpack.c.l.b16 %v3200
    %v3242 = vunpack.c.l.b16 %v3201
    %v3243 = vunpack.c.l.b16 %v3202
    %v3244 = vunpack.c.l.b16 %v3203
    %v3245 = vunpack.c.l.b16 %v3204
    %v3246 = vunpack.c.l.b16 %v3205
    %v3247 = vunpack.c.l.b16 %v3206
    %v3248 = vunpack.c.l.b16 %v3207
    %v3249 = vunpack.c.l.b16 %v3208
    %v3250 = vunpack.c.l.b16 %v3209
    %v3251 = vunpack.c.l.b16 %v3210
    %v3252 = vunpack.c.l.b16 %v3211
    %v3253 = vunpack.c.l.b16 %v3212
    %v3254 = vunpack.c.l.b16 %v3213
    %v3255 = vunpack.c.l.b16 %v3214
    %v3256 = vpack.c.b16 %v3241, %v3240
    %v3257 = vpack.c.b16 %v3243, %v3242
    %v3258 = vpack.c.b16 %v3245, %v3244
    %v3259 = vpack.c.b16 %v3247, %v3246
    %v3260 = vpack.c.b16 %v3249, %v3248
    %v3261 = vpack.c.b16 %v3251, %v3250
    %v3262 = vpack.c.b16 %v3253, %v3252
    %v3263 = vpack.c.b16 %v3255, %v3254
    %3272 = vmatprep.subr.bf16.mxu0 0
    %3273 = vmatpush1.bf16.msra.mxu0 %v3256
    %3274 = vmatprep.subr.bf16.mxu0 0
    %3275 = vmatpush1.bf16.msra.mxu0 %v3257
    %3276 = vmatprep.subr.bf16.mxu0 0
    %3277 = vmatpush1.bf16.msra.mxu0 %v3258
    %3278 = vmatprep.subr.bf16.mxu0 0
    %3279 = vmatpush1.bf16.msra.mxu0 %v3259
    %3280 = vmatprep.subr.bf16.mxu0 0
    %3281 = vmatpush1.bf16.msra.mxu0 %v3260
    %3282 = vmatprep.subr.bf16.mxu0 0
    %3283 = vmatpush1.bf16.msra.mxu0 %v3261
    %3284 = vmatprep.subr.bf16.mxu0 0
    %3285 = vmatpush1.bf16.msra.mxu0 %v3262
    %3286 = vmatprep.subr.bf16.mxu0 0
    %3287 = vmatpush1.bf16.msra.mxu0 %v3263
    %3288 = vmatprep.subr.bf16.mxu0 0
    %3289 = vmatpush1.bf16.msra.mxu0 0
    %3290 = vmatprep.subr.bf16.mxu0 0
    %3291 = vmatpush1.bf16.msra.mxu0 0
    %3292 = vmatprep.subr.bf16.mxu0 0
    %3293 = vmatpush1.bf16.msra.mxu0 0
    %3294 = vmatprep.subr.bf16.mxu0 0
    %3295 = vmatpush1.bf16.msra.mxu0 0
    %3296 = vmatprep.subr.bf16.mxu0 0
    %3297 = vmatpush1.bf16.msra.mxu0 0
    %3298 = vmatprep.subr.bf16.mxu0 0
    %3299 = vmatpush1.bf16.msra.mxu0 0
    %3300 = vmatprep.subr.bf16.mxu0 0
    %3301 = vmatpush1.bf16.msra.mxu0 0
    %3302 = vmatprep.subr.bf16.mxu0 0
    %3303 = vmatpush1.bf16.msra.mxu0 0
    %3304 = vmatprep.mubr.bf16.mxu0 0
    %3305 = vmatmul.mubr.bf16.gmra.mrb[0].mxu0 %v3215
    %v3306 = vpop.f32.mrb[0].mxu0
    %v3307 = vadd.f32 %v3222, %v3306
    %v3308 = vpop.f32.mrb[0].mxu0
    %v3309 = vpop.f32.mrb[0].mxu0
    %v3310 = vpop.f32.mrb[0].mxu0
    %3311 = vdwg.mxu0
    %v3312 = vmul.f32 %v3307, 0.044715
    %v3313 = vmul.f32 %v3312, %v3307
    %v3314 = vmul.f32 %v3313, %v3307
    %v3315 = vadd.f32 %v3307, %v3314
    %v3316 = vmul.f32 %v3315, 0.7978846
    %v3317 = vmul.f32 %v3307, 0.5
    %v3318 = vtanh.pop %v3316
    %v3319 = vadd.f32 %v3318, 1.0
    %v3320 = vmul.f32 %v3317, %v3319
    %s3321 = scalar_lea.vmem [#allocation2], 48
    %v3322 = vld [vmem:[%s3321] sm:$0xff]
    %s3323 = sadd.s32 768, 128
    %s3324 = sshra.s32 %s3323, 7
    %s3325 = sand.u32 %s3323, 127
    %s3326 = smul.addr %s3324, 8
    %s3327 = scalar_lea.vmem [#allocation2], %s3326
    %v3328 = vld [vmem:[%s3327] sm:$0xff]
    %s3329 = scalar_lea.vmem [#allocation20], 192
    %v3330 = vld [vmem:[%s3329] sm:$0xf]
    %v3331 = vld [vmem:[%s3329 + $0x4] sm:$0xf]
    %v3332 = vld [vmem:[%s3329 + $0x8] sm:$0xf]
    %v3333 = vld [vmem:[%s3329 + $0xc] sm:$0xf]
    %v3334 = vld [vmem:[%s3329 + $0x10] sm:$0xf]
    %v3335 = vld [vmem:[%s3329 + $0x14] sm:$0xf]
    %v3336 = vld [vmem:[%s3329 + $0x18] sm:$0xf]
    %v3337 = vld [vmem:[%s3329 + $0x1c] sm:$0xf]
    %v3338 = vld [vmem:[%s3329 + $0x20] sm:$0xf]
    %v3339 = vld [vmem:[%s3329 + $0x24] sm:$0xf]
    %v3340 = vld [vmem:[%s3329 + $0x28] sm:$0xf]
    %v3341 = vld [vmem:[%s3329 + $0x2c] sm:$0xf]
    %v3342 = vld [vmem:[%s3329 + $0x30] sm:$0xf]
    %v3343 = vld [vmem:[%s3329 + $0x34] sm:$0xf]
    %v3344 = vld [vmem:[%s3329 + $0x38] sm:$0xf]
    %v3345 = vld [vmem:[%s3329 + $0x3c] sm:$0xf]
    %v3346 = vpack.c.bf16 %v3320, %v3320
    %s3347 = scalar_lea.vmem [#allocation21], 3
    %v3348 = vld [vmem:[%s3347] sm:$0x1]
    %v3350 = vlaneseq
    %v3351 = vshrl.u32 %v3350, 7
    %v3352 = vsub.s32 0, %v3351
    %v3353 = vrot.slane %v3348, %v3352
    %v3371 = vunpack.c.l.b16 %v3330
    %v3372 = vunpack.c.l.b16 %v3331
    %v3373 = vunpack.c.l.b16 %v3332
    %v3374 = vunpack.c.l.b16 %v3333
    %v3375 = vunpack.c.l.b16 %v3334
    %v3376 = vunpack.c.l.b16 %v3335
    %v3377 = vunpack.c.l.b16 %v3336
    %v3378 = vunpack.c.l.b16 %v3337
    %v3379 = vunpack.c.l.b16 %v3338
    %v3380 = vunpack.c.l.b16 %v3339
    %v3381 = vunpack.c.l.b16 %v3340
    %v3382 = vunpack.c.l.b16 %v3341
    %v3383 = vunpack.c.l.b16 %v3342
    %v3384 = vunpack.c.l.b16 %v3343
    %v3385 = vunpack.c.l.b16 %v3344
    %v3386 = vunpack.c.l.b16 %v3345
    %v3387 = vpack.c.b16 %v3372, %v3371
    %v3388 = vpack.c.b16 %v3374, %v3373
    %v3389 = vpack.c.b16 %v3376, %v3375
    %v3390 = vpack.c.b16 %v3378, %v3377
    %v3391 = vpack.c.b16 %v3380, %v3379
    %v3392 = vpack.c.b16 %v3382, %v3381
    %v3393 = vpack.c.b16 %v3384, %v3383
    %v3394 = vpack.c.b16 %v3386, %v3385
    %3403 = vmatprep.subr.bf16.mxu0 0
    %3404 = vmatpush1.bf16.msra.mxu0 %v3387
    %3405 = vmatprep.subr.bf16.mxu0 0
    %3406 = vmatpush1.bf16.msra.mxu0 %v3388
    %3407 = vmatprep.subr.bf16.mxu0 0
    %3408 = vmatpush1.bf16.msra.mxu0 %v3389
    %3409 = vmatprep.subr.bf16.mxu0 0
    %3410 = vmatpush1.bf16.msra.mxu0 %v3390
    %3411 = vmatprep.subr.bf16.mxu0 0
    %3412 = vmatpush1.bf16.msra.mxu0 %v3391
    %3413 = vmatprep.subr.bf16.mxu0 0
    %3414 = vmatpush1.bf16.msra.mxu0 %v3392
    %3415 = vmatprep.subr.bf16.mxu0 0
    %3416 = vmatpush1.bf16.msra.mxu0 %v3393
    %3417 = vmatprep.subr.bf16.mxu0 0
    %3418 = vmatpush1.bf16.msra.mxu0 %v3394
    %3419 = vmatprep.subr.bf16.mxu0 0
    %3420 = vmatpush1.bf16.msra.mxu0 0
    %3421 = vmatprep.subr.bf16.mxu0 0
    %3422 = vmatpush1.bf16.msra.mxu0 0
    %3423 = vmatprep.subr.bf16.mxu0 0
    %3424 = vmatpush1.bf16.msra.mxu0 0
    %3425 = vmatprep.subr.bf16.mxu0 0
    %3426 = vmatpush1.bf16.msra.mxu0 0
    %3427 = vmatprep.subr.bf16.mxu0 0
    %3428 = vmatpush1.bf16.msra.mxu0 0
    %3429 = vmatprep.subr.bf16.mxu0 0
    %3430 = vmatpush1.bf16.msra.mxu0 0
    %3431 = vmatprep.subr.bf16.mxu0 0
    %3432 = vmatpush1.bf16.msra.mxu0 0
    %3433 = vmatprep.subr.bf16.mxu0 0
    %3434 = vmatpush1.bf16.msra.mxu0 0
    %3435 = vmatprep.mubr.bf16.mxu0 0
    %3436 = vmatmul.mubr.bf16.gmra.mrb[0].mxu0 %v3346
    %v3437 = vpop.f32.mrb[0].mxu0
    %v3438 = vadd.f32 %v3353, %v3437
    %v3439 = vpop.f32.mrb[0].mxu0
    %v3440 = vpop.f32.mrb[0].mxu0
    %v3441 = vpop.f32.mrb[0].mxu0
    %3442 = vdwg.mxu0
    %3443 = vadd.xlane.f32.xlu0 %v3438
    %v3444 = vpop.xlane.xlu0 %3443
    %v3445 = vmul.f32 %v3444, %v2639
    %v3446 = vmul.f32 %v3438, %v3438
    %3447 = vadd.xlane.f32.xlu0 %v3446
    %v3448 = vpop.xlane.xlu0 %3447
    %v3449 = vmul.f32 %v3448, %v2639
    %v3450 = vmul.f32 %v3445, %v3445
    %v3451 = vsub.f32 %v3449, %v3450
    %v3452 = vsub.f32 %v3438, %v3445
    %v3453 = vadd.f32 %v3451, 1e-05
    %v3454 = vrsqrt.pop %v3453
    %v3455 = vmul.f32 %v3452, %v3454
    %v3456 = vmul.f32 %v3322, %v3455
    %v3457 = vadd.f32 %v3456, %v3328
    %v3458 = vmul.f32 %v3457, 0.044715
    %v3459 = vmul.f32 %v3458, %v3457
    %v3460 = vmul.f32 %v3459, %v3457
    %v3461 = vadd.f32 %v3457, %v3460
    %v3462 = vmul.f32 %v3461, 0.7978846
    %v3463 = vmul.f32 %v3457, 0.5
    %v3464 = vtanh.pop %v3462
    %v3465 = vadd.f32 %v3464, 1.0
    %v3466 = vmul.f32 %v3463, %v3465
    %s3467 = scalar_lea.vmem [#allocation23], 192
    %v3468 = vld [vmem:[%s3467] sm:$0xf]
    %v3469 = vld [vmem:[%s3467 + $0x4] sm:$0xf]
    %v3470 = vld [vmem:[%s3467 + $0x8] sm:$0xf]
    %v3471 = vld [vmem:[%s3467 + $0xc] sm:$0xf]
    %v3472 = vld [vmem:[%s3467 + $0x10] sm:$0xf]
    %v3473 = vld [vmem:[%s3467 + $0x14] sm:$0xf]
    %v3474 = vld [vmem:[%s3467 + $0x18] sm:$0xf]
    %v3475 = vld [vmem:[%s3467 + $0x1c] sm:$0xf]
    %v3476 = vld [vmem:[%s3467 + $0x20] sm:$0xf]
    %v3477 = vld [vmem:[%s3467 + $0x24] sm:$0xf]
    %v3478 = vld [vmem:[%s3467 + $0x28] sm:$0xf]
    %v3479 = vld [vmem:[%s3467 + $0x2c] sm:$0xf]
    %v3480 = vld [vmem:[%s3467 + $0x30] sm:$0xf]
    %v3481 = vld [vmem:[%s3467 + $0x34] sm:$0xf]
    %v3482 = vld [vmem:[%s3467 + $0x38] sm:$0xf]
    %v3483 = vld [vmem:[%s3467 + $0x3c] sm:$0xf]
    %v3484 = vpack.c.bf16 %v3466, %v3466
    %s3485 = scalar_lea.vmem [#allocation24], 3
    %v3486 = vld [vmem:[%s3485] sm:$0x1]
    %v3488 = vlaneseq
    %v3489 = vshrl.u32 %v3488, 7
    %v3490 = vsub.s32 0, %v3489
    %v3491 = vrot.slane %v3486, %v3490
    %v3509 = vunpack.c.l.b16 %v3468
    %v3510 = vunpack.c.l.b16 %v3469
    %v3511 = vunpack.c.l.b16 %v3470
    %v3512 = vunpack.c.l.b16 %v3471
    %v3513 = vunpack.c.l.b16 %v3472
    %v3514 = vunpack.c.l.b16 %v3473
    %v3515 = vunpack.c.l.b16 %v3474
    %v3516 = vunpack.c.l.b16 %v3475
    %v3517 = vunpack.c.l.b16 %v3476
    %v3518 = vunpack.c.l.b16 %v3477
    %v3519 = vunpack.c.l.b16 %v3478
    %v3520 = vunpack.c.l.b16 %v3479
    %v3521 = vunpack.c.l.b16 %v3480
    %v3522 = vunpack.c.l.b16 %v3481
    %v3523 = vunpack.c.l.b16 %v3482
    %v3524 = vunpack.c.l.b16 %v3483
    %v3525 = vpack.c.b16 %v3510, %v3509
    %v3526 = vpack.c.b16 %v3512, %v3511
    %v3527 = vpack.c.b16 %v3514, %v3513
    %v3528 = vpack.c.b16 %v3516, %v3515
    %v3529 = vpack.c.b16 %v3518, %v3517
    %v3530 = vpack.c.b16 %v3520, %v3519
    %v3531 = vpack.c.b16 %v3522, %v3521
    %v3532 = vpack.c.b16 %v3524, %v3523
    %3541 = vmatprep.subr.bf16.mxu0 0
    %3542 = vmatpush1.bf16.msra.mxu0 %v3525
    %3543 = vmatprep.subr.bf16.mxu0 0
    %3544 = vmatpush1.bf16.msra.mxu0 %v3526
    %3545 = vmatprep.subr.bf16.mxu0 0
    %3546 = vmatpush1.bf16.msra.mxu0 %v3527
    %3547 = vmatprep.subr.bf16.mxu0 0
    %3548 = vmatpush1.bf16.msra.mxu0 %v3528
    %3549 = vmatprep.subr.bf16.mxu0 0
    %3550 = vmatpush1.bf16.msra.mxu0 %v3529
    %3551 = vmatprep.subr.bf16.mxu0 0
    %3552 = vmatpush1.bf16.msra.mxu0 %v3530
    %3553 = vmatprep.subr.bf16.mxu0 0
    %3554 = vmatpush1.bf16.msra.mxu0 %v3531
    %3555 = vmatprep.subr.bf16.mxu0 0
    %3556 = vmatpush1.bf16.msra.mxu0 %v3532
    %3557 = vmatprep.subr.bf16.mxu0 0
    %3558 = vmatpush1.bf16.msra.mxu0 0
    %3559 = vmatprep.subr.bf16.mxu0 0
    %3560 = vmatpush1.bf16.msra.mxu0 0
    %3561 = vmatprep.subr.bf16.mxu0 0
    %3562 = vmatpush1.bf16.msra.mxu0 0
    %3563 = vmatprep.subr.bf16.mxu0 0
    %3564 = vmatpush1.bf16.msra.mxu0 0
    %3565 = vmatprep.subr.bf16.mxu0 0
    %3566 = vmatpush1.bf16.msra.mxu0 0
    %3567 = vmatprep.subr.bf16.mxu0 0
    %3568 = vmatpush1.bf16.msra.mxu0 0
    %3569 = vmatprep.subr.bf16.mxu0 0
    %3570 = vmatpush1.bf16.msra.mxu0 0
    %3571 = vmatprep.subr.bf16.mxu0 0
    %3572 = vmatpush1.bf16.msra.mxu0 0
    %3573 = vmatprep.mubr.bf16.mxu0 0
    %3574 = vmatmul.mubr.bf16.gmra.mrb[0].mxu0 %v3484
    %v3575 = vpop.f32.mrb[0].mxu0
    %v3576 = vadd.f32 %v3491, %v3575
    %v3577 = vpop.f32.mrb[0].mxu0
    %v3578 = vpop.f32.mrb[0].mxu0
    %v3579 = vpop.f32.mrb[0].mxu0
    %3580 = vdwg.mxu0
    %v3581 = vmul.f32 %v3576, 0.044715
    %v3582 = vmul.f32 %v3581, %v3576
    %v3583 = vmul.f32 %v3582, %v3576
    %v3584 = vadd.f32 %v3576, %v3583
    %v3585 = vmul.f32 %v3584, 0.7978846
    %v3586 = vmul.f32 %v3576, 0.5
    %v3587 = vtanh.pop %v3585
    %v3588 = vadd.f32 %v3587, 1.0
    %v3589 = vmul.f32 %v3586, %v3588
    %s3590 = scalar_lea.vmem [#allocation2], 64
    %v3591 = vld [vmem:[%s3590] sm:$0xff]
    %s3592 = sadd.s32 1024, 128
    %s3593 = sshra.s32 %s3592, 7
    %s3594 = sand.u32 %s3592, 127
    %s3595 = smul.addr %s3593, 8
    %s3596 = scalar_lea.vmem [#allocation2], %s3595
    %v3597 = vld [vmem:[%s3596] sm:$0xff]
    %s3598 = scalar_lea.vmem [#allocation20], 256
    %v3599 = vld [vmem:[%s3598] sm:$0xf]
    %v3600 = vld [vmem:[%s3598 + $0x4] sm:$0xf]
    %v3601 = vld [vmem:[%s3598 + $0x8] sm:$0xf]
    %v3602 = vld [vmem:[%s3598 + $0xc] sm:$0xf]
    %v3603 = vld [vmem:[%s3598 + $0x10] sm:$0xf]
    %v3604 = vld [vmem:[%s3598 + $0x14] sm:$0xf]
    %v3605 = vld [vmem:[%s3598 + $0x18] sm:$0xf]
    %v3606 = vld [vmem:[%s3598 + $0x1c] sm:$0xf]
    %v3607 = vld [vmem:[%s3598 + $0x20] sm:$0xf]
    %v3608 = vld [vmem:[%s3598 + $0x24] sm:$0xf]
    %v3609 = vld [vmem:[%s3598 + $0x28] sm:$0xf]
    %v3610 = vld [vmem:[%s3598 + $0x2c] sm:$0xf]
    %v3611 = vld [vmem:[%s3598 + $0x30] sm:$0xf]
    %v3612 = vld [vmem:[%s3598 + $0x34] sm:$0xf]
    %v3613 = vld [vmem:[%s3598 + $0x38] sm:$0xf]
    %v3614 = vld [vmem:[%s3598 + $0x3c] sm:$0xf]
    %v3615 = vpack.c.bf16 %v3589, %v3589
    %s3616 = scalar_lea.vmem [#allocation21], 4
    %v3617 = vld [vmem:[%s3616] sm:$0x1]
    %v3619 = vlaneseq
    %v3620 = vshrl.u32 %v3619, 7
    %v3621 = vsub.s32 0, %v3620
    %v3622 = vrot.slane %v3617, %v3621
    %v3640 = vunpack.c.l.b16 %v3599
    %v3641 = vunpack.c.l.b16 %v3600
    %v3642 = vunpack.c.l.b16 %v3601
    %v3643 = vunpack.c.l.b16 %v3602
    %v3644 = vunpack.c.l.b16 %v3603
    %v3645 = vunpack.c.l.b16 %v3604
    %v3646 = vunpack.c.l.b16 %v3605
    %v3647 = vunpack.c.l.b16 %v3606
    %v3648 = vunpack.c.l.b16 %v3607
    %v3649 = vunpack.c.l.b16 %v3608
    %v3650 = vunpack.c.l.b16 %v3609
    %v3651 = vunpack.c.l.b16 %v3610
    %v3652 = vunpack.c.l.b16 %v3611
    %v3653 = vunpack.c.l.b16 %v3612
    %v3654 = vunpack.c.l.b16 %v3613
    %v3655 = vunpack.c.l.b16 %v3614
    %v3656 = vpack.c.b16 %v3641, %v3640
    %v3657 = vpack.c.b16 %v3643, %v3642
    %v3658 = vpack.c.b16 %v3645, %v3644
    %v3659 = vpack.c.b16 %v3647, %v3646
    %v3660 = vpack.c.b16 %v3649, %v3648
    %v3661 = vpack.c.b16 %v3651, %v3650
    %v3662 = vpack.c.b16 %v3653, %v3652
    %v3663 = vpack.c.b16 %v3655, %v3654
    %3672 = vmatprep.subr.bf16.mxu0 0
    %3673 = vmatpush1.bf16.msra.mxu0 %v3656
    %3674 = vmatprep.subr.bf16.mxu0 0
    %3675 = vmatpush1.bf16.msra.mxu0 %v3657
    %3676 = vmatprep.subr.bf16.mxu0 0
    %3677 = vmatpush1.bf16.msra.mxu0 %v3658
    %3678 = vmatprep.subr.bf16.mxu0 0
    %3679 = vmatpush1.bf16.msra.mxu0 %v3659
    %3680 = vmatprep.subr.bf16.mxu0 0
    %3681 = vmatpush1.bf16.msra.mxu0 %v3660
    %3682 = vmatprep.subr.bf16.mxu0 0
    %3683 = vmatpush1.bf16.msra.mxu0 %v3661
    %3684 = vmatprep.subr.bf16.mxu0 0
    %3685 = vmatpush1.bf16.msra.mxu0 %v3662
    %3686 = vmatprep.subr.bf16.mxu0 0
    %3687 = vmatpush1.bf16.msra.mxu0 %v3663
    %3688 = vmatprep.subr.bf16.mxu0 0
    %3689 = vmatpush1.bf16.msra.mxu0 0
    %3690 = vmatprep.subr.bf16.mxu0 0
    %3691 = vmatpush1.bf16.msra.mxu0 0
    %3692 = vmatprep.subr.bf16.mxu0 0
    %3693 = vmatpush1.bf16.msra.mxu0 0
    %3694 = vmatprep.subr.bf16.mxu0 0
    %3695 = vmatpush1.bf16.msra.mxu0 0
    %3696 = vmatprep.subr.bf16.mxu0 0
    %3697 = vmatpush1.bf16.msra.mxu0 0
    %3698 = vmatprep.subr.bf16.mxu0 0
    %3699 = vmatpush1.bf16.msra.mxu0 0
    %3700 = vmatprep.subr.bf16.mxu0 0
    %3701 = vmatpush1.bf16.msra.mxu0 0
    %3702 = vmatprep.subr.bf16.mxu0 0
    %3703 = vmatpush1.bf16.msra.mxu0 0
    %3704 = vmatprep.mubr.bf16.mxu0 0
    %3705 = vmatmul.mubr.bf16.gmra.mrb[0].mxu0 %v3615
    %v3706 = vpop.f32.mrb[0].mxu0
    %v3707 = vadd.f32 %v3622, %v3706
    %v3708 = vpop.f32.mrb[0].mxu0
    %v3709 = vpop.f32.mrb[0].mxu0
    %v3710 = vpop.f32.mrb[0].mxu0
    %3711 = vdwg.mxu0
    %3712 = vadd.xlane.f32.xlu0 %v3707
    %v3713 = vpop.xlane.xlu0 %3712
    %v3714 = vmul.f32 %v3713, %v2639
    %v3715 = vmul.f32 %v3707, %v3707
    %3716 = vadd.xlane.f32.xlu0 %v3715
    %v3717 = vpop.xlane.xlu0 %3716
    %v3718 = vmul.f32 %v3717, %v2639
    %v3719 = vmul.f32 %v3714, %v3714
    %v3720 = vsub.f32 %v3718, %v3719
    %v3721 = vsub.f32 %v3707, %v3714
    %v3722 = vadd.f32 %v3720, 1e-05
    %v3723 = vrsqrt.pop %v3722
    %v3724 = vmul.f32 %v3721, %v3723
    %v3725 = vmul.f32 %v3591, %v3724
    %v3726 = vadd.f32 %v3725, %v3597
    %v3727 = vmul.f32 %v3726, 0.044715
    %v3728 = vmul.f32 %v3727, %v3726
    %v3729 = vmul.f32 %v3728, %v3726
    %v3730 = vadd.f32 %v3726, %v3729
    %v3731 = vmul.f32 %v3730, 0.7978846
    %v3732 = vmul.f32 %v3726, 0.5
    %v3733 = vtanh.pop %v3731
    %v3734 = vadd.f32 %v3733, 1.0
    %v3735 = vmul.f32 %v3732, %v3734
    %s3736 = scalar_lea.vmem [#allocation23], 256
    %v3737 = vld [vmem:[%s3736] sm:$0xf]
    %v3738 = vld [vmem:[%s3736 + $0x4] sm:$0xf]
    %v3739 = vld [vmem:[%s3736 + $0x8] sm:$0xf]
    %v3740 = vld [vmem:[%s3736 + $0xc] sm:$0xf]
    %v3741 = vld [vmem:[%s3736 + $0x10] sm:$0xf]
    %v3742 = vld [vmem:[%s3736 + $0x14] sm:$0xf]
    %v3743 = vld [vmem:[%s3736 + $0x18] sm:$0xf]
    %v3744 = vld [vmem:[%s3736 + $0x1c] sm:$0xf]
    %v3745 = vld [vmem:[%s3736 + $0x20] sm:$0xf]
    %v3746 = vld [vmem:[%s3736 + $0x24] sm:$0xf]
    %v3747 = vld [vmem:[%s3736 + $0x28] sm:$0xf]
    %v3748 = vld [vmem:[%s3736 + $0x2c] sm:$0xf]
    %v3749 = vld [vmem:[%s3736 + $0x30] sm:$0xf]
    %v3750 = vld [vmem:[%s3736 + $0x34] sm:$0xf]
    %v3751 = vld [vmem:[%s3736 + $0x38] sm:$0xf]
    %v3752 = vld [vmem:[%s3736 + $0x3c] sm:$0xf]
    %v3753 = vpack.c.bf16 %v3735, %v3735
    %s3754 = scalar_lea.vmem [#allocation24], 4
    %v3755 = vld [vmem:[%s3754] sm:$0x1]
    %v3757 = vlaneseq
    %v3758 = vshrl.u32 %v3757, 7
    %v3759 = vsub.s32 0, %v3758
    %v3760 = vrot.slane %v3755, %v3759
    %v3778 = vunpack.c.l.b16 %v3737
    %v3779 = vunpack.c.l.b16 %v3738
    %v3780 = vunpack.c.l.b16 %v3739
    %v3781 = vunpack.c.l.b16 %v3740
    %v3782 = vunpack.c.l.b16 %v3741
    %v3783 = vunpack.c.l.b16 %v3742
    %v3784 = vunpack.c.l.b16 %v3743
    %v3785 = vunpack.c.l.b16 %v3744
    %v3786 = vunpack.c.l.b16 %v3745
    %v3787 = vunpack.c.l.b16 %v3746
    %v3788 = vunpack.c.l.b16 %v3747
    %v3789 = vunpack.c.l.b16 %v3748
    %v3790 = vunpack.c.l.b16 %v3749
    %v3791 = vunpack.c.l.b16 %v3750
    %v3792 = vunpack.c.l.b16 %v3751
    %v3793 = vunpack.c.l.b16 %v3752
    %v3794 = vpack.c.b16 %v3779, %v3778
    %v3795 = vpack.c.b16 %v3781, %v3780
    %v3796 = vpack.c.b16 %v3783, %v3782
    %v3797 = vpack.c.b16 %v3785, %v3784
    %v3798 = vpack.c.b16 %v3787, %v3786
    %v3799 = vpack.c.b16 %v3789, %v3788
    %v3800 = vpack.c.b16 %v3791, %v3790
    %v3801 = vpack.c.b16 %v3793, %v3792
    %3810 = vmatprep.subr.bf16.mxu0 0
    %3811 = vmatpush1.bf16.msra.mxu0 %v3794
    %3812 = vmatprep.subr.bf16.mxu0 0
    %3813 = vmatpush1.bf16.msra.mxu0 %v3795
    %3814 = vmatprep.subr.bf16.mxu0 0
    %3815 = vmatpush1.bf16.msra.mxu0 %v3796
    %3816 = vmatprep.subr.bf16.mxu0 0
    %3817 = vmatpush1.bf16.msra.mxu0 %v3797
    %3818 = vmatprep.subr.bf16.mxu0 0
    %3819 = vmatpush1.bf16.msra.mxu0 %v3798
    %3820 = vmatprep.subr.bf16.mxu0 0
    %3821 = vmatpush1.bf16.msra.mxu0 %v3799
    %3822 = vmatprep.subr.bf16.mxu0 0
    %3823 = vmatpush1.bf16.msra.mxu0 %v3800
    %3824 = vmatprep.subr.bf16.mxu0 0
    %3825 = vmatpush1.bf16.msra.mxu0 %v3801
    %3826 = vmatprep.subr.bf16.mxu0 0
    %3827 = vmatpush1.bf16.msra.mxu0 0
    %3828 = vmatprep.subr.bf16.mxu0 0
    %3829 = vmatpush1.bf16.msra.mxu0 0
    %3830 = vmatprep.subr.bf16.mxu0 0
    %3831 = vmatpush1.bf16.msra.mxu0 0
    %3832 = vmatprep.subr.bf16.mxu0 0
    %3833 = vmatpush1.bf16.msra.mxu0 0
    %3834 = vmatprep.subr.bf16.mxu0 0
    %3835 = vmatpush1.bf16.msra.mxu0 0
    %3836 = vmatprep.subr.bf16.mxu0 0
    %3837 = vmatpush1.bf16.msra.mxu0 0
    %3838 = vmatprep.subr.bf16.mxu0 0
    %3839 = vmatpush1.bf16.msra.mxu0 0
    %3840 = vmatprep.subr.bf16.mxu0 0
    %3841 = vmatpush1.bf16.msra.mxu0 0
    %3842 = vmatprep.mubr.bf16.mxu0 0
    %3843 = vmatmul.mubr.bf16.gmra.mrb[0].mxu0 %v3753
    %v3844 = vpop.f32.mrb[0].mxu0
    %v3845 = vadd.f32 %v3760, %v3844
    %v3846 = vpop.f32.mrb[0].mxu0
    %v3847 = vpop.f32.mrb[0].mxu0
    %v3848 = vpop.f32.mrb[0].mxu0
    %3849 = vdwg.mxu0
    %v3850 = vmul.f32 %v3845, 0.044715
    %v3851 = vmul.f32 %v3850, %v3845
    %v3852 = vmul.f32 %v3851, %v3845
    %v3853 = vadd.f32 %v3845, %v3852
    %v3854 = vmul.f32 %v3853, 0.7978846
    %v3855 = vmul.f32 %v3845, 0.5
    %v3856 = vtanh.pop %v3854
    %v3857 = vadd.f32 %v3856, 1.0
    %v3858 = vmul.f32 %v3855, %v3857
    %s3859 = scalar_lea.vmem [#allocation2], 80
    %v3860 = vld [vmem:[%s3859] sm:$0xff]
    %s3861 = sadd.s32 1280, 128
    %s3862 = sshra.s32 %s3861, 7
    %s3863 = sand.u32 %s3861, 127
    %s3864 = smul.addr %s3862, 8
    %s3865 = scalar_lea.vmem [#allocation2], %s3864
    %v3866 = vld [vmem:[%s3865] sm:$0xff]
    %s3867 = scalar_lea.vmem [#allocation20], 320
    %v3868 = vld [vmem:[%s3867] sm:$0xf]
    %v3869 = vld [vmem:[%s3867 + $0x4] sm:$0xf]
    %v3870 = vld [vmem:[%s3867 + $0x8] sm:$0xf]
    %v3871 = vld [vmem:[%s3867 + $0xc] sm:$0xf]
    %v3872 = vld [vmem:[%s3867 + $0x10] sm:$0xf]
    %v3873 = vld [vmem:[%s3867 + $0x14] sm:$0xf]
    %v3874 = vld [vmem:[%s3867 + $0x18] sm:$0xf]
    %v3875 = vld [vmem:[%s3867 + $0x1c] sm:$0xf]
    %v3876 = vld [vmem:[%s3867 + $0x20] sm:$0xf]
    %v3877 = vld [vmem:[%s3867 + $0x24] sm:$0xf]
    %v3878 = vld [vmem:[%s3867 + $0x28] sm:$0xf]
    %v3879 = vld [vmem:[%s3867 + $0x2c] sm:$0xf]
    %v3880 = vld [vmem:[%s3867 + $0x30] sm:$0xf]
    %v3881 = vld [vmem:[%s3867 + $0x34] sm:$0xf]
    %v3882 = vld [vmem:[%s3867 + $0x38] sm:$0xf]
    %v3883 = vld [vmem:[%s3867 + $0x3c] sm:$0xf]
    %v3884 = vpack.c.bf16 %v3858, %v3858
    %s3885 = scalar_lea.vmem [#allocation21], 5
    %v3886 = vld [vmem:[%s3885] sm:$0x1]
    %v3888 = vlaneseq
    %v3889 = vshrl.u32 %v3888, 7
    %v3890 = vsub.s32 0, %v3889
    %v3891 = vrot.slane %v3886, %v3890
    %v3909 = vunpack.c.l.b16 %v3868
    %v3910 = vunpack.c.l.b16 %v3869
    %v3911 = vunpack.c.l.b16 %v3870
    %v3912 = vunpack.c.l.b16 %v3871
    %v3913 = vunpack.c.l.b16 %v3872
    %v3914 = vunpack.c.l.b16 %v3873
    %v3915 = vunpack.c.l.b16 %v3874
    %v3916 = vunpack.c.l.b16 %v3875
    %v3917 = vunpack.c.l.b16 %v3876
    %v3918 = vunpack.c.l.b16 %v3877
    %v3919 = vunpack.c.l.b16 %v3878
    %v3920 = vunpack.c.l.b16 %v3879
    %v3921 = vunpack.c.l.b16 %v3880
    %v3922 = vunpack.c.l.b16 %v3881
    %v3923 = vunpack.c.l.b16 %v3882
    %v3924 = vunpack.c.l.b16 %v3883
    %v3925 = vpack.c.b16 %v3910, %v3909
    %v3926 = vpack.c.b16 %v3912, %v3911
    %v3927 = vpack.c.b16 %v3914, %v3913
    %v3928 = vpack.c.b16 %v3916, %v3915
    %v3929 = vpack.c.b16 %v3918, %v3917
    %v3930 = vpack.c.b16 %v3920, %v3919
    %v3931 = vpack.c.b16 %v3922, %v3921
    %v3932 = vpack.c.b16 %v3924, %v3923
    %3941 = vmatprep.subr.bf16.mxu0 0
    %3942 = vmatpush1.bf16.msra.mxu0 %v3925
    %3943 = vmatprep.subr.bf16.mxu0 0
    %3944 = vmatpush1.bf16.msra.mxu0 %v3926
    %3945 = vmatprep.subr.bf16.mxu0 0
    %3946 = vmatpush1.bf16.msra.mxu0 %v3927
    %3947 = vmatprep.subr.bf16.mxu0 0
    %3948 = vmatpush1.bf16.msra.mxu0 %v3928
    %3949 = vmatprep.subr.bf16.mxu0 0
    %3950 = vmatpush1.bf16.msra.mxu0 %v3929
    %3951 = vmatprep.subr.bf16.mxu0 0
    %3952 = vmatpush1.bf16.msra.mxu0 %v3930
    %3953 = vmatprep.subr.bf16.mxu0 0
    %3954 = vmatpush1.bf16.msra.mxu0 %v3931
    %3955 = vmatprep.subr.bf16.mxu0 0
    %3956 = vmatpush1.bf16.msra.mxu0 %v3932
    %3957 = vmatprep.subr.bf16.mxu0 0
    %3958 = vmatpush1.bf16.msra.mxu0 0
    %3959 = vmatprep.subr.bf16.mxu0 0
    %3960 = vmatpush1.bf16.msra.mxu0 0
    %3961 = vmatprep.subr.bf16.mxu0 0
    %3962 = vmatpush1.bf16.msra.mxu0 0
    %3963 = vmatprep.subr.bf16.mxu0 0
    %3964 = vmatpush1.bf16.msra.mxu0 0
    %3965 = vmatprep.subr.bf16.mxu0 0
    %3966 = vmatpush1.bf16.msra.mxu0 0
    %3967 = vmatprep.subr.bf16.mxu0 0
    %3968 = vmatpush1.bf16.msra.mxu0 0
    %3969 = vmatprep.subr.bf16.mxu0 0
    %3970 = vmatpush1.bf16.msra.mxu0 0
    %3971 = vmatprep.subr.bf16.mxu0 0
    %3972 = vmatpush1.bf16.msra.mxu0 0
    %3973 = vmatprep.mubr.bf16.mxu0 0
    %3974 = vmatmul.mubr.bf16.gmra.mrb[0].mxu0 %v3884
    %v3975 = vpop.f32.mrb[0].mxu0
    %v3976 = vadd.f32 %v3891, %v3975
    %v3977 = vpop.f32.mrb[0].mxu0
    %v3978 = vpop.f32.mrb[0].mxu0
    %v3979 = vpop.f32.mrb[0].mxu0
    %3980 = vdwg.mxu0
    %3981 = vadd.xlane.f32.xlu0 %v3976
    %v3982 = vpop.xlane.xlu0 %3981
    %v3983 = vmul.f32 %v3982, %v2639
    %v3984 = vmul.f32 %v3976, %v3976
    %3985 = vadd.xlane.f32.xlu0 %v3984
    %v3986 = vpop.xlane.xlu0 %3985
    %v3987 = vmul.f32 %v3986, %v2639
    %v3988 = vmul.f32 %v3983, %v3983
    %v3989 = vsub.f32 %v3987, %v3988
    %v3990 = vsub.f32 %v3976, %v3983
    %v3991 = vadd.f32 %v3989, 1e-05
    %v3992 = vrsqrt.pop %v3991
    %v3993 = vmul.f32 %v3990, %v3992
    %v3994 = vmul.f32 %v3860, %v3993
    %v3995 = vadd.f32 %v3994, %v3866
    %v3996 = vmul.f32 %v3995, 0.044715
    %v3997 = vmul.f32 %v3996, %v3995
    %v3998 = vmul.f32 %v3997, %v3995
    %v3999 = vadd.f32 %v3995, %v3998
    %v4000 = vmul.f32 %v3999, 0.7978846
    %v4001 = vmul.f32 %v3995, 0.5
    %v4002 = vtanh.pop %v4000
    %v4003 = vadd.f32 %v4002, 1.0
    %v4004 = vmul.f32 %v4001, %v4003
    %s4005 = scalar_lea.vmem [#allocation23], 320
    %v4006 = vld [vmem:[%s4005] sm:$0xf]
    %v4007 = vld [vmem:[%s4005 + $0x4] sm:$0xf]
    %v4008 = vld [vmem:[%s4005 + $0x8] sm:$0xf]
    %v4009 = vld [vmem:[%s4005 + $0xc] sm:$0xf]
    %v4010 = vld [vmem:[%s4005 + $0x10] sm:$0xf]
    %v4011 = vld [vmem:[%s4005 + $0x14] sm:$0xf]
    %v4012 = vld [vmem:[%s4005 + $0x18] sm:$0xf]
    %v4013 = vld [vmem:[%s4005 + $0x1c] sm:$0xf]
    %v4014 = vld [vmem:[%s4005 + $0x20] sm:$0xf]
    %v4015 = vld [vmem:[%s4005 + $0x24] sm:$0xf]
    %v4016 = vld [vmem:[%s4005 + $0x28] sm:$0xf]
    %v4017 = vld [vmem:[%s4005 + $0x2c] sm:$0xf]
    %v4018 = vld [vmem:[%s4005 + $0x30] sm:$0xf]
    %v4019 = vld [vmem:[%s4005 + $0x34] sm:$0xf]
    %v4020 = vld [vmem:[%s4005 + $0x38] sm:$0xf]
    %v4021 = vld [vmem:[%s4005 + $0x3c] sm:$0xf]
    %v4022 = vpack.c.bf16 %v4004, %v4004
    %s4023 = scalar_lea.vmem [#allocation24], 5
    %v4024 = vld [vmem:[%s4023] sm:$0x1]
    %v4026 = vlaneseq
    %v4027 = vshrl.u32 %v4026, 7
    %v4028 = vsub.s32 0, %v4027
    %v4029 = vrot.slane %v4024, %v4028
    %v4047 = vunpack.c.l.b16 %v4006
    %v4048 = vunpack.c.l.b16 %v4007
    %v4049 = vunpack.c.l.b16 %v4008
    %v4050 = vunpack.c.l.b16 %v4009
    %v4051 = vunpack.c.l.b16 %v4010
    %v4052 = vunpack.c.l.b16 %v4011
    %v4053 = vunpack.c.l.b16 %v4012
    %v4054 = vunpack.c.l.b16 %v4013
    %v4055 = vunpack.c.l.b16 %v4014
    %v4056 = vunpack.c.l.b16 %v4015
    %v4057 = vunpack.c.l.b16 %v4016
    %v4058 = vunpack.c.l.b16 %v4017
    %v4059 = vunpack.c.l.b16 %v4018
    %v4060 = vunpack.c.l.b16 %v4019
    %v4061 = vunpack.c.l.b16 %v4020
    %v4062 = vunpack.c.l.b16 %v4021
    %v4063 = vpack.c.b16 %v4048, %v4047
    %v4064 = vpack.c.b16 %v4050, %v4049
    %v4065 = vpack.c.b16 %v4052, %v4051
    %v4066 = vpack.c.b16 %v4054, %v4053
    %v4067 = vpack.c.b16 %v4056, %v4055
    %v4068 = vpack.c.b16 %v4058, %v4057
    %v4069 = vpack.c.b16 %v4060, %v4059
    %v4070 = vpack.c.b16 %v4062, %v4061
    %4079 = vmatprep.subr.bf16.mxu0 0
    %4080 = vmatpush1.bf16.msra.mxu0 %v4063
    %4081 = vmatprep.subr.bf16.mxu0 0
    %4082 = vmatpush1.bf16.msra.mxu0 %v4064
    %4083 = vmatprep.subr.bf16.mxu0 0
    %4084 = vmatpush1.bf16.msra.mxu0 %v4065
    %4085 = vmatprep.subr.bf16.mxu0 0
    %4086 = vmatpush1.bf16.msra.mxu0 %v4066
    %4087 = vmatprep.subr.bf16.mxu0 0
    %4088 = vmatpush1.bf16.msra.mxu0 %v4067
    %4089 = vmatprep.subr.bf16.mxu0 0
    %4090 = vmatpush1.bf16.msra.mxu0 %v4068
    %4091 = vmatprep.subr.bf16.mxu0 0
    %4092 = vmatpush1.bf16.msra.mxu0 %v4069
    %4093 = vmatprep.subr.bf16.mxu0 0
    %4094 = vmatpush1.bf16.msra.mxu0 %v4070
    %4095 = vmatprep.subr.bf16.mxu0 0
    %4096 = vmatpush1.bf16.msra.mxu0 0
    %4097 = vmatprep.subr.bf16.mxu0 0
    %4098 = vmatpush1.bf16.msra.mxu0 0
    %4099 = vmatprep.subr.bf16.mxu0 0
    %4100 = vmatpush1.bf16.msra.mxu0 0
    %4101 = vmatprep.subr.bf16.mxu0 0
    %4102 = vmatpush1.bf16.msra.mxu0 0
    %4103 = vmatprep.subr.bf16.mxu0 0
    %4104 = vmatpush1.bf16.msra.mxu0 0
    %4105 = vmatprep.subr.bf16.mxu0 0
    %4106 = vmatpush1.bf16.msra.mxu0 0
    %4107 = vmatprep.subr.bf16.mxu0 0
    %4108 = vmatpush1.bf16.msra.mxu0 0
    %4109 = vmatprep.subr.bf16.mxu0 0
    %4110 = vmatpush1.bf16.msra.mxu0 0
    %4111 = vmatprep.mubr.bf16.mxu0 0
    %4112 = vmatmul.mubr.bf16.gmra.mrb[0].mxu0 %v4022
    %v4113 = vpop.f32.mrb[0].mxu0
    %v4114 = vadd.f32 %v4029, %v4113
    %v4115 = vpop.f32.mrb[0].mxu0
    %v4116 = vpop.f32.mrb[0].mxu0
    %v4117 = vpop.f32.mrb[0].mxu0
    %4118 = vdwg.mxu0
    %v4119 = vmul.f32 %v4114, 0.044715
    %v4120 = vmul.f32 %v4119, %v4114
    %v4121 = vmul.f32 %v4120, %v4114
    %v4122 = vadd.f32 %v4114, %v4121
    %v4123 = vmul.f32 %v4122, 0.7978846
    %v4124 = vmul.f32 %v4114, 0.5
    %v4125 = vtanh.pop %v4123
    %v4126 = vadd.f32 %v4125, 1.0
    %v4127 = vmul.f32 %v4124, %v4126
    %v4128 = vld [vmem:[#allocation26] sm:$0xf]
    %v4129 = vld [vmem:[#allocation26 + $0x4] sm:$0xf]
    %v4130 = vld [vmem:[#allocation26 + $0x8] sm:$0xf]
    %v4131 = vld [vmem:[#allocation26 + $0xc] sm:$0xf]
    %v4132 = vld [vmem:[#allocation26 + $0x10] sm:$0xf]
    %v4133 = vld [vmem:[#allocation26 + $0x14] sm:$0xf]
    %v4134 = vld [vmem:[#allocation26 + $0x18] sm:$0xf]
    %v4135 = vld [vmem:[#allocation26 + $0x1c] sm:$0xf]
    %v4136 = vld [vmem:[#allocation26 + $0x20] sm:$0xf]
    %v4137 = vld [vmem:[#allocation26 + $0x24] sm:$0xf]
    %v4138 = vld [vmem:[#allocation26 + $0x28] sm:$0xf]
    %v4139 = vld [vmem:[#allocation26 + $0x2c] sm:$0xf]
    %v4140 = vld [vmem:[#allocation26 + $0x30] sm:$0xf]
    %v4141 = vld [vmem:[#allocation26 + $0x34] sm:$0xf]
    %v4142 = vld [vmem:[#allocation26 + $0x38] sm:$0xf]
    %v4143 = vld [vmem:[#allocation26 + $0x3c] sm:$0xf]
    %v4144 = vpack.c.bf16 %v4127, %v4127
    %v4145 = vld [vmem:[#allocation27] sm:$0x1]
    %v4147 = vlaneseq
    %v4148 = vshrl.u32 %v4147, 7
    %v4149 = vsub.s32 0, %v4148
    %v4150 = vrot.slane %v4145, %v4149
    %v4168 = vunpack.c.l.b16 %v4128
    %v4169 = vunpack.c.l.b16 %v4129
    %v4170 = vunpack.c.l.b16 %v4130
    %v4171 = vunpack.c.l.b16 %v4131
    %v4172 = vunpack.c.l.b16 %v4132
    %v4173 = vunpack.c.l.b16 %v4133
    %v4174 = vunpack.c.l.b16 %v4134
    %v4175 = vunpack.c.l.b16 %v4135
    %v4176 = vunpack.c.l.b16 %v4136
    %v4177 = vunpack.c.l.b16 %v4137
    %v4178 = vunpack.c.l.b16 %v4138
    %v4179 = vunpack.c.l.b16 %v4139
    %v4180 = vunpack.c.l.b16 %v4140
    %v4181 = vunpack.c.l.b16 %v4141
    %v4182 = vunpack.c.l.b16 %v4142
    %v4183 = vunpack.c.l.b16 %v4143
    %v4184 = vpack.c.b16 %v4169, %v4168
    %v4185 = vpack.c.b16 %v4171, %v4170
    %v4186 = vpack.c.b16 %v4173, %v4172
    %v4187 = vpack.c.b16 %v4175, %v4174
    %v4188 = vpack.c.b16 %v4177, %v4176
    %v4189 = vpack.c.b16 %v4179, %v4178
    %v4190 = vpack.c.b16 %v4181, %v4180
    %v4191 = vpack.c.b16 %v4183, %v4182
    %4200 = vmatprep.subr.bf16.mxu0 0
    %4201 = vmatpush1.bf16.msra.mxu0 %v4184
    %4202 = vmatprep.subr.bf16.mxu0 0
    %4203 = vmatpush1.bf16.msra.mxu0 %v4185
    %4204 = vmatprep.subr.bf16.mxu0 0
    %4205 = vmatpush1.bf16.msra.mxu0 %v4186
    %4206 = vmatprep.subr.bf16.mxu0 0
    %4207 = vmatpush1.bf16.msra.mxu0 %v4187
    %4208 = vmatprep.subr.bf16.mxu0 0
    %4209 = vmatpush1.bf16.msra.mxu0 %v4188
    %4210 = vmatprep.subr.bf16.mxu0 0
    %4211 = vmatpush1.bf16.msra.mxu0 %v4189
    %4212 = vmatprep.subr.bf16.mxu0 0
    %4213 = vmatpush1.bf16.msra.mxu0 %v4190
    %4214 = vmatprep.subr.bf16.mxu0 0
    %4215 = vmatpush1.bf16.msra.mxu0 %v4191
    %4216 = vmatprep.subr.bf16.mxu0 0
    %4217 = vmatpush1.bf16.msra.mxu0 0
    %4218 = vmatprep.subr.bf16.mxu0 0
    %4219 = vmatpush1.bf16.msra.mxu0 0
    %4220 = vmatprep.subr.bf16.mxu0 0
    %4221 = vmatpush1.bf16.msra.mxu0 0
    %4222 = vmatprep.subr.bf16.mxu0 0
    %4223 = vmatpush1.bf16.msra.mxu0 0
    %4224 = vmatprep.subr.bf16.mxu0 0
    %4225 = vmatpush1.bf16.msra.mxu0 0
    %4226 = vmatprep.subr.bf16.mxu0 0
    %4227 = vmatpush1.bf16.msra.mxu0 0
    %4228 = vmatprep.subr.bf16.mxu0 0
    %4229 = vmatpush1.bf16.msra.mxu0 0
    %4230 = vmatprep.subr.bf16.mxu0 0
    %4231 = vmatpush1.bf16.msra.mxu0 0
    %4232 = vmatprep.mubr.bf16.mxu0 0
    %4233 = vmatmul.mubr.bf16.gmra.mrb[0].mxu0 %v4144
    %v4234 = vpop.f32.mrb[0].mxu0
    %v4235 = vadd.f32 %v4150, %v4234
    %v4236 = vpop.f32.mrb[0].mxu0
    %v4237 = vpop.f32.mrb[0].mxu0
    %v4238 = vpop.f32.mrb[0].mxu0
    %4239 = vdwg.mxu0
    %v4240 = vmul.f32 %v4235, 0.044715
    %v4241 = vmul.f32 %v4240, %v4235
    %v4242 = vmul.f32 %v4241, %v4235
    %v4243 = vadd.f32 %v4235, %v4242
    %v4244 = vmul.f32 %v4243, 0.7978846
    %v4245 = vmul.f32 %v4235, 0.5
    %v4246 = vtanh.pop %v4244
    %v4247 = vadd.f32 %v4246, 1.0
    %v4248 = vmul.f32 %v4245, %v4247
    %v4249 = vld [vmem:[#allocation29] sm:$0xf]
    %v4250 = vld [vmem:[#allocation29 + $0x4] sm:$0xf]
    %v4251 = vld [vmem:[#allocation29 + $0x8] sm:$0xf]
    %v4252 = vld [vmem:[#allocation29 + $0xc] sm:$0xf]
    %v4253 = vld [vmem:[#allocation29 + $0x10] sm:$0xf]
    %v4254 = vld [vmem:[#allocation29 + $0x14] sm:$0xf]
    %v4255 = vld [vmem:[#allocation29 + $0x18] sm:$0xf]
    %v4256 = vld [vmem:[#allocation29 + $0x1c] sm:$0xf]
    %v4257 = vld [vmem:[#allocation29 + $0x20] sm:$0xf]
    %v4258 = vld [vmem:[#allocation29 + $0x24] sm:$0xf]
    %v4259 = vld [vmem:[#allocation29 + $0x28] sm:$0xf]
    %v4260 = vld [vmem:[#allocation29 + $0x2c] sm:$0xf]
    %v4261 = vld [vmem:[#allocation29 + $0x30] sm:$0xf]
    %v4262 = vld [vmem:[#allocation29 + $0x34] sm:$0xf]
    %v4263 = vld [vmem:[#allocation29 + $0x38] sm:$0xf]
    %v4264 = vld [vmem:[#allocation29 + $0x3c] sm:$0xf]
    %v4265 = vpack.c.bf16 %v4248, %v4248
    %v4266 = vld [vmem:[#allocation30] sm:$0x1]
    %v4268 = vlaneseq
    %v4269 = vshrl.u32 %v4268, 7
    %v4270 = vsub.s32 0, %v4269
    %v4271 = vrot.slane %v4266, %v4270
    %v4289 = vunpack.c.l.b16 %v4249
    %v4290 = vunpack.c.l.b16 %v4250
    %v4291 = vunpack.c.l.b16 %v4251
    %v4292 = vunpack.c.l.b16 %v4252
    %v4293 = vunpack.c.l.b16 %v4253
    %v4294 = vunpack.c.l.b16 %v4254
    %v4295 = vunpack.c.l.b16 %v4255
    %v4296 = vunpack.c.l.b16 %v4256
    %v4297 = vunpack.c.l.b16 %v4257
    %v4298 = vunpack.c.l.b16 %v4258
    %v4299 = vunpack.c.l.b16 %v4259
    %v4300 = vunpack.c.l.b16 %v4260
    %v4301 = vunpack.c.l.b16 %v4261
    %v4302 = vunpack.c.l.b16 %v4262
    %v4303 = vunpack.c.l.b16 %v4263
    %v4304 = vunpack.c.l.b16 %v4264
    %v4305 = vpack.c.b16 %v4290, %v4289
    %v4306 = vpack.c.b16 %v4292, %v4291
    %v4307 = vpack.c.b16 %v4294, %v4293
    %v4308 = vpack.c.b16 %v4296, %v4295
    %v4309 = vpack.c.b16 %v4298, %v4297
    %v4310 = vpack.c.b16 %v4300, %v4299
    %v4311 = vpack.c.b16 %v4302, %v4301
    %v4312 = vpack.c.b16 %v4304, %v4303
    %4321 = vmatprep.subr.bf16.mxu0 0
    %4322 = vmatpush1.bf16.msra.mxu0 %v4305
    %4323 = vmatprep.subr.bf16.mxu0 0
    %4324 = vmatpush1.bf16.msra.mxu0 %v4306
    %4325 = vmatprep.subr.bf16.mxu0 0
    %4326 = vmatpush1.bf16.msra.mxu0 %v4307
    %4327 = vmatprep.subr.bf16.mxu0 0
    %4328 = vmatpush1.bf16.msra.mxu0 %v4308
    %4329 = vmatprep.subr.bf16.mxu0 0
    %4330 = vmatpush1.bf16.msra.mxu0 %v4309
    %4331 = vmatprep.subr.bf16.mxu0 0
    %4332 = vmatpush1.bf16.msra.mxu0 %v4310
    %4333 = vmatprep.subr.bf16.mxu0 0
    %4334 = vmatpush1.bf16.msra.mxu0 %v4311
    %4335 = vmatprep.subr.bf16.mxu0 0
    %4336 = vmatpush1.bf16.msra.mxu0 %v4312
    %4337 = vmatprep.subr.bf16.mxu0 0
    %4338 = vmatpush1.bf16.msra.mxu0 0
    %4339 = vmatprep.subr.bf16.mxu0 0
    %4340 = vmatpush1.bf16.msra.mxu0 0
    %4341 = vmatprep.subr.bf16.mxu0 0
    %4342 = vmatpush1.bf16.msra.mxu0 0
    %4343 = vmatprep.subr.bf16.mxu0 0
    %4344 = vmatpush1.bf16.msra.mxu0 0
    %4345 = vmatprep.subr.bf16.mxu0 0
    %4346 = vmatpush1.bf16.msra.mxu0 0
    %4347 = vmatprep.subr.bf16.mxu0 0
    %4348 = vmatpush1.bf16.msra.mxu0 0
    %4349 = vmatprep.subr.bf16.mxu0 0
    %4350 = vmatpush1.bf16.msra.mxu0 0
    %4351 = vmatprep.subr.bf16.mxu0 0
    %4352 = vmatpush1.bf16.msra.mxu0 0
    %4353 = vmatprep.mubr.bf16.mxu0 0
    %4354 = vmatmul.mubr.bf16.gmra.mrb[0].mxu0 %v4265
    %v4355 = vpop.f32.mrb[0].mxu0
    %v4356 = vadd.f32 %v4271, %v4355
    %v4357 = vpop.f32.mrb[0].mxu0
    %v4358 = vpop.f32.mrb[0].mxu0
    %v4359 = vpop.f32.mrb[0].mxu0
    %4360 = vdwg.mxu0
    %4361 = vst [vmem:[#allocation32] sm:$0xff] %v4356
    // Predicated region
    $region178: #{eps_forward.1} parent=1 // pred_check
      _
    $region179: #{eps_forward.1} parent=1 // pred_check_branch
      %4363 = sbr.rel (0) target = $region181
    $region180: #{eps_forward.1} parent=1 // pred_region
      %s4365 = ssub.s32 128, 128
      %4366 = vsyncadd [#allocation5], %s4365
      %s4368 = sshll.u32 [#allocation32], 4
      %s4369 = int_to_ptr.vmem [resolvable:$true] %s4368
      %4371 = dma.vmem_to_hbm [thread:$0]  %s4369, 128, %s26, [#allocation5]
    $region181: #{eps_forward.1} parent=1 // pred_fallthru
      _
    // Predicated region
    $region182: #{eps_forward.1} parent=1 // pred_check
      _
    $region183: #{eps_forward.1} parent=1 // pred_check_branch
      %4373 = sbr.rel (0) target = $region185
    $region184: #{eps_forward.1} parent=1 // pred_region
      %4374 = dma.done [#allocation5], 128
    $region185: #{eps_forward.1} parent=1 // pred_fallthru
      _
    %4375 = vsyncpa [#allocation4], 1
    %4376 = vsyncpa [#allocation7], 1
    %4377 = vsyncpa [#allocation10], 1
    %4378 = vsyncpa [#allocation13], 1
    %4379 = vsyncpa [#allocation16], 1
    %4380 = vsyncpa [#allocation19], 1
    %4381 = vsyncpa [#allocation22], 1
    %4382 = vsyncpa [#allocation25], 1
    %4383 = vsyncpa [#allocation28], 1
    %4384 = vsyncpa [#allocation31], 1
    %4385 = vsyncpa [#allocation5], 1

</llo_original>
